<compile_context>
chip_gen: v7x
topology: tpu7x:2x2x1
jax: 0.10.0
libtpu: 0.0.40
codegen_flags: <defaults>
</compile_context>

<pallas_src>
import functools

import jax
import jax.numpy as jnp
import numpy as np
from jax.experimental import pallas as pl
from jax.experimental.pallas import tpu as pltpu


# ----------------------------------- kernel ---------------------------------------

def token_embed_kernel(x_ref,
                       w1_ref, b1_ref, w2_ref, b2_ref,
                       w3g_ref, w3f_ref, b3_ref, w4_ref, b4_ref,
                       out_ref, *, compute_dtype):
    TG, N, Cin = x_ref.shape

    # Flatten the group tile into the GEMM M-dim: one big slab per layer.
    x = x_ref[...].reshape(TG * N, Cin).astype(compute_dtype)

    # first_conv[0..2]: Conv1d(3,128) + folded BN + ReLU
    h1 = jnp.dot(x, w1_ref[...], preferred_element_type=jnp.float32) + b1_ref[...]
    h1 = jnp.maximum(h1, 0.0)                                       # (TG*N, 128) f32

    # first_conv[3]: Conv1d(128,256)
    f = jnp.dot(h1.astype(compute_dtype), w2_ref[...],
                preferred_element_type=jnp.float32) + b2_ref[...]   # (TG*N, 256) f32

    # feature_global = max over points (per group)
    fg = jnp.max(f.reshape(TG, N, -1), axis=1)                      # (TG, 256) f32

    # second_conv[0]: Conv1d(512,512) with the cat([fg, f]) input replaced by a
    # split-weight contraction: global half once per group, pointwise half per point.
    hg = jnp.dot(fg.astype(compute_dtype), w3g_ref[...],
                 preferred_element_type=jnp.float32)                # (TG, 512)
    hf = jnp.dot(f.astype(compute_dtype), w3f_ref[...],
                 preferred_element_type=jnp.float32)                # (TG*N, 512)
    C3 = hg.shape[-1]
    h3 = hf.reshape(TG, N, C3) + hg[:, None, :] + b3_ref[...]       # folded BN bias
    h3 = jnp.maximum(h3, 0.0)                                       # ReLU, f32

    # second_conv[3]: Conv1d(512,out_c)
    o = jnp.dot(h3.reshape(TG * N, C3).astype(compute_dtype), w4_ref[...],
                preferred_element_type=jnp.float32) + b4_ref[...]   # (TG*N, out_c)

    # final max over points -> (TG, out_c)
    out_ref[...] = jnp.max(o.reshape(TG, N, -1), axis=1).astype(out_ref.dtype)


# ----------------------------------- wrapper ---------------------------------------

def token_embed_forward(point_groups, params, *, group_tile=8,
                        compute_dtype=jnp.bfloat16):
    B, G, N, Cin = point_groups.shape
    BG = B * G
    out_c = params["w4"].shape[-1]

    x = point_groups.reshape(BG, N, Cin)

    TG = min(group_tile, BG)
    assert BG % TG == 0, "B*G must be divisible by the group tile"
    grid = (BG // TG,)

    def full2d(arr):
        # Weights: full array, constant index -> loaded once, resident in VMEM.
        return pl.BlockSpec(arr.shape, lambda i: (0, 0))

    weight_order = ["w1", "b1", "w2", "b2", "w3g", "w3f", "b3", "w4", "b4"]
    in_specs = [pl.BlockSpec((TG, N, Cin), lambda i: (i, 0, 0))] + \
               [full2d(params[name]) for name in weight_order]
    out_spec = pl.BlockSpec((TG, out_c), lambda i: (i, 0))

    kernel = functools.partial(token_embed_kernel, compute_dtype=compute_dtype)

    out = pl.pallas_call(
        kernel,
        out_shape=jax.ShapeDtypeStruct((BG, out_c), jnp.float32),
        grid_spec=pltpu.PrefetchScalarGridSpec(
            num_scalar_prefetch=0,
            grid=grid,
            in_specs=in_specs,
            out_specs=out_spec,
        ),
        compiler_params=pltpu.CompilerParams(
            # Groups are fully independent -> parallel (2 TCs on v7x).
            dimension_semantics=("parallel",),
        ),
    )(x, *[params[name] for name in weight_order])

    return out.reshape(B, G, out_c)


# --------------------------- parameter construction & fold --------------------------

def init_raw_params(key, *, in_c=3, out_c=256):
    """Raw PyTorch-layout params for the in_c == 3 branch (eval-mode BN stats)."""
    assert in_c == 3
    c1, c2 = 128, 256
    c3 = 2 * c2                      # 512 after the cat
    ks = jax.random.split(key, 16)

    def w(k, o, i):
        return jax.random.normal(k, (o, i), jnp.float32) / np.sqrt(i)

    def b(k, o):
        return 0.1 * jax.random.normal(k, (o,), jnp.float32)

    return {
        "w1": w(ks[0], c1, in_c), "b1": b(ks[1], c1),
        "bn1_g": 1.0 + 0.2 * jax.random.normal(ks[2], (c1,), jnp.float32),
        "bn1_b": 0.1 * jax.random.normal(ks[3], (c1,), jnp.float32),
        "bn1_m": 0.1 * jax.random.normal(ks[4], (c1,), jnp.float32),
        "bn1_v": jax.random.uniform(ks[5], (c1,), jnp.float32, minval=0.5, maxval=1.5),
        "w2": w(ks[6], c2, c1), "b2": b(ks[7], c2),
        "w3": w(ks[8], c3, c3), "b3": b(ks[9], c3),
        "bn3_g": 1.0 + 0.2 * jax.random.normal(ks[10], (c3,), jnp.float32),
        "bn3_b": 0.1 * jax.random.normal(ks[11], (c3,), jnp.float32),
        "bn3_m": 0.1 * jax.random.normal(ks[12], (c3,), jnp.float32),
        "bn3_v": jax.random.uniform(ks[13], (c3,), jnp.float32, minval=0.5, maxval=1.5),
        "w4": w(ks[14], out_c, c3), "b4": b(ks[15], out_c),
    }


def fold_and_pack(raw, *, weight_dtype=jnp.bfloat16, eps=1e-5):
    """Fold eval-mode BN into the preceding convs, pre-transpose to (in, out),
    split the second_conv first layer by its [feature_global | feature] input halves,
    and cast matmul weights to bf16 (biases stay f32 for the f32 epilogue)."""
    s1 = raw["bn1_g"] / jnp.sqrt(raw["bn1_v"] + eps)
    w1 = (raw["w1"] * s1[:, None]).T                              # (3, 128)
    b1 = s1 * (raw["b1"] - raw["bn1_m"]) + raw["bn1_b"]

    w2 = raw["w2"].T                                              # (128, 256)
    b2 = raw["b2"]

    s3 = raw["bn3_g"] / jnp.sqrt(raw["bn3_v"] + eps)
    w3 = (raw["w3"] * s3[:, None]).T                              # (512, 512) (in, out)
    b3 = s3 * (raw["b3"] - raw["bn3_m"]) + raw["bn3_b"]
    c2 = w2.shape[1]                                              # 256

    w4 = raw["w4"].T                                              # (512, out_c)
    b4 = raw["b4"]

    f32 = jnp.float32
    return {
        "w1": w1.astype(weight_dtype), "b1": b1.reshape(1, -1).astype(f32),
        "w2": w2.astype(weight_dtype), "b2": b2.reshape(1, -1).astype(f32),
        "w3g": w3[:c2].astype(weight_dtype),     # rows for the feature_global half
        "w3f": w3[c2:].astype(weight_dtype),     # rows for the per-point feature half
        "b3": b3.reshape(1, -1).astype(f32),
        "w4": w4.astype(weight_dtype), "b4": b4.reshape(1, -1).astype(f32),
    }


# ------------------------------ pure-JAX reference ----------------------------------

def ref_forward(point_groups, raw, *, eps=1e-5):
    bs, g, n, c = point_groups.shape
    x = point_groups.reshape(bs * g, n, c)                        # (BG, N, 3)

    def conv(z, w, b):                                            # Conv1d k=1, channel-last
        return jnp.einsum("bnc,oc->bno", z, w) + b

    def bn(z, gamma, beta, mean, var):
        return (z - mean) / jnp.sqrt(var + eps) * gamma + beta

    h = conv(x, raw["w1"], raw["b1"])
    h = jax.nn.relu(bn(h, raw["bn1_g"], raw["bn1_b"], raw["bn1_m"], raw["bn1_v"]))
    f = conv(h, raw["w2"], raw["b2"])                             # (BG, N, 256)
    fg = jnp.max(f, axis=1, keepdims=True)                        # (BG, 1, 256)
    feat = jnp.concatenate([jnp.broadcast_to(fg, f.shape), f], axis=-1)   # (BG, N, 512)
    h = conv(feat, raw["w3"], raw["b3"])
    h = jax.nn.relu(bn(h, raw["bn3_g"], raw["bn3_b"], raw["bn3_m"], raw["bn3_v"]))
    o = conv(h, raw["w4"], raw["b4"])                             # (BG, N, out_c)
    return jnp.max(o, axis=1).reshape(bs, g, -1)


# --------------------------------------- main ---------------------------------------

if __name__ == "__main__":
    B, G, N, in_c, out_c = 2, 8, 32, 3, 256       # B*G = 16 groups, 32 points each

    key = jax.random.PRNGKey(0)
    k_pts, k_par = jax.random.split(key)
    point_groups = jax.random.normal(k_pts, (B, G, N, in_c), jnp.float32)

    raw_params = init_raw_params(k_par, in_c=in_c, out_c=out_c)
    params = fold_and_pack(raw_params, weight_dtype=jnp.bfloat16)

    out = token_embed_forward(point_groups, params,
                              group_tile=8, compute_dtype=jnp.bfloat16)
    out = jax.block_until_ready(out)

    ref = ref_forward(point_groups, raw_params)
    np.testing.assert_allclose(np.asarray(out), np.asarray(ref), rtol=2e-2, atol=2e-2)

    print("KERNEL_OK")
</pallas_src>

<mosaic_0001>
module attributes {stable_mosaic.version = 11 : i64} {
  func.func @token_embed_kernel(%arg0: i32, %arg1: memref<8x32x3xf32, #tpu.memory_space<vmem>>, %arg2: memref<3x128xbf16, #tpu.memory_space<vmem>>, %arg3: memref<1x128xf32, #tpu.memory_space<vmem>>, %arg4: memref<128x256xbf16, #tpu.memory_space<vmem>>, %arg5: memref<1x256xf32, #tpu.memory_space<vmem>>, %arg6: memref<256x512xbf16, #tpu.memory_space<vmem>>, %arg7: memref<256x512xbf16, #tpu.memory_space<vmem>>, %arg8: memref<1x512xf32, #tpu.memory_space<vmem>>, %arg9: memref<512x256xbf16, #tpu.memory_space<vmem>>, %arg10: memref<1x256xf32, #tpu.memory_space<vmem>>, %arg11: memref<8x256xf32, #tpu.memory_space<vmem>>) attributes {dimension_semantics = [#tpu.dimension_semantics<parallel>], iteration_bounds = array<i64: 2>, scalar_prefetch = 0 : i64, scratch_operands = 0 : i64, tpu.core_type = #tpu.core_type<tc>, window_params = [{transform_indices = @transform_0, window_bounds = array<i64: 8, 32, 3>}, {pipeline_mode = #tpu.pipeline_mode<synchronous>, transform_indices = @transform_1, window_bounds = array<i64: 3, 128>}, {pipeline_mode = #tpu.pipeline_mode<synchronous>, transform_indices = @transform_2, window_bounds = array<i64: 1, 128>}, {pipeline_mode = #tpu.pipeline_mode<synchronous>, transform_indices = @transform_3, window_bounds = array<i64: 128, 256>}, {pipeline_mode = #tpu.pipeline_mode<synchronous>, transform_indices = @transform_4, window_bounds = array<i64: 1, 256>}, {pipeline_mode = #tpu.pipeline_mode<synchronous>, transform_indices = @transform_5, window_bounds = array<i64: 256, 512>}, {pipeline_mode = #tpu.pipeline_mode<synchronous>, transform_indices = @transform_6, window_bounds = array<i64: 256, 512>}, {pipeline_mode = #tpu.pipeline_mode<synchronous>, transform_indices = @transform_7, window_bounds = array<i64: 1, 512>}, {pipeline_mode = #tpu.pipeline_mode<synchronous>, transform_indices = @transform_8, window_bounds = array<i64: 512, 256>}, {pipeline_mode = #tpu.pipeline_mode<synchronous>, transform_indices = @transform_9, window_bounds = array<i64: 1, 256>}, {transform_indices = @transform_10, window_bounds = array<i64: 8, 256>}]} {
    %c0 = arith.constant 0 : index
    %c0_0 = arith.constant 0 : index
    %c0_1 = arith.constant 0 : index
    %0 = vector.load %arg1[%c0, %c0_0, %c0_1] : memref<8x32x3xf32, #tpu.memory_space<vmem>>, vector<8x32x3xf32>
    %1 = vector.shape_cast %0 : vector<8x32x3xf32> to vector<256x3xf32>
    %2 = arith.truncf %1 : vector<256x3xf32> to vector<256x3xbf16>
    %c0_2 = arith.constant 0 : index
    %c0_3 = arith.constant 0 : index
    %3 = vector.load %arg2[%c0_2, %c0_3] : memref<3x128xbf16, #tpu.memory_space<vmem>>, vector<3x128xbf16>
    %cst = arith.constant dense<0.000000e+00> : vector<256x128xf32>
    %4 = tpu.matmul %2, %3, %cst {dimension_numbers = #tpu.dot_dimension_numbers<[1], [0], [0], [1], [0, 0, 1, 1], [], []>} : vector<256x3xbf16>, vector<3x128xbf16>, vector<256x128xf32> -> vector<256x128xf32>
    %c0_4 = arith.constant 0 : index
    %c0_5 = arith.constant 0 : index
    %5 = vector.load %arg3[%c0_4, %c0_5] : memref<1x128xf32, #tpu.memory_space<vmem>>, vector<1x128xf32>
    %6 = vector.broadcast %5 : vector<1x128xf32> to vector<256x128xf32>
    %7 = arith.addf %4, %6 : vector<256x128xf32>
    %cst_6 = arith.constant 0.000000e+00 : f32
    %8 = vector.broadcast %cst_6 : f32 to vector<256x128xf32>
    %9 = arith.maximumf %7, %8 : vector<256x128xf32>
    %10 = arith.truncf %9 : vector<256x128xf32> to vector<256x128xbf16>
    %c0_7 = arith.constant 0 : index
    %c0_8 = arith.constant 0 : index
    %11 = vector.load %arg4[%c0_7, %c0_8] : memref<128x256xbf16, #tpu.memory_space<vmem>>, vector<128x256xbf16>
    %cst_9 = arith.constant dense<0.000000e+00> : vector<256x256xf32>
    %12 = tpu.matmul %10, %11, %cst_9 {dimension_numbers = #tpu.dot_dimension_numbers<[1], [0], [0], [1], [0, 0, 1, 1], [], []>} : vector<256x128xbf16>, vector<128x256xbf16>, vector<256x256xf32> -> vector<256x256xf32>
    %c0_10 = arith.constant 0 : index
    %c0_11 = arith.constant 0 : index
    %13 = vector.load %arg5[%c0_10, %c0_11] : memref<1x256xf32, #tpu.memory_space<vmem>>, vector<1x256xf32>
    %14 = vector.broadcast %13 : vector<1x256xf32> to vector<256x256xf32>
    %15 = arith.addf %12, %14 : vector<256x256xf32>
    %16 = vector.shape_cast %15 : vector<256x256xf32> to vector<8x32x256xf32>
    %cst_12 = arith.constant dense<0xFF800000> : vector<8x256xf32>
    %17 = vector.multi_reduction <maximumf>, %16, %cst_12 [1] : vector<8x32x256xf32> to vector<8x256xf32>
    %18 = arith.truncf %17 : vector<8x256xf32> to vector<8x256xbf16>
    %c0_13 = arith.constant 0 : index
    %c0_14 = arith.constant 0 : index
    %19 = vector.load %arg6[%c0_13, %c0_14] : memref<256x512xbf16, #tpu.memory_space<vmem>>, vector<256x512xbf16>
    %cst_15 = arith.constant dense<0.000000e+00> : vector<8x512xf32>
    %20 = tpu.matmul %18, %19, %cst_15 {dimension_numbers = #tpu.dot_dimension_numbers<[1], [0], [0], [1], [0, 0, 1, 1], [], []>} : vector<8x256xbf16>, vector<256x512xbf16>, vector<8x512xf32> -> vector<8x512xf32>
    %21 = arith.truncf %15 : vector<256x256xf32> to vector<256x256xbf16>
    %c0_16 = arith.constant 0 : index
    %c0_17 = arith.constant 0 : index
    %22 = vector.load %arg7[%c0_16, %c0_17] : memref<256x512xbf16, #tpu.memory_space<vmem>>, vector<256x512xbf16>
    %cst_18 = arith.constant dense<0.000000e+00> : vector<256x512xf32>
    %23 = tpu.matmul %21, %22, %cst_18 {dimension_numbers = #tpu.dot_dimension_numbers<[1], [0], [0], [1], [0, 0, 1, 1], [], []>} : vector<256x256xbf16>, vector<256x512xbf16>, vector<256x512xf32> -> vector<256x512xf32>
    %24 = vector.shape_cast %23 : vector<256x512xf32> to vector<8x32x512xf32>
    %25 = vector.shape_cast %20 : vector<8x512xf32> to vector<8x1x512xf32>
    %26 = vector.broadcast %25 : vector<8x1x512xf32> to vector<8x32x512xf32>
    %27 = arith.addf %24, %26 : vector<8x32x512xf32>
    %c0_19 = arith.constant 0 : index
    %c0_20 = arith.constant 0 : index
    %28 = vector.load %arg8[%c0_19, %c0_20] : memref<1x512xf32, #tpu.memory_space<vmem>>, vector<1x512xf32>
    %29 = vector.shape_cast %28 : vector<1x512xf32> to vector<1x1x512xf32>
    %30 = vector.broadcast %29 : vector<1x1x512xf32> to vector<8x32x512xf32>
    %31 = arith.addf %27, %30 : vector<8x32x512xf32>
    %cst_21 = arith.constant 0.000000e+00 : f32
    %32 = vector.broadcast %cst_21 : f32 to vector<8x32x512xf32>
    %33 = arith.maximumf %31, %32 : vector<8x32x512xf32>
    %34 = vector.shape_cast %33 : vector<8x32x512xf32> to vector<256x512xf32>
    %35 = arith.truncf %34 : vector<256x512xf32> to vector<256x512xbf16>
    %c0_22 = arith.constant 0 : index
    %c0_23 = arith.constant 0 : index
    %36 = vector.load %arg9[%c0_22, %c0_23] : memref<512x256xbf16, #tpu.memory_space<vmem>>, vector<512x256xbf16>
    %cst_24 = arith.constant dense<0.000000e+00> : vector<256x256xf32>
    %37 = tpu.matmul %35, %36, %cst_24 {dimension_numbers = #tpu.dot_dimension_numbers<[1], [0], [0], [1], [0, 0, 1, 1], [], []>} : vector<256x512xbf16>, vector<512x256xbf16>, vector<256x256xf32> -> vector<256x256xf32>
    %c0_25 = arith.constant 0 : index
    %c0_26 = arith.constant 0 : index
    %38 = vector.load %arg10[%c0_25, %c0_26] : memref<1x256xf32, #tpu.memory_space<vmem>>, vector<1x256xf32>
    %39 = vector.broadcast %38 : vector<1x256xf32> to vector<256x256xf32>
    %40 = arith.addf %37, %39 : vector<256x256xf32>
    %41 = vector.shape_cast %40 : vector<256x256xf32> to vector<8x32x256xf32>
    %cst_27 = arith.constant dense<0xFF800000> : vector<8x256xf32>
    %42 = vector.multi_reduction <maximumf>, %41, %cst_27 [1] : vector<8x32x256xf32> to vector<8x256xf32>
    %c0_28 = arith.constant 0 : index
    %c0_29 = arith.constant 0 : index
    %43 = vector.load %arg11[%c0_28, %c0_29] : memref<8x256xf32, #tpu.memory_space<vmem>>, vector<8x256xf32>
    tpu.vector_store %arg11[%c0_28, %c0_29], %42 {strides = array<i32>} : memref<8x256xf32, #tpu.memory_space<vmem>>, vector<8x256xf32>,
    return
  }
  func.func @transform_0(%arg0: i32) -> (i32, i32, i32) {
    %c0_i32 = arith.constant 0 : i32
    %c0_i32_0 = arith.constant 0 : i32
    %c0_i32_1 = arith.constant 0 : i32
    return %arg0, %c0_i32, %c0_i32_0 : i32, i32, i32
  }
  func.func @transform_1(%arg0: i32) -> (i32, i32) {
    %c0_i32 = arith.constant 0 : i32
    %c0_i32_0 = arith.constant 0 : i32
    %c0_i32_1 = arith.constant 0 : i32
    return %c0_i32, %c0_i32_0 : i32, i32
  }
  func.func @transform_2(%arg0: i32) -> (i32, i32) {
    %c0_i32 = arith.constant 0 : i32
    %c0_i32_0 = arith.constant 0 : i32
    %c0_i32_1 = arith.constant 0 : i32
    return %c0_i32, %c0_i32_0 : i32, i32
  }
  func.func @transform_3(%arg0: i32) -> (i32, i32) {
    %c0_i32 = arith.constant 0 : i32
    %c0_i32_0 = arith.constant 0 : i32
    %c0_i32_1 = arith.constant 0 : i32
    return %c0_i32, %c0_i32_0 : i32, i32
  }
  func.func @transform_4(%arg0: i32) -> (i32, i32) {
    %c0_i32 = arith.constant 0 : i32
    %c0_i32_0 = arith.constant 0 : i32
    %c0_i32_1 = arith.constant 0 : i32
    return %c0_i32, %c0_i32_0 : i32, i32
  }
  func.func @transform_5(%arg0: i32) -> (i32, i32) {
    %c0_i32 = arith.constant 0 : i32
    %c0_i32_0 = arith.constant 0 : i32
    %c0_i32_1 = arith.constant 0 : i32
    return %c0_i32, %c0_i32_0 : i32, i32
  }
  func.func @transform_6(%arg0: i32) -> (i32, i32) {
    %c0_i32 = arith.constant 0 : i32
    %c0_i32_0 = arith.constant 0 : i32
    %c0_i32_1 = arith.constant 0 : i32
    return %c0_i32, %c0_i32_0 : i32, i32
  }
  func.func @transform_7(%arg0: i32) -> (i32, i32) {
    %c0_i32 = arith.constant 0 : i32
    %c0_i32_0 = arith.constant 0 : i32
    %c0_i32_1 = arith.constant 0 : i32
    return %c0_i32, %c0_i32_0 : i32, i32
  }
  func.func @transform_8(%arg0: i32) -> (i32, i32) {
    %c0_i32 = arith.constant 0 : i32
    %c0_i32_0 = arith.constant 0 : i32
    %c0_i32_1 = arith.constant 0 : i32
    return %c0_i32, %c0_i32_0 : i32, i32
  }
  func.func @transform_9(%arg0: i32) -> (i32, i32) {
    %c0_i32 = arith.constant 0 : i32
    %c0_i32_0 = arith.constant 0 : i32
    %c0_i32_1 = arith.constant 0 : i32
    return %c0_i32, %c0_i32_0 : i32, i32
  }
  func.func @transform_10(%arg0: i32) -> (i32, i32) {
    %c0_i32 = arith.constant 0 : i32
    %c0_i32_0 = arith.constant 0 : i32
    return %arg0, %c0_i32 : i32, i32
  }
}

</mosaic_0001>

<llo_original>
// kernel: tpu_custom_call.1
$region0: #{tpu_custom_call.1}
  #allocation0 [shape = 'u32[]', space=smem, size = 0x4, offset = 0x4, fixed_abs, tag = 'smem constant byte address 0x4 - core index']
  #allocation1 [shape = 'u32[144,128]{1,0:T(1,128)}', space=vmem, size = 0x12000, scoped, tag = 'internal scratch']
  %s0 = inlined_call_operand.vmem [shape: f32[16,32,3], index: 0, kind: input, shape index: {}]
  %s1 = inlined_call_operand.vmem [shape: bf16[3,128], index: 1, kind: input, shape index: {}]
  %s2 = inlined_call_operand.vmem [shape: f32[1,128], index: 2, kind: input, shape index: {}]
  %s3 = inlined_call_operand.hbm [shape: bf16[128,256], index: 3, kind: input, shape index: {}]
  %s4 = inlined_call_operand.vmem [shape: f32[1,256], index: 4, kind: input, shape index: {}]
  %s5 = inlined_call_operand.vmem [shape: bf16[256,512], index: 5, kind: input, shape index: {}]
  %s6 = inlined_call_operand.hbm [shape: bf16[256,512], index: 6, kind: input, shape index: {}]
  %s7 = inlined_call_operand.vmem [shape: f32[1,512], index: 7, kind: input, shape index: {}]
  %s8 = inlined_call_operand.hbm [shape: bf16[512,256], index: 8, kind: input, shape index: {}]
  %s9 = inlined_call_operand.vmem [shape: f32[1,256], index: 9, kind: input, shape index: {}]
  %s10 = inlined_call_operand.hbm [shape: f32[16,256], index: 10, kind: output, shape index: {}]
  %s11 = sld [smem:[#allocation0]]
  $region85: #{tpu_custom_call.1} parent=0
    _
  %s13 = ssub.s32 1, %s11
  %s14 = scalar_select 0, %s13, %s11
  $region1: #{tpu_custom_call.1} parent=0
    #allocation2 [shape = 'u8[65536]{0}', space=vmem, size = 0x10000, scoped, tag = 'input window, operand 3, single buffered']
    #allocation3 [shape = 's32[2]{0}', space=sflag, size = 0x8, scoped, tag = 'scoped memory for tpu_custom_call.1']
    #allocation4 [shape = 's32[2]{0}', space=sflag, size = 0x8, scoped, tag = 'scoped memory for tpu_custom_call.1']
    #allocation5 [shape = 'u8[262144]{0}', space=vmem, size = 0x40000, scoped, tag = 'input window, operand 6, single buffered']
    #allocation6 [shape = 's32[1]{0}', space=sflag, size = 0x4, scoped, tag = 'scoped memory for tpu_custom_call.1']
    #allocation7 [shape = 'u8[262144]{0}', space=vmem, size = 0x40000, scoped, tag = 'input window, operand 8, single buffered']
    #allocation8 [shape = 'u8[16384]{0}', space=vmem, size = 0x4000, scoped, tag = 'output window, operand 0']
    %15 = vsyncpa [#allocation3], 0
    %16 = vsyncpa [#allocation6], 0
    %17 = vsyncpa [#allocation4], 0
    %s18 = scalar_lea.sflag [#allocation4], 1
    %19 = vsyncpa %s18, 0
    loop: start=0, step=1, limit=4
    $region2: #{tpu_custom_call.1} parent=1 // loop_pre_header
      _
    $region3: #{tpu_custom_call.1} parent=1 // loop_header
      %s21 = sphi 0, %s25
      %p22 = scmp.ge.s32.totalorder %s21, 4
      %s31 = sphi 0, %s33
      %s34 = sphi 0, %s31
      %s35 = sphi 0, %s34
      %s51 = sphi 0, %s35
      %s55 = sphi 0, %s55
      %s57 = sphi 0, %s55
      %s58 = sphi 0, %s57
      %s72 = sphi 0, %s58
      %s76 = sphi 0, %s76
      %s78 = sphi 0, %s76
      %s79 = sphi 0, %s78
      %s93 = sphi 0, %s79
      %s97 = sphi 0, %s97
      %s99 = sphi 0, %s97
      %s100 = sphi 0, %s99
      %s114 = sphi 0, %s100
      %s118 = sphi 0, %s118
      %s120 = sphi 0, %s118
      %s121 = sphi 0, %s120
      %s135 = sphi 0, %s121
      %s139 = sphi 0, %s139
      %s141 = sphi 0, %s139
      %s142 = sphi 0, %s141
      %s156 = sphi 0, %s142
      %s160 = sphi 0, %s160
      %s162 = sphi 0, %s160
      %s163 = sphi 0, %s162
      %s177 = sphi 0, %s163
      %s181 = sphi 0, %s181
      %s183 = sphi 0, %s181
      %s184 = sphi 0, %s183
      %s198 = sphi 0, %s184
      %s202 = sphi 0, %s202
      %s204 = sphi 0, %s202
      %s205 = sphi 0, %s204
      %s219 = sphi 0, %s205
      %s223 = sphi 0, %s223
      %s225 = sphi 0, %s223
      %s226 = sphi 0, %s225
      %s240 = sphi 0, %s226
      %s246 = sphi 0, %s248
      %s249 = sphi 0, %s246
      %s250 = sphi 0, %s249
      %s266 = sphi 0, %s250
    $region4: #{tpu_custom_call.1} parent=1 // loop_header_branch
      %24 = sbr.rel (%p22) target = $region8
    $region5: #{tpu_custom_call.1} parent=1 // loop_body
      %s26 = ssub.s32 %s21, 1
      %s27 = ssub.s32 %s21, 2
      %s28 = sadd.s32 %s21, 1
      %s29 = ssub.s32 %s21, %s28
      %p30 = scmp.eq.s32.totalorder %s29, 0
      %s32 = sadd.s32 %s31, 1
      %s33 = scalar_select %p30, %s31, %s32
      %p36 = pneg %p30
      %p37 = scmp.eq.s32.totalorder %s21, 1
      %p38 = por %p36, %p37
      %p39 = scmp.ne.s32.totalorder %s31, %s34
      %p40 = scmp.eq.s32.totalorder %s21, 0
      %p41 = por %p39, %p40
      %p42 = scmp.ne.s32.totalorder %s31, %s34
      %p43 = scmp.eq.s32.totalorder %s26, 1
      %p44 = por %p42, %p43
      %p45 = scmp.ne.s32.totalorder %s34, %s35
      %p46 = scmp.eq.s32.totalorder %s26, 0
      %p47 = por %p45, %p46
      %p48 = scmp.ne.s32.totalorder %s34, %s35
      %p49 = scmp.eq.s32.totalorder %s27, 1
      %p50 = por %p48, %p49
      %p52 = scmp.ne.s32.totalorder %s35, %s51
      %p53 = scmp.eq.s32.totalorder %s27, 0
      %p54 = por %p52, %p53
      %s56 = sadd.s32 %s55, 1
      %p59 = scmp.eq.s32.totalorder %s21, 1
      %p60 = scmp.ne.s32.totalorder %s55, %s57
      %p61 = scmp.eq.s32.totalorder %s21, 0
      %p62 = por %p60, %p61
      %p63 = scmp.ne.s32.totalorder %s55, %s57
      %p64 = scmp.eq.s32.totalorder %s26, 1
      %p65 = por %p63, %p64
      %p66 = scmp.ne.s32.totalorder %s57, %s58
      %p67 = scmp.eq.s32.totalorder %s26, 0
      %p68 = por %p66, %p67
      %p69 = scmp.ne.s32.totalorder %s57, %s58
      %p70 = scmp.eq.s32.totalorder %s27, 1
      %p71 = por %p69, %p70
      %p73 = scmp.ne.s32.totalorder %s58, %s72
      %p74 = scmp.eq.s32.totalorder %s27, 0
      %p75 = por %p73, %p74
      %s77 = sadd.s32 %s76, 1
      %p80 = scmp.eq.s32.totalorder %s21, 1
      %p81 = scmp.ne.s32.totalorder %s76, %s78
      %p82 = scmp.eq.s32.totalorder %s21, 0
      %p83 = por %p81, %p82
      %p84 = scmp.ne.s32.totalorder %s76, %s78
      %p85 = scmp.eq.s32.totalorder %s26, 1
      %p86 = por %p84, %p85
      %p87 = scmp.ne.s32.totalorder %s78, %s79
      %p88 = scmp.eq.s32.totalorder %s26, 0
      %p89 = por %p87, %p88
      %p90 = scmp.ne.s32.totalorder %s78, %s79
      %p91 = scmp.eq.s32.totalorder %s27, 1
      %p92 = por %p90, %p91
      %p94 = scmp.ne.s32.totalorder %s79, %s93
      %p95 = scmp.eq.s32.totalorder %s27, 0
      %p96 = por %p94, %p95
      %s98 = sadd.s32 %s97, 1
      %p101 = scmp.eq.s32.totalorder %s21, 1
      %p102 = scmp.ne.s32.totalorder %s97, %s99
      %p103 = scmp.eq.s32.totalorder %s21, 0
      %p104 = por %p102, %p103
      %p105 = scmp.ne.s32.totalorder %s97, %s99
      %p106 = scmp.eq.s32.totalorder %s26, 1
      %p107 = por %p105, %p106
      %p108 = scmp.ne.s32.totalorder %s99, %s100
      %p109 = scmp.eq.s32.totalorder %s26, 0
      %p110 = por %p108, %p109
      %p111 = scmp.ne.s32.totalorder %s99, %s100
      %p112 = scmp.eq.s32.totalorder %s27, 1
      %p113 = por %p111, %p112
      %p115 = scmp.ne.s32.totalorder %s100, %s114
      %p116 = scmp.eq.s32.totalorder %s27, 0
      %p117 = por %p115, %p116
      %s119 = sadd.s32 %s118, 1
      %p122 = scmp.eq.s32.totalorder %s21, 1
      %p123 = scmp.ne.s32.totalorder %s118, %s120
      %p124 = scmp.eq.s32.totalorder %s21, 0
      %p125 = por %p123, %p124
      %p126 = scmp.ne.s32.totalorder %s118, %s120
      %p127 = scmp.eq.s32.totalorder %s26, 1
      %p128 = por %p126, %p127
      %p129 = scmp.ne.s32.totalorder %s120, %s121
      %p130 = scmp.eq.s32.totalorder %s26, 0
      %p131 = por %p129, %p130
      %p132 = scmp.ne.s32.totalorder %s120, %s121
      %p133 = scmp.eq.s32.totalorder %s27, 1
      %p134 = por %p132, %p133
      %p136 = scmp.ne.s32.totalorder %s121, %s135
      %p137 = scmp.eq.s32.totalorder %s27, 0
      %p138 = por %p136, %p137
      %s140 = sadd.s32 %s139, 1
      %p143 = scmp.eq.s32.totalorder %s21, 1
      %p144 = scmp.ne.s32.totalorder %s139, %s141
      %p145 = scmp.eq.s32.totalorder %s21, 0
      %p146 = por %p144, %p145
      %p147 = scmp.ne.s32.totalorder %s139, %s141
      %p148 = scmp.eq.s32.totalorder %s26, 1
      %p149 = por %p147, %p148
      %p150 = scmp.ne.s32.totalorder %s141, %s142
      %p151 = scmp.eq.s32.totalorder %s26, 0
      %p152 = por %p150, %p151
      %p153 = scmp.ne.s32.totalorder %s141, %s142
      %p154 = scmp.eq.s32.totalorder %s27, 1
      %p155 = por %p153, %p154
      %p157 = scmp.ne.s32.totalorder %s142, %s156
      %p158 = scmp.eq.s32.totalorder %s27, 0
      %p159 = por %p157, %p158
      %s161 = sadd.s32 %s160, 1
      %p164 = scmp.eq.s32.totalorder %s21, 1
      %p165 = scmp.ne.s32.totalorder %s160, %s162
      %p166 = scmp.eq.s32.totalorder %s21, 0
      %p167 = por %p165, %p166
      %p168 = scmp.ne.s32.totalorder %s160, %s162
      %p169 = scmp.eq.s32.totalorder %s26, 1
      %p170 = por %p168, %p169
      %p171 = scmp.ne.s32.totalorder %s162, %s163
      %p172 = scmp.eq.s32.totalorder %s26, 0
      %p173 = por %p171, %p172
      %p174 = scmp.ne.s32.totalorder %s162, %s163
      %p175 = scmp.eq.s32.totalorder %s27, 1
      %p176 = por %p174, %p175
      %p178 = scmp.ne.s32.totalorder %s163, %s177
      %p179 = scmp.eq.s32.totalorder %s27, 0
      %p180 = por %p178, %p179
      %s182 = sadd.s32 %s181, 1
      %p185 = scmp.eq.s32.totalorder %s21, 1
      %p186 = scmp.ne.s32.totalorder %s181, %s183
      %p187 = scmp.eq.s32.totalorder %s21, 0
      %p188 = por %p186, %p187
      %p189 = scmp.ne.s32.totalorder %s181, %s183
      %p190 = scmp.eq.s32.totalorder %s26, 1
      %p191 = por %p189, %p190
      %p192 = scmp.ne.s32.totalorder %s183, %s184
      %p193 = scmp.eq.s32.totalorder %s26, 0
      %p194 = por %p192, %p193
      %p195 = scmp.ne.s32.totalorder %s183, %s184
      %p196 = scmp.eq.s32.totalorder %s27, 1
      %p197 = por %p195, %p196
      %p199 = scmp.ne.s32.totalorder %s184, %s198
      %p200 = scmp.eq.s32.totalorder %s27, 0
      %p201 = por %p199, %p200
      %s203 = sadd.s32 %s202, 1
      %p206 = scmp.eq.s32.totalorder %s21, 1
      %p207 = scmp.ne.s32.totalorder %s202, %s204
      %p208 = scmp.eq.s32.totalorder %s21, 0
      %p209 = por %p207, %p208
      %p210 = scmp.ne.s32.totalorder %s202, %s204
      %p211 = scmp.eq.s32.totalorder %s26, 1
      %p212 = por %p210, %p211
      %p213 = scmp.ne.s32.totalorder %s204, %s205
      %p214 = scmp.eq.s32.totalorder %s26, 0
      %p215 = por %p213, %p214
      %p216 = scmp.ne.s32.totalorder %s204, %s205
      %p217 = scmp.eq.s32.totalorder %s27, 1
      %p218 = por %p216, %p217
      %p220 = scmp.ne.s32.totalorder %s205, %s219
      %p221 = scmp.eq.s32.totalorder %s27, 0
      %p222 = por %p220, %p221
      %s224 = sadd.s32 %s223, 1
      %p227 = scmp.eq.s32.totalorder %s21, 1
      %p228 = scmp.ne.s32.totalorder %s223, %s225
      %p229 = scmp.eq.s32.totalorder %s21, 0
      %p230 = por %p228, %p229
      %p231 = scmp.ne.s32.totalorder %s223, %s225
      %p232 = scmp.eq.s32.totalorder %s26, 1
      %p233 = por %p231, %p232
      %p234 = scmp.ne.s32.totalorder %s225, %s226
      %p235 = scmp.eq.s32.totalorder %s26, 0
      %p236 = por %p234, %p235
      %p237 = scmp.ne.s32.totalorder %s225, %s226
      %p238 = scmp.eq.s32.totalorder %s27, 1
      %p239 = por %p237, %p238
      %p241 = scmp.ne.s32.totalorder %s226, %s240
      %p242 = scmp.eq.s32.totalorder %s27, 0
      %p243 = por %p241, %p242
      %s244 = ssub.s32 %s21, %s28
      %p245 = scmp.eq.s32.totalorder %s244, 0
      %s247 = sadd.s32 %s246, 1
      %s248 = scalar_select %p245, %s246, %s247
      %p251 = pneg %p245
      %p252 = scmp.eq.s32.totalorder %s21, 1
      %p253 = por %p251, %p252
      %p254 = scmp.ne.s32.totalorder %s246, %s249
      %p255 = scmp.eq.s32.totalorder %s21, 0
      %p256 = por %p254, %p255
      %p257 = scmp.ne.s32.totalorder %s246, %s249
      %p258 = scmp.eq.s32.totalorder %s26, 1
      %p259 = por %p257, %p258
      %p260 = scmp.ne.s32.totalorder %s249, %s250
      %p261 = scmp.eq.s32.totalorder %s26, 0
      %p262 = por %p260, %p261
      %p263 = scmp.ne.s32.totalorder %s249, %s250
      %p264 = scmp.eq.s32.totalorder %s27, 1
      %p265 = por %p263, %p264
      %p267 = scmp.ne.s32.totalorder %s250, %s266
      %p268 = scmp.eq.s32.totalorder %s27, 0
      %p269 = por %p267, %p268
      %p270 = scmp.le.s32.totalorder 1, %s21
      %p271 = scmp.lt.s32.totalorder %s21, 3
      %p272 = pnand %p270, %p271
      %p273 = pneg %p272
      // Predicated region
      $region9: #{tpu_custom_call.1} parent=5 // pred_check
        _
      $region10: #{tpu_custom_call.1} parent=5 // pred_check_branch
        %275 = sbr.rel (%p272) target = $region12
      $region11: #{tpu_custom_call.1} parent=5 // pred_region
        %s276 = ssub.s32 %s21, 1
        // Predicated region
        $region13: #{tpu_custom_call.1} parent=11 // pred_check
          %p277 = pneg %p68
        $region14: #{tpu_custom_call.1} parent=11 // pred_check_branch
          %279 = sbr.rel (%p277) target = $region16
        $region15: #{tpu_custom_call.1} parent=11 // pred_region
          _
        $region16: #{tpu_custom_call.1} parent=11 // pred_fallthru
          _
        // Predicated region
        $region17: #{tpu_custom_call.1} parent=11 // pred_check
          %p280 = pneg %p89
        $region18: #{tpu_custom_call.1} parent=11 // pred_check_branch
          %282 = sbr.rel (%p280) target = $region20
        $region19: #{tpu_custom_call.1} parent=11 // pred_region
          _
        $region20: #{tpu_custom_call.1} parent=11 // pred_fallthru
          _
        // Predicated region
        $region21: #{tpu_custom_call.1} parent=11 // pred_check
          %p283 = pneg %p110
        $region22: #{tpu_custom_call.1} parent=11 // pred_check_branch
          %285 = sbr.rel (%p283) target = $region24
        $region23: #{tpu_custom_call.1} parent=11 // pred_region
          %s287 = ssub.s32 2048, 2048
          %288 = vsyncadd [#allocation3], %s287
          %s289 = sshll.u32 [#allocation2], 4
          %s290 = int_to_ptr.vmem [resolvable:$true] %s289
          %295 = dma.hbm_to_vmem [thread:$0]  %s3, 2048, %s290, [#allocation3], 128, 128, 8
        $region24: #{tpu_custom_call.1} parent=11 // pred_fallthru
          _
        // Predicated region
        $region25: #{tpu_custom_call.1} parent=11 // pred_check
          %p296 = pneg %p131
        $region26: #{tpu_custom_call.1} parent=11 // pred_check_branch
          %298 = sbr.rel (%p296) target = $region28
        $region27: #{tpu_custom_call.1} parent=11 // pred_region
          _
        $region28: #{tpu_custom_call.1} parent=11 // pred_fallthru
          _
        // Predicated region
        $region29: #{tpu_custom_call.1} parent=11 // pred_check
          %p299 = pneg %p152
        $region30: #{tpu_custom_call.1} parent=11 // pred_check_branch
          %301 = sbr.rel (%p299) target = $region32
        $region31: #{tpu_custom_call.1} parent=11 // pred_region
          _
        $region32: #{tpu_custom_call.1} parent=11 // pred_fallthru
          _
        // Predicated region
        $region33: #{tpu_custom_call.1} parent=11 // pred_check
          %p302 = pneg %p173
        $region34: #{tpu_custom_call.1} parent=11 // pred_check_branch
          %304 = sbr.rel (%p302) target = $region36
        $region35: #{tpu_custom_call.1} parent=11 // pred_region
          %s306 = ssub.s32 8192, 8192
          %307 = vsyncadd [#allocation6], %s306
          %s308 = sshll.u32 [#allocation5], 4
          %s309 = int_to_ptr.vmem [resolvable:$true] %s308
          %314 = dma.hbm_to_vmem [thread:$0]  %s6, 8192, %s309, [#allocation6], 256, 256, 16
        $region36: #{tpu_custom_call.1} parent=11 // pred_fallthru
          _
        // Predicated region
        $region37: #{tpu_custom_call.1} parent=11 // pred_check
          %p315 = pneg %p194
        $region38: #{tpu_custom_call.1} parent=11 // pred_check_branch
          %317 = sbr.rel (%p315) target = $region40
        $region39: #{tpu_custom_call.1} parent=11 // pred_region
          _
        $region40: #{tpu_custom_call.1} parent=11 // pred_fallthru
          _
        // Predicated region
        $region41: #{tpu_custom_call.1} parent=11 // pred_check
          %p318 = pneg %p215
        $region42: #{tpu_custom_call.1} parent=11 // pred_check_branch
          %320 = sbr.rel (%p318) target = $region44
        $region43: #{tpu_custom_call.1} parent=11 // pred_region
          %s322 = ssub.s32 8192, 8192
          %323 = vsyncadd [#allocation6], %s322
          %s324 = sshll.u32 [#allocation7], 4
          %s325 = int_to_ptr.vmem [resolvable:$true] %s324
          %330 = dma.hbm_to_vmem [thread:$0]  %s8, 8192, %s325, [#allocation6], 128, 128, 8
        $region44: #{tpu_custom_call.1} parent=11 // pred_fallthru
          _
        // Predicated region
        $region45: #{tpu_custom_call.1} parent=11 // pred_check
          %p331 = pneg %p236
        $region46: #{tpu_custom_call.1} parent=11 // pred_check_branch
          %333 = sbr.rel (%p331) target = $region48
        $region47: #{tpu_custom_call.1} parent=11 // pred_region
          _
        $region48: #{tpu_custom_call.1} parent=11 // pred_fallthru
          _
      $region12: #{tpu_custom_call.1} parent=5 // pred_fallthru
        _
      %p334 = scmp.lt.s32.totalorder %s21, 2
      // Predicated region
      $region49: #{tpu_custom_call.1} parent=5 // pred_check
        %p335 = pneg %p334
      $region50: #{tpu_custom_call.1} parent=5 // pred_check_branch
        %337 = sbr.rel (%p335) target = $region52
      $region51: #{tpu_custom_call.1} parent=5 // pred_region
        // Predicated region
        $region53: #{tpu_custom_call.1} parent=51 // pred_check
          %p338 = pneg %p41
        $region54: #{tpu_custom_call.1} parent=51 // pred_check_branch
          %340 = sbr.rel (%p338) target = $region56
        $region55: #{tpu_custom_call.1} parent=51 // pred_region
          %s341 = smul.u32 8, %s21
          %p342 = scmp.lt.s32.totalorder %s341, 15
          %s343 = scalar_select %p342, %s341, 15
          %s344 = smul.addr %s343, 4
          %s345 = smul.addr %s344, 8
          %s346 = scalar_lea.vmem %s0, %s345
          %s347 = smul.u32 8, %s21
        $region56: #{tpu_custom_call.1} parent=51 // pred_fallthru
          _
      $region52: #{tpu_custom_call.1} parent=5 // pred_fallthru
        _
      %p348 = scmp.le.s32.totalorder 1, %s21
      %p349 = scmp.lt.s32.totalorder %s21, 3
      %p350 = pnand %p348, %p349
      %p351 = pneg %p350
      // Predicated region
      $region57: #{tpu_custom_call.1} parent=5 // pred_check
        _
      $region58: #{tpu_custom_call.1} parent=5 // pred_check_branch
        %353 = sbr.rel (%p350) target = $region60
      $region59: #{tpu_custom_call.1} parent=5 // pred_region
        %s354 = ssub.s32 %s21, 1
        // Predicated region
        $region61: #{tpu_custom_call.1} parent=59 // pred_check
          %p355 = pneg %p110
        $region62: #{tpu_custom_call.1} parent=59 // pred_check_branch
          %357 = sbr.rel (%p355) target = $region64
        $region63: #{tpu_custom_call.1} parent=59 // pred_region
          %358 = dma.done [#allocation3], 2048
        $region64: #{tpu_custom_call.1} parent=59 // pred_fallthru
          _
        // Predicated region
        $region65: #{tpu_custom_call.1} parent=59 // pred_check
          %p359 = pneg %p173
        $region66: #{tpu_custom_call.1} parent=59 // pred_check_branch
          %361 = sbr.rel (%p359) target = $region68
        $region67: #{tpu_custom_call.1} parent=59 // pred_region
          %362 = dma.done [#allocation6], 8192
        $region68: #{tpu_custom_call.1} parent=59 // pred_fallthru
          _
        // Predicated region
        $region69: #{tpu_custom_call.1} parent=59 // pred_check
          %p363 = pneg %p215
        $region70: #{tpu_custom_call.1} parent=59 // pred_check_branch
          %365 = sbr.rel (%p363) target = $region72
        $region71: #{tpu_custom_call.1} parent=59 // pred_region
          %366 = dma.done [#allocation6], 8192
        $region72: #{tpu_custom_call.1} parent=59 // pred_fallthru
          _
        %s367 = smul.u32 8, %s26
        %p368 = scmp.lt.s32.totalorder %s367, 15
        %s369 = scalar_select %p368, %s367, 15
        %s370 = smul.addr %s369, 4
        %s371 = smul.addr %s370, 8
        %s372 = scalar_lea.vmem %s0, %s371
        %p373 = pneg %p47
        %p374 = pneg %p44
        %p375 = pneg %p68
        %p376 = pneg %p65
        %p377 = pneg %p89
        %p378 = pneg %p86
        %p379 = pneg %p110
        %p380 = pneg %p107
        %p381 = pneg %p131
        %p382 = pneg %p128
        %p383 = pneg %p152
        %p384 = pneg %p149
        %p385 = pneg %p173
        %p386 = pneg %p170
        %p387 = pneg %p194
        %p388 = pneg %p191
        %p389 = pneg %p215
        %p390 = pneg %p212
        %p391 = pneg %p236
        %p392 = pneg %p233
        %p393 = pneg %p262
        %p394 = pneg %p259
        %s395 = sand.u32 %s249, 1
        %s396 = scalar_lea.sflag [#allocation4], %s395
        %s397 = sand.u32 %s249, 1
        %s398 = smul.addr %s397, 16
        %s399 = scalar_lea.vmem [#allocation8], %s398
        %s400 = smul.u32 8, %s26
        %p401 = scmp.lt.s32.totalorder %s400, 15
        %s402 = scalar_select %p401, %s400, 15
        %s403 = smul.addr %s402, 4
        %s404 = smul.addr %s403, 8
        %s405 = scalar_lea.vmem %s0, %s404
        %s406 = smul.u32 8, %s26
        %v408 = vld [vmem:[%s405] sm:$0xff]
        %v409 = vld [vmem:[%s405 + $0x8] sm:$0xff]
        %v410 = vld [vmem:[%s405 + $0x10] sm:$0xff]
        %v411 = vld [vmem:[%s405 + $0x18] sm:$0xff]
        %v412 = vld [vmem:[%s405 + $0x20] sm:$0xff]
        %v413 = vld [vmem:[%s405 + $0x28] sm:$0xff]
        %v414 = vld [vmem:[%s405 + $0x30] sm:$0xff]
        %v415 = vld [vmem:[%s405 + $0x38] sm:$0xff]
        %v416 = vld [vmem:[%s405 + $0x40] sm:$0xff]
        %v417 = vld [vmem:[%s405 + $0x48] sm:$0xff]
        %v418 = vld [vmem:[%s405 + $0x50] sm:$0xff]
        %v419 = vld [vmem:[%s405 + $0x58] sm:$0xff]
        %v420 = vld [vmem:[%s405 + $0x60] sm:$0xff]
        %v421 = vld [vmem:[%s405 + $0x68] sm:$0xff]
        %v422 = vld [vmem:[%s405 + $0x70] sm:$0xff]
        %v423 = vld [vmem:[%s405 + $0x78] sm:$0xff]
        %v424 = vld [vmem:[%s405 + $0x80] sm:$0xff]
        %v425 = vld [vmem:[%s405 + $0x88] sm:$0xff]
        %v426 = vld [vmem:[%s405 + $0x90] sm:$0xff]
        %v427 = vld [vmem:[%s405 + $0x98] sm:$0xff]
        %v428 = vld [vmem:[%s405 + $0xa0] sm:$0xff]
        %v429 = vld [vmem:[%s405 + $0xa8] sm:$0xff]
        %v430 = vld [vmem:[%s405 + $0xb0] sm:$0xff]
        %v431 = vld [vmem:[%s405 + $0xb8] sm:$0xff]
        %v432 = vld [vmem:[%s405 + $0xc0] sm:$0xff]
        %v433 = vld [vmem:[%s405 + $0xc8] sm:$0xff]
        %v434 = vld [vmem:[%s405 + $0xd0] sm:$0xff]
        %v435 = vld [vmem:[%s405 + $0xd8] sm:$0xff]
        %v436 = vld [vmem:[%s405 + $0xe0] sm:$0xff]
        %v437 = vld [vmem:[%s405 + $0xe8] sm:$0xff]
        %v438 = vld [vmem:[%s405 + $0xf0] sm:$0xff]
        %v439 = vld [vmem:[%s405 + $0xf8] sm:$0xff]
        %v440 = vpack.c.bf16 %v409, %v408
        %v441 = vpack.c.bf16 %v411, %v410
        %v442 = vpack.c.bf16 %v413, %v412
        %v443 = vpack.c.bf16 %v415, %v414
        %v444 = vpack.c.bf16 %v417, %v416
        %v445 = vpack.c.bf16 %v419, %v418
        %v446 = vpack.c.bf16 %v421, %v420
        %v447 = vpack.c.bf16 %v423, %v422
        %v448 = vpack.c.bf16 %v425, %v424
        %v449 = vpack.c.bf16 %v427, %v426
        %v450 = vpack.c.bf16 %v429, %v428
        %v451 = vpack.c.bf16 %v431, %v430
        %v452 = vpack.c.bf16 %v433, %v432
        %v453 = vpack.c.bf16 %v435, %v434
        %v454 = vpack.c.bf16 %v437, %v436
        %v455 = vpack.c.bf16 %v439, %v438
        %v456 = vld [vmem:[%s1] sm:$0x3]
        %v457 = vld [vmem:[%s2] sm:$0x1]
        %v459 = vlaneseq
        %v460 = vshrl.u32 %v459, 7
        %v461 = vsub.s32 0, %v460
        %v462 = vrot.slane %v457, %v461
        %vm464 = vcmask 23552
        %v466 = vsel %vm464, %v440, 0
        %v469 = vsel %vm464, %v441, 0
        %v472 = vsel %vm464, %v442, 0
        %v475 = vsel %vm464, %v443, 0
        %v478 = vsel %vm464, %v444, 0
        %v481 = vsel %vm464, %v445, 0
        %v484 = vsel %vm464, %v446, 0
        %v487 = vsel %vm464, %v447, 0
        %v490 = vsel %vm464, %v448, 0
        %v493 = vsel %vm464, %v449, 0
        %v496 = vsel %vm464, %v450, 0
        %v499 = vsel %vm464, %v451, 0
        %v502 = vsel %vm464, %v452, 0
        %v505 = vsel %vm464, %v453, 0
        %v508 = vsel %vm464, %v454, 0
        %v511 = vsel %vm464, %v455, 0
        %vm513 = vcmask 1040384
        %vm514 = vcmask 1041408
        %v515 = vsel %vm513, 4294967295, 65535
        %v516 = vsel %vm514, %v515, 0
        %v518 = vand.u32 %v456, %v516
        %520 = vmatprep.subr.bf16.mxu0 0
        %521 = vmatpush1.bf16.msra.mxu0 %v518
        %522 = vmatprep.subr.bf16.mxu0 0
        %523 = vmatpush1.bf16.msra.mxu0 0
        %524 = vmatprep.subr.bf16.mxu0 0
        %525 = vmatpush1.bf16.msra.mxu0 0
        %526 = vmatprep.subr.bf16.mxu0 0
        %527 = vmatpush1.bf16.msra.mxu0 0
        %528 = vmatprep.subr.bf16.mxu0 0
        %529 = vmatpush1.bf16.msra.mxu0 0
        %530 = vmatprep.subr.bf16.mxu0 0
        %531 = vmatpush1.bf16.msra.mxu0 0
        %532 = vmatprep.subr.bf16.mxu0 0
        %533 = vmatpush1.bf16.msra.mxu0 0
        %534 = vmatprep.subr.bf16.mxu0 0
        %535 = vmatpush1.bf16.msra.mxu0 0
        %536 = vmatprep.subr.bf16.mxu0 0
        %537 = vmatpush1.bf16.msra.mxu0 0
        %538 = vmatprep.subr.bf16.mxu0 0
        %539 = vmatpush1.bf16.msra.mxu0 0
        %540 = vmatprep.subr.bf16.mxu0 0
        %541 = vmatpush1.bf16.msra.mxu0 0
        %542 = vmatprep.subr.bf16.mxu0 0
        %543 = vmatpush1.bf16.msra.mxu0 0
        %544 = vmatprep.subr.bf16.mxu0 0
        %545 = vmatpush1.bf16.msra.mxu0 0
        %546 = vmatprep.subr.bf16.mxu0 0
        %547 = vmatpush1.bf16.msra.mxu0 0
        %548 = vmatprep.subr.bf16.mxu0 0
        %549 = vmatpush1.bf16.msra.mxu0 0
        %550 = vmatprep.subr.bf16.mxu0 0
        %551 = vmatpush1.bf16.msra.mxu0 0
        %552 = vmatprep.mubr.bf16.mxu0 0
        %553 = vmatmul.mubr.bf16.gmra.mrb[0].mxu0 %v466
        %v554 = vpop.f32.mrb[0].mxu0
        %v555 = vadd.f32 %v462, %v554
        %v556 = vpop.f32.mrb[0].mxu0
        %v557 = vpop.f32.mrb[0].mxu0
        %v558 = vadd.f32 %v462, %v557
        %v559 = vpop.f32.mrb[0].mxu0
        %560 = vmatprep.mubr.bf16.mxu0 0
        %561 = vmatmul.mubr.bf16.gmra.mrb[0].mxu0 %v469
        %v562 = vpop.f32.mrb[0].mxu0
        %v563 = vadd.f32 %v462, %v562
        %v564 = vpop.f32.mrb[0].mxu0
        %v565 = vpop.f32.mrb[0].mxu0
        %v566 = vadd.f32 %v462, %v565
        %v567 = vpop.f32.mrb[0].mxu0
        %568 = vmatprep.mubr.bf16.mxu0 0
        %569 = vmatmul.mubr.bf16.gmra.mrb[0].mxu0 %v472
        %v570 = vpop.f32.mrb[0].mxu0
        %v571 = vadd.f32 %v462, %v570
        %v572 = vpop.f32.mrb[0].mxu0
        %v573 = vpop.f32.mrb[0].mxu0
        %v574 = vadd.f32 %v462, %v573
        %v575 = vpop.f32.mrb[0].mxu0
        %576 = vmatprep.mubr.bf16.mxu0 0
        %577 = vmatmul.mubr.bf16.gmra.mrb[0].mxu0 %v475
        %v578 = vpop.f32.mrb[0].mxu0
        %v579 = vadd.f32 %v462, %v578
        %v580 = vpop.f32.mrb[0].mxu0
        %v581 = vpop.f32.mrb[0].mxu0
        %v582 = vadd.f32 %v462, %v581
        %v583 = vpop.f32.mrb[0].mxu0
        %584 = vmatprep.mubr.bf16.mxu0 0
        %585 = vmatmul.mubr.bf16.gmra.mrb[0].mxu0 %v478
        %v586 = vpop.f32.mrb[0].mxu0
        %v587 = vadd.f32 %v462, %v586
        %v588 = vpop.f32.mrb[0].mxu0
        %v589 = vpop.f32.mrb[0].mxu0
        %v590 = vadd.f32 %v462, %v589
        %v591 = vpop.f32.mrb[0].mxu0
        %592 = vmatprep.mubr.bf16.mxu0 0
        %593 = vmatmul.mubr.bf16.gmra.mrb[0].mxu0 %v481
        %v594 = vpop.f32.mrb[0].mxu0
        %v595 = vadd.f32 %v462, %v594
        %v596 = vpop.f32.mrb[0].mxu0
        %v597 = vpop.f32.mrb[0].mxu0
        %v598 = vadd.f32 %v462, %v597
        %v599 = vpop.f32.mrb[0].mxu0
        %600 = vmatprep.mubr.bf16.mxu0 0
        %601 = vmatmul.mubr.bf16.gmra.mrb[0].mxu0 %v484
        %v602 = vpop.f32.mrb[0].mxu0
        %v603 = vadd.f32 %v462, %v602
        %v604 = vpop.f32.mrb[0].mxu0
        %v605 = vpop.f32.mrb[0].mxu0
        %v606 = vadd.f32 %v462, %v605
        %v607 = vpop.f32.mrb[0].mxu0
        %608 = vmatprep.mubr.bf16.mxu0 0
        %609 = vmatmul.mubr.bf16.gmra.mrb[0].mxu0 %v487
        %v610 = vpop.f32.mrb[0].mxu0
        %v611 = vadd.f32 %v462, %v610
        %v612 = vpop.f32.mrb[0].mxu0
        %v613 = vpop.f32.mrb[0].mxu0
        %v614 = vadd.f32 %v462, %v613
        %v615 = vpop.f32.mrb[0].mxu0
        %616 = vmatprep.mubr.bf16.mxu0 0
        %617 = vmatmul.mubr.bf16.gmra.mrb[0].mxu0 %v490
        %v618 = vpop.f32.mrb[0].mxu0
        %v619 = vadd.f32 %v462, %v618
        %v620 = vpop.f32.mrb[0].mxu0
        %v621 = vpop.f32.mrb[0].mxu0
        %v622 = vadd.f32 %v462, %v621
        %v623 = vpop.f32.mrb[0].mxu0
        %624 = vmatprep.mubr.bf16.mxu0 0
        %625 = vmatmul.mubr.bf16.gmra.mrb[0].mxu0 %v493
        %v626 = vpop.f32.mrb[0].mxu0
        %v627 = vadd.f32 %v462, %v626
        %v628 = vpop.f32.mrb[0].mxu0
        %v629 = vpop.f32.mrb[0].mxu0
        %v630 = vadd.f32 %v462, %v629
        %v631 = vpop.f32.mrb[0].mxu0
        %632 = vmatprep.mubr.bf16.mxu0 0
        %633 = vmatmul.mubr.bf16.gmra.mrb[0].mxu0 %v496
        %v634 = vpop.f32.mrb[0].mxu0
        %v635 = vadd.f32 %v462, %v634
        %v636 = vpop.f32.mrb[0].mxu0
        %v637 = vpop.f32.mrb[0].mxu0
        %v638 = vadd.f32 %v462, %v637
        %v639 = vpop.f32.mrb[0].mxu0
        %640 = vmatprep.mubr.bf16.mxu0 0
        %641 = vmatmul.mubr.bf16.gmra.mrb[0].mxu0 %v499
        %v642 = vpop.f32.mrb[0].mxu0
        %v643 = vadd.f32 %v462, %v642
        %v644 = vpop.f32.mrb[0].mxu0
        %v645 = vpop.f32.mrb[0].mxu0
        %v646 = vadd.f32 %v462, %v645
        %v647 = vpop.f32.mrb[0].mxu0
        %648 = vmatprep.mubr.bf16.mxu0 0
        %649 = vmatmul.mubr.bf16.gmra.mrb[0].mxu0 %v502
        %v650 = vpop.f32.mrb[0].mxu0
        %v651 = vadd.f32 %v462, %v650
        %v652 = vpop.f32.mrb[0].mxu0
        %v653 = vpop.f32.mrb[0].mxu0
        %v654 = vadd.f32 %v462, %v653
        %v655 = vpop.f32.mrb[0].mxu0
        %656 = vmatprep.mubr.bf16.mxu0 0
        %657 = vmatmul.mubr.bf16.gmra.mrb[0].mxu0 %v505
        %v658 = vpop.f32.mrb[0].mxu0
        %v659 = vadd.f32 %v462, %v658
        %v660 = vpop.f32.mrb[0].mxu0
        %v661 = vpop.f32.mrb[0].mxu0
        %v662 = vadd.f32 %v462, %v661
        %v663 = vpop.f32.mrb[0].mxu0
        %664 = vmatprep.mubr.bf16.mxu0 0
        %665 = vmatmul.mubr.bf16.gmra.mrb[0].mxu0 %v508
        %v666 = vpop.f32.mrb[0].mxu0
        %v667 = vadd.f32 %v462, %v666
        %v668 = vpop.f32.mrb[0].mxu0
        %v669 = vpop.f32.mrb[0].mxu0
        %v670 = vadd.f32 %v462, %v669
        %v671 = vpop.f32.mrb[0].mxu0
        %672 = vmatprep.mubr.bf16.mxu0 0
        %673 = vmatmul.mubr.bf16.gmra.mrb[0].mxu0 %v511
        %v674 = vpop.f32.mrb[0].mxu0
        %v675 = vadd.f32 %v462, %v674
        %v676 = vpop.f32.mrb[0].mxu0
        %v677 = vpop.f32.mrb[0].mxu0
        %v678 = vadd.f32 %v462, %v677
        %v679 = vpop.f32.mrb[0].mxu0
        %680 = vdwg.mxu0
        %v681 = vmax.f32 %v555, 0.0
        %v682 = vmax.f32 %v558, 0.0
        %v683 = vmax.f32 %v563, 0.0
        %v684 = vmax.f32 %v566, 0.0
        %v685 = vmax.f32 %v571, 0.0
        %v686 = vmax.f32 %v574, 0.0
        %v687 = vmax.f32 %v579, 0.0
        %v688 = vmax.f32 %v582, 0.0
        %v689 = vmax.f32 %v587, 0.0
        %v690 = vmax.f32 %v590, 0.0
        %v691 = vmax.f32 %v595, 0.0
        %v692 = vmax.f32 %v598, 0.0
        %v693 = vmax.f32 %v603, 0.0
        %v694 = vmax.f32 %v606, 0.0
        %v695 = vmax.f32 %v611, 0.0
        %v696 = vmax.f32 %v614, 0.0
        %v697 = vmax.f32 %v619, 0.0
        %v698 = vmax.f32 %v622, 0.0
        %v699 = vmax.f32 %v627, 0.0
        %v700 = vmax.f32 %v630, 0.0
        %v701 = vmax.f32 %v635, 0.0
        %v702 = vmax.f32 %v638, 0.0
        %v703 = vmax.f32 %v643, 0.0
        %v704 = vmax.f32 %v646, 0.0
        %v705 = vmax.f32 %v651, 0.0
        %v706 = vmax.f32 %v654, 0.0
        %v707 = vmax.f32 %v659, 0.0
        %v708 = vmax.f32 %v662, 0.0
        %v709 = vmax.f32 %v667, 0.0
        %v710 = vmax.f32 %v670, 0.0
        %v711 = vmax.f32 %v675, 0.0
        %v712 = vmax.f32 %v678, 0.0
        %v713 = vpack.c.bf16 %v682, %v681
        %v714 = vpack.c.bf16 %v684, %v683
        %v715 = vpack.c.bf16 %v686, %v685
        %v716 = vpack.c.bf16 %v688, %v687
        %v717 = vpack.c.bf16 %v690, %v689
        %v718 = vpack.c.bf16 %v692, %v691
        %v719 = vpack.c.bf16 %v694, %v693
        %v720 = vpack.c.bf16 %v696, %v695
        %v721 = vpack.c.bf16 %v698, %v697
        %v722 = vpack.c.bf16 %v700, %v699
        %v723 = vpack.c.bf16 %v702, %v701
        %v724 = vpack.c.bf16 %v704, %v703
        %v725 = vpack.c.bf16 %v706, %v705
        %v726 = vpack.c.bf16 %v708, %v707
        %v727 = vpack.c.bf16 %v710, %v709
        %v728 = vpack.c.bf16 %v712, %v711
        %v729 = vld [vmem:[#allocation2] sm:$0xff]
        %v730 = vld [vmem:[#allocation2 + $0x8] sm:$0xff]
        %v731 = vld [vmem:[#allocation2 + $0x10] sm:$0xff]
        %v732 = vld [vmem:[#allocation2 + $0x18] sm:$0xff]
        %v733 = vld [vmem:[#allocation2 + $0x20] sm:$0xff]
        %v734 = vld [vmem:[#allocation2 + $0x28] sm:$0xff]
        %v735 = vld [vmem:[#allocation2 + $0x30] sm:$0xff]
        %v736 = vld [vmem:[#allocation2 + $0x38] sm:$0xff]
        %v737 = vld [vmem:[#allocation2 + $0x40] sm:$0xff]
        %v738 = vld [vmem:[#allocation2 + $0x48] sm:$0xff]
        %v739 = vld [vmem:[#allocation2 + $0x50] sm:$0xff]
        %v740 = vld [vmem:[#allocation2 + $0x58] sm:$0xff]
        %v741 = vld [vmem:[#allocation2 + $0x60] sm:$0xff]
        %v742 = vld [vmem:[#allocation2 + $0x68] sm:$0xff]
        %v743 = vld [vmem:[#allocation2 + $0x70] sm:$0xff]
        %v744 = vld [vmem:[#allocation2 + $0x78] sm:$0xff]
        %v745 = vld [vmem:[%s4] sm:$0x3]
        %v747 = vlaneseq
        %v748 = vshrl.u32 %v747, 7
        %v749 = vsub.s32 0, %v748
        %v750 = vrot.slane %v745, %v749
        %v751 = vlaneseq
        %v752 = vshrl.u32 %v751, 7
        %v753 = vsub.s32 1, %v752
        %v754 = vrot.slane %v745, %v753
        %v773 = vunpack.c.l.b16 %v729
        %v774 = vunpack.c.h.b16 %v729
        %v775 = vunpack.c.l.b16 %v730
        %v776 = vunpack.c.h.b16 %v730
        %v777 = vunpack.c.l.b16 %v731
        %v778 = vunpack.c.h.b16 %v731
        %v779 = vunpack.c.l.b16 %v732
        %v780 = vunpack.c.h.b16 %v732
        %v781 = vunpack.c.l.b16 %v733
        %v782 = vunpack.c.h.b16 %v733
        %v783 = vunpack.c.l.b16 %v734
        %v784 = vunpack.c.h.b16 %v734
        %v785 = vunpack.c.l.b16 %v735
        %v786 = vunpack.c.h.b16 %v735
        %v787 = vunpack.c.l.b16 %v736
        %v788 = vunpack.c.h.b16 %v736
        %v789 = vunpack.c.l.b16 %v737
        %v790 = vunpack.c.h.b16 %v737
        %v791 = vunpack.c.l.b16 %v738
        %v792 = vunpack.c.h.b16 %v738
        %v793 = vunpack.c.l.b16 %v739
        %v794 = vunpack.c.h.b16 %v739
        %v795 = vunpack.c.l.b16 %v740
        %v796 = vunpack.c.h.b16 %v740
        %v797 = vunpack.c.l.b16 %v741
        %v798 = vunpack.c.h.b16 %v741
        %v799 = vunpack.c.l.b16 %v742
        %v800 = vunpack.c.h.b16 %v742
        %v801 = vunpack.c.l.b16 %v743
        %v802 = vunpack.c.h.b16 %v743
        %v803 = vunpack.c.l.b16 %v744
        %v804 = vunpack.c.h.b16 %v744
        %v805 = vpack.c.b16 %v775, %v773
        %v806 = vpack.c.b16 %v776, %v774
        %v807 = vpack.c.b16 %v779, %v777
        %v808 = vpack.c.b16 %v780, %v778
        %v809 = vpack.c.b16 %v783, %v781
        %v810 = vpack.c.b16 %v784, %v782
        %v811 = vpack.c.b16 %v787, %v785
        %v812 = vpack.c.b16 %v788, %v786
        %v813 = vpack.c.b16 %v791, %v789
        %v814 = vpack.c.b16 %v792, %v790
        %v815 = vpack.c.b16 %v795, %v793
        %v816 = vpack.c.b16 %v796, %v794
        %v817 = vpack.c.b16 %v799, %v797
        %v818 = vpack.c.b16 %v800, %v798
        %v819 = vpack.c.b16 %v803, %v801
        %v820 = vpack.c.b16 %v804, %v802
        %837 = vmatprep.subr.bf16.mxu0 %v806
        %838 = vmatpush1.bf16.msra.mxu0 %v805
        %839 = vmatprep.subr.bf16.mxu0 %v808
        %840 = vmatpush1.bf16.msra.mxu0 %v807
        %841 = vmatprep.subr.bf16.mxu0 %v810
        %842 = vmatpush1.bf16.msra.mxu0 %v809
        %843 = vmatprep.subr.bf16.mxu0 %v812
        %844 = vmatpush1.bf16.msra.mxu0 %v811
        %845 = vmatprep.subr.bf16.mxu0 %v814
        %846 = vmatpush1.bf16.msra.mxu0 %v813
        %847 = vmatprep.subr.bf16.mxu0 %v816
        %848 = vmatpush1.bf16.msra.mxu0 %v815
        %849 = vmatprep.subr.bf16.mxu0 %v818
        %850 = vmatpush1.bf16.msra.mxu0 %v817
        %851 = vmatprep.subr.bf16.mxu0 %v820
        %852 = vmatpush1.bf16.msra.mxu0 %v819
        %853 = vmatprep.subr.bf16.mxu0 0
        %854 = vmatpush1.bf16.msra.mxu0 0
        %855 = vmatprep.subr.bf16.mxu0 0
        %856 = vmatpush1.bf16.msra.mxu0 0
        %857 = vmatprep.subr.bf16.mxu0 0
        %858 = vmatpush1.bf16.msra.mxu0 0
        %859 = vmatprep.subr.bf16.mxu0 0
        %860 = vmatpush1.bf16.msra.mxu0 0
        %861 = vmatprep.subr.bf16.mxu0 0
        %862 = vmatpush1.bf16.msra.mxu0 0
        %863 = vmatprep.subr.bf16.mxu0 0
        %864 = vmatpush1.bf16.msra.mxu0 0
        %865 = vmatprep.subr.bf16.mxu0 0
        %866 = vmatpush1.bf16.msra.mxu0 0
        %867 = vmatprep.subr.bf16.mxu0 0
        %868 = vmatpush1.bf16.msra.mxu0 0
        %869 = vmatprep.mubr.bf16.mxu0 0
        %870 = vmatmul.mubr.bf16.gmra.mrb[0].mxu0 %v713
        %v871 = vpop.f32.mrb[0].mxu0
        %v872 = vadd.f32 %v750, %v871
        %v873 = vpop.f32.mrb[0].mxu0
        %v874 = vadd.f32 %v754, %v873
        %v875 = vpop.f32.mrb[0].mxu0
        %v876 = vadd.f32 %v750, %v875
        %v877 = vpop.f32.mrb[0].mxu0
        %v878 = vadd.f32 %v754, %v877
        %879 = vmatprep.mubr.bf16.mxu0 0
        %880 = vmatmul.mubr.bf16.gmra.mrb[0].mxu0 %v714
        %v881 = vpop.f32.mrb[0].mxu0
        %v882 = vadd.f32 %v750, %v881
        %v883 = vpop.f32.mrb[0].mxu0
        %v884 = vadd.f32 %v754, %v883
        %v885 = vpop.f32.mrb[0].mxu0
        %v886 = vadd.f32 %v750, %v885
        %v887 = vpop.f32.mrb[0].mxu0
        %v888 = vadd.f32 %v754, %v887
        %889 = vmatprep.mubr.bf16.mxu0 0
        %890 = vmatmul.mubr.bf16.gmra.mrb[0].mxu0 %v715
        %v891 = vpop.f32.mrb[0].mxu0
        %v892 = vadd.f32 %v750, %v891
        %v893 = vpop.f32.mrb[0].mxu0
        %v894 = vadd.f32 %v754, %v893
        %v895 = vpop.f32.mrb[0].mxu0
        %v896 = vadd.f32 %v750, %v895
        %v897 = vpop.f32.mrb[0].mxu0
        %v898 = vadd.f32 %v754, %v897
        %899 = vmatprep.mubr.bf16.mxu0 0
        %900 = vmatmul.mubr.bf16.gmra.mrb[0].mxu0 %v716
        %v901 = vpop.f32.mrb[0].mxu0
        %v902 = vadd.f32 %v750, %v901
        %v903 = vpop.f32.mrb[0].mxu0
        %v904 = vadd.f32 %v754, %v903
        %v905 = vpop.f32.mrb[0].mxu0
        %v906 = vadd.f32 %v750, %v905
        %v907 = vpop.f32.mrb[0].mxu0
        %v908 = vadd.f32 %v754, %v907
        %909 = vmatprep.mubr.bf16.mxu0 0
        %910 = vmatmul.mubr.bf16.gmra.mrb[0].mxu0 %v717
        %v911 = vpop.f32.mrb[0].mxu0
        %v912 = vadd.f32 %v750, %v911
        %v913 = vpop.f32.mrb[0].mxu0
        %v914 = vadd.f32 %v754, %v913
        %v915 = vpop.f32.mrb[0].mxu0
        %v916 = vadd.f32 %v750, %v915
        %v917 = vpop.f32.mrb[0].mxu0
        %v918 = vadd.f32 %v754, %v917
        %919 = vmatprep.mubr.bf16.mxu0 0
        %920 = vmatmul.mubr.bf16.gmra.mrb[0].mxu0 %v718
        %v921 = vpop.f32.mrb[0].mxu0
        %v922 = vadd.f32 %v750, %v921
        %v923 = vpop.f32.mrb[0].mxu0
        %v924 = vadd.f32 %v754, %v923
        %v925 = vpop.f32.mrb[0].mxu0
        %v926 = vadd.f32 %v750, %v925
        %v927 = vpop.f32.mrb[0].mxu0
        %v928 = vadd.f32 %v754, %v927
        %929 = vmatprep.mubr.bf16.mxu0 0
        %930 = vmatmul.mubr.bf16.gmra.mrb[0].mxu0 %v719
        %v931 = vpop.f32.mrb[0].mxu0
        %v932 = vadd.f32 %v750, %v931
        %v933 = vpop.f32.mrb[0].mxu0
        %v934 = vadd.f32 %v754, %v933
        %v935 = vpop.f32.mrb[0].mxu0
        %v936 = vadd.f32 %v750, %v935
        %v937 = vpop.f32.mrb[0].mxu0
        %v938 = vadd.f32 %v754, %v937
        %939 = vmatprep.mubr.bf16.mxu0 0
        %940 = vmatmul.mubr.bf16.gmra.mrb[0].mxu0 %v720
        %v941 = vpop.f32.mrb[0].mxu0
        %v942 = vadd.f32 %v750, %v941
        %v943 = vpop.f32.mrb[0].mxu0
        %v944 = vadd.f32 %v754, %v943
        %v945 = vpop.f32.mrb[0].mxu0
        %v946 = vadd.f32 %v750, %v945
        %v947 = vpop.f32.mrb[0].mxu0
        %v948 = vadd.f32 %v754, %v947
        %949 = vmatprep.mubr.bf16.mxu0 0
        %950 = vmatmul.mubr.bf16.gmra.mrb[0].mxu0 %v721
        %v951 = vpop.f32.mrb[0].mxu0
        %v952 = vadd.f32 %v750, %v951
        %v953 = vpop.f32.mrb[0].mxu0
        %v954 = vadd.f32 %v754, %v953
        %v955 = vpop.f32.mrb[0].mxu0
        %v956 = vadd.f32 %v750, %v955
        %v957 = vpop.f32.mrb[0].mxu0
        %v958 = vadd.f32 %v754, %v957
        %959 = vmatprep.mubr.bf16.mxu0 0
        %960 = vmatmul.mubr.bf16.gmra.mrb[0].mxu0 %v722
        %v961 = vpop.f32.mrb[0].mxu0
        %v962 = vadd.f32 %v750, %v961
        %v963 = vpop.f32.mrb[0].mxu0
        %v964 = vadd.f32 %v754, %v963
        %v965 = vpop.f32.mrb[0].mxu0
        %v966 = vadd.f32 %v750, %v965
        %v967 = vpop.f32.mrb[0].mxu0
        %v968 = vadd.f32 %v754, %v967
        %969 = vmatprep.mubr.bf16.mxu0 0
        %970 = vmatmul.mubr.bf16.gmra.mrb[0].mxu0 %v723
        %v971 = vpop.f32.mrb[0].mxu0
        %v972 = vadd.f32 %v750, %v971
        %v973 = vpop.f32.mrb[0].mxu0
        %v974 = vadd.f32 %v754, %v973
        %v975 = vpop.f32.mrb[0].mxu0
        %v976 = vadd.f32 %v750, %v975
        %v977 = vpop.f32.mrb[0].mxu0
        %v978 = vadd.f32 %v754, %v977
        %979 = vmatprep.mubr.bf16.mxu0 0
        %980 = vmatmul.mubr.bf16.gmra.mrb[0].mxu0 %v724
        %v981 = vpop.f32.mrb[0].mxu0
        %v982 = vadd.f32 %v750, %v981
        %v983 = vpop.f32.mrb[0].mxu0
        %v984 = vadd.f32 %v754, %v983
        %v985 = vpop.f32.mrb[0].mxu0
        %v986 = vadd.f32 %v750, %v985
        %v987 = vpop.f32.mrb[0].mxu0
        %v988 = vadd.f32 %v754, %v987
        %989 = vmatprep.mubr.bf16.mxu0 0
        %990 = vmatmul.mubr.bf16.gmra.mrb[0].mxu0 %v725
        %v991 = vpop.f32.mrb[0].mxu0
        %v992 = vadd.f32 %v750, %v991
        %v993 = vpop.f32.mrb[0].mxu0
        %v994 = vadd.f32 %v754, %v993
        %v995 = vpop.f32.mrb[0].mxu0
        %v996 = vadd.f32 %v750, %v995
        %v997 = vpop.f32.mrb[0].mxu0
        %v998 = vadd.f32 %v754, %v997
        %999 = vmatprep.mubr.bf16.mxu0 0
        %1000 = vmatmul.mubr.bf16.gmra.mrb[0].mxu0 %v726
        %v1001 = vpop.f32.mrb[0].mxu0
        %v1002 = vadd.f32 %v750, %v1001
        %v1003 = vpop.f32.mrb[0].mxu0
        %v1004 = vadd.f32 %v754, %v1003
        %v1005 = vpop.f32.mrb[0].mxu0
        %v1006 = vadd.f32 %v750, %v1005
        %v1007 = vpop.f32.mrb[0].mxu0
        %v1008 = vadd.f32 %v754, %v1007
        %1009 = vmatprep.mubr.bf16.mxu0 0
        %1010 = vmatmul.mubr.bf16.gmra.mrb[0].mxu0 %v727
        %v1011 = vpop.f32.mrb[0].mxu0
        %v1012 = vadd.f32 %v750, %v1011
        %v1013 = vpop.f32.mrb[0].mxu0
        %v1014 = vadd.f32 %v754, %v1013
        %v1015 = vpop.f32.mrb[0].mxu0
        %v1016 = vadd.f32 %v750, %v1015
        %v1017 = vpop.f32.mrb[0].mxu0
        %v1018 = vadd.f32 %v754, %v1017
        %1019 = vmatprep.mubr.bf16.mxu0 0
        %1020 = vmatmul.mubr.bf16.gmra.mrb[0].mxu0 %v728
        %v1021 = vpop.f32.mrb[0].mxu0
        %v1022 = vadd.f32 %v750, %v1021
        %v1023 = vpop.f32.mrb[0].mxu0
        %v1024 = vadd.f32 %v754, %v1023
        %v1025 = vpop.f32.mrb[0].mxu0
        %v1026 = vadd.f32 %v750, %v1025
        %v1027 = vpop.f32.mrb[0].mxu0
        %v1028 = vadd.f32 %v754, %v1027
        %1029 = vdwg.mxu0
        %v1030 = vmax.f32 %v872, %v876
        %v1031 = vmax.f32 %v1030, %v882
        %v1032 = vmax.f32 %v1031, %v886
        %v1033 = vrot.slane %v1032, 4
        %v1034 = vmax.f32 %v1032, %v1033
        %v1035 = vrot.slane %v1034, 2
        %v1036 = vmax.f32 %v1034, %v1035
        %v1037 = vrot.slane %v1036, 1
        %v1038 = vmax.f32 %v1036, %v1037
        %v1039 = vmax.f32 %v874, %v878
        %v1040 = vmax.f32 %v1039, %v884
        %v1041 = vmax.f32 %v1040, %v888
        %v1042 = vrot.slane %v1041, 4
        %v1043 = vmax.f32 %v1041, %v1042
        %v1044 = vrot.slane %v1043, 2
        %v1045 = vmax.f32 %v1043, %v1044
        %v1046 = vrot.slane %v1045, 1
        %v1047 = vmax.f32 %v1045, %v1046
        %v1048 = vmax.f32 %v892, %v896
        %v1049 = vmax.f32 %v1048, %v902
        %v1050 = vmax.f32 %v1049, %v906
        %v1051 = vrot.slane %v1050, 4
        %v1052 = vmax.f32 %v1050, %v1051
        %v1053 = vrot.slane %v1052, 2
        %v1054 = vmax.f32 %v1052, %v1053
        %v1055 = vrot.slane %v1054, 1
        %v1056 = vmax.f32 %v1054, %v1055
        %v1057 = vmax.f32 %v894, %v898
        %v1058 = vmax.f32 %v1057, %v904
        %v1059 = vmax.f32 %v1058, %v908
        %v1060 = vrot.slane %v1059, 4
        %v1061 = vmax.f32 %v1059, %v1060
        %v1062 = vrot.slane %v1061, 2
        %v1063 = vmax.f32 %v1061, %v1062
        %v1064 = vrot.slane %v1063, 1
        %v1065 = vmax.f32 %v1063, %v1064
        %v1066 = vmax.f32 %v912, %v916
        %v1067 = vmax.f32 %v1066, %v922
        %v1068 = vmax.f32 %v1067, %v926
        %v1069 = vrot.slane %v1068, 4
        %v1070 = vmax.f32 %v1068, %v1069
        %v1071 = vrot.slane %v1070, 2
        %v1072 = vmax.f32 %v1070, %v1071
        %v1073 = vrot.slane %v1072, 1
        %v1074 = vmax.f32 %v1072, %v1073
        %v1075 = vmax.f32 %v914, %v918
        %v1076 = vmax.f32 %v1075, %v924
        %v1077 = vmax.f32 %v1076, %v928
        %v1078 = vrot.slane %v1077, 4
        %v1079 = vmax.f32 %v1077, %v1078
        %v1080 = vrot.slane %v1079, 2
        %v1081 = vmax.f32 %v1079, %v1080
        %v1082 = vrot.slane %v1081, 1
        %v1083 = vmax.f32 %v1081, %v1082
        %v1084 = vmax.f32 %v932, %v936
        %v1085 = vmax.f32 %v1084, %v942
        %v1086 = vmax.f32 %v1085, %v946
        %v1087 = vrot.slane %v1086, 4
        %v1088 = vmax.f32 %v1086, %v1087
        %v1089 = vrot.slane %v1088, 2
        %v1090 = vmax.f32 %v1088, %v1089
        %v1091 = vrot.slane %v1090, 1
        %v1092 = vmax.f32 %v1090, %v1091
        %v1093 = vmax.f32 %v934, %v938
        %v1094 = vmax.f32 %v1093, %v944
        %v1095 = vmax.f32 %v1094, %v948
        %v1096 = vrot.slane %v1095, 4
        %v1097 = vmax.f32 %v1095, %v1096
        %v1098 = vrot.slane %v1097, 2
        %v1099 = vmax.f32 %v1097, %v1098
        %v1100 = vrot.slane %v1099, 1
        %v1101 = vmax.f32 %v1099, %v1100
        %v1102 = vmax.f32 %v952, %v956
        %v1103 = vmax.f32 %v1102, %v962
        %v1104 = vmax.f32 %v1103, %v966
        %v1105 = vrot.slane %v1104, 4
        %v1106 = vmax.f32 %v1104, %v1105
        %v1107 = vrot.slane %v1106, 2
        %v1108 = vmax.f32 %v1106, %v1107
        %v1109 = vrot.slane %v1108, 1
        %v1110 = vmax.f32 %v1108, %v1109
        %v1111 = vmax.f32 %v954, %v958
        %v1112 = vmax.f32 %v1111, %v964
        %v1113 = vmax.f32 %v1112, %v968
        %v1114 = vrot.slane %v1113, 4
        %v1115 = vmax.f32 %v1113, %v1114
        %v1116 = vrot.slane %v1115, 2
        %v1117 = vmax.f32 %v1115, %v1116
        %v1118 = vrot.slane %v1117, 1
        %v1119 = vmax.f32 %v1117, %v1118
        %v1120 = vmax.f32 %v972, %v976
        %v1121 = vmax.f32 %v1120, %v982
        %v1122 = vmax.f32 %v1121, %v986
        %v1123 = vrot.slane %v1122, 4
        %v1124 = vmax.f32 %v1122, %v1123
        %v1125 = vrot.slane %v1124, 2
        %v1126 = vmax.f32 %v1124, %v1125
        %v1127 = vrot.slane %v1126, 1
        %v1128 = vmax.f32 %v1126, %v1127
        %v1129 = vmax.f32 %v974, %v978
        %v1130 = vmax.f32 %v1129, %v984
        %v1131 = vmax.f32 %v1130, %v988
        %v1132 = vrot.slane %v1131, 4
        %v1133 = vmax.f32 %v1131, %v1132
        %v1134 = vrot.slane %v1133, 2
        %v1135 = vmax.f32 %v1133, %v1134
        %v1136 = vrot.slane %v1135, 1
        %v1137 = vmax.f32 %v1135, %v1136
        %v1138 = vmax.f32 %v992, %v996
        %v1139 = vmax.f32 %v1138, %v1002
        %v1140 = vmax.f32 %v1139, %v1006
        %v1141 = vrot.slane %v1140, 4
        %v1142 = vmax.f32 %v1140, %v1141
        %v1143 = vrot.slane %v1142, 2
        %v1144 = vmax.f32 %v1142, %v1143
        %v1145 = vrot.slane %v1144, 1
        %v1146 = vmax.f32 %v1144, %v1145
        %v1147 = vmax.f32 %v994, %v998
        %v1148 = vmax.f32 %v1147, %v1004
        %v1149 = vmax.f32 %v1148, %v1008
        %v1150 = vrot.slane %v1149, 4
        %v1151 = vmax.f32 %v1149, %v1150
        %v1152 = vrot.slane %v1151, 2
        %v1153 = vmax.f32 %v1151, %v1152
        %v1154 = vrot.slane %v1153, 1
        %v1155 = vmax.f32 %v1153, %v1154
        %v1156 = vmax.f32 %v1012, %v1016
        %v1157 = vmax.f32 %v1156, %v1022
        %v1158 = vmax.f32 %v1157, %v1026
        %v1159 = vrot.slane %v1158, 4
        %v1160 = vmax.f32 %v1158, %v1159
        %v1161 = vrot.slane %v1160, 2
        %v1162 = vmax.f32 %v1160, %v1161
        %v1163 = vrot.slane %v1162, 1
        %v1164 = vmax.f32 %v1162, %v1163
        %v1165 = vmax.f32 %v1014, %v1018
        %v1166 = vmax.f32 %v1165, %v1024
        %v1167 = vmax.f32 %v1166, %v1028
        %v1168 = vrot.slane %v1167, 4
        %v1169 = vmax.f32 %v1167, %v1168
        %v1170 = vrot.slane %v1169, 2
        %v1171 = vmax.f32 %v1169, %v1170
        %v1172 = vrot.slane %v1171, 1
        %v1173 = vmax.f32 %v1171, %v1172
        %v1174 = vpack.c.bf16 %v1038, %v1038
        %v1175 = vpack.c.bf16 %v1047, %v1047
        %v1176 = vpack.c.bf16 %v1056, %v1056
        %v1177 = vpack.c.bf16 %v1065, %v1065
        %v1178 = vpack.c.bf16 %v1074, %v1074
        %v1179 = vpack.c.bf16 %v1083, %v1083
        %v1180 = vpack.c.bf16 %v1092, %v1092
        %v1181 = vpack.c.bf16 %v1101, %v1101
        %v1182 = vpack.c.bf16 %v1110, %v1110
        %v1183 = vpack.c.bf16 %v1119, %v1119
        %v1184 = vpack.c.bf16 %v1128, %v1128
        %v1185 = vpack.c.bf16 %v1137, %v1137
        %v1186 = vpack.c.bf16 %v1146, %v1146
        %v1187 = vpack.c.bf16 %v1155, %v1155
        %v1188 = vpack.c.bf16 %v1164, %v1164
        %v1189 = vpack.c.bf16 %v1173, %v1173
        %v1190 = vld [vmem:[%s5] sm:$0xff]
        %v1191 = vld [vmem:[%s5 + $0x8] sm:$0xff]
        %v1192 = vld [vmem:[%s5 + $0x10] sm:$0xff]
        %v1193 = vld [vmem:[%s5 + $0x18] sm:$0xff]
        %v1194 = vld [vmem:[%s5 + $0x20] sm:$0xff]
        %v1195 = vld [vmem:[%s5 + $0x28] sm:$0xff]
        %v1196 = vld [vmem:[%s5 + $0x30] sm:$0xff]
        %v1197 = vld [vmem:[%s5 + $0x38] sm:$0xff]
        %v1198 = vld [vmem:[%s5 + $0x40] sm:$0xff]
        %v1199 = vld [vmem:[%s5 + $0x48] sm:$0xff]
        %v1200 = vld [vmem:[%s5 + $0x50] sm:$0xff]
        %v1201 = vld [vmem:[%s5 + $0x58] sm:$0xff]
        %v1202 = vld [vmem:[%s5 + $0x60] sm:$0xff]
        %v1203 = vld [vmem:[%s5 + $0x68] sm:$0xff]
        %v1204 = vld [vmem:[%s5 + $0x70] sm:$0xff]
        %v1205 = vld [vmem:[%s5 + $0x78] sm:$0xff]
        %v1206 = vld [vmem:[%s5 + $0x80] sm:$0xff]
        %v1207 = vld [vmem:[%s5 + $0x88] sm:$0xff]
        %v1208 = vld [vmem:[%s5 + $0x90] sm:$0xff]
        %v1209 = vld [vmem:[%s5 + $0x98] sm:$0xff]
        %v1210 = vld [vmem:[%s5 + $0xa0] sm:$0xff]
        %v1211 = vld [vmem:[%s5 + $0xa8] sm:$0xff]
        %v1212 = vld [vmem:[%s5 + $0xb0] sm:$0xff]
        %v1213 = vld [vmem:[%s5 + $0xb8] sm:$0xff]
        %v1214 = vld [vmem:[%s5 + $0xc0] sm:$0xff]
        %v1215 = vld [vmem:[%s5 + $0xc8] sm:$0xff]
        %v1216 = vld [vmem:[%s5 + $0xd0] sm:$0xff]
        %v1217 = vld [vmem:[%s5 + $0xd8] sm:$0xff]
        %v1218 = vld [vmem:[%s5 + $0xe0] sm:$0xff]
        %v1219 = vld [vmem:[%s5 + $0xe8] sm:$0xff]
        %v1220 = vld [vmem:[%s5 + $0xf0] sm:$0xff]
        %v1221 = vld [vmem:[%s5 + $0xf8] sm:$0xff]
        %v1222 = vld [vmem:[%s5 + $0x100] sm:$0xff]
        %v1223 = vld [vmem:[%s5 + $0x108] sm:$0xff]
        %v1224 = vld [vmem:[%s5 + $0x110] sm:$0xff]
        %v1225 = vld [vmem:[%s5 + $0x118] sm:$0xff]
        %v1226 = vld [vmem:[%s5 + $0x120] sm:$0xff]
        %v1227 = vld [vmem:[%s5 + $0x128] sm:$0xff]
        %v1228 = vld [vmem:[%s5 + $0x130] sm:$0xff]
        %v1229 = vld [vmem:[%s5 + $0x138] sm:$0xff]
        %v1230 = vld [vmem:[%s5 + $0x140] sm:$0xff]
        %v1231 = vld [vmem:[%s5 + $0x148] sm:$0xff]
        %v1232 = vld [vmem:[%s5 + $0x150] sm:$0xff]
        %v1233 = vld [vmem:[%s5 + $0x158] sm:$0xff]
        %v1234 = vld [vmem:[%s5 + $0x160] sm:$0xff]
        %v1235 = vld [vmem:[%s5 + $0x168] sm:$0xff]
        %v1236 = vld [vmem:[%s5 + $0x170] sm:$0xff]
        %v1237 = vld [vmem:[%s5 + $0x178] sm:$0xff]
        %v1238 = vld [vmem:[%s5 + $0x180] sm:$0xff]
        %v1239 = vld [vmem:[%s5 + $0x188] sm:$0xff]
        %v1240 = vld [vmem:[%s5 + $0x190] sm:$0xff]
        %v1241 = vld [vmem:[%s5 + $0x198] sm:$0xff]
        %v1242 = vld [vmem:[%s5 + $0x1a0] sm:$0xff]
        %v1243 = vld [vmem:[%s5 + $0x1a8] sm:$0xff]
        %v1244 = vld [vmem:[%s5 + $0x1b0] sm:$0xff]
        %v1245 = vld [vmem:[%s5 + $0x1b8] sm:$0xff]
        %v1246 = vld [vmem:[%s5 + $0x1c0] sm:$0xff]
        %v1247 = vld [vmem:[%s5 + $0x1c8] sm:$0xff]
        %v1248 = vld [vmem:[%s5 + $0x1d0] sm:$0xff]
        %v1249 = vld [vmem:[%s5 + $0x1d8] sm:$0xff]
        %v1250 = vld [vmem:[%s5 + $0x1e0] sm:$0xff]
        %v1251 = vld [vmem:[%s5 + $0x1e8] sm:$0xff]
        %v1252 = vld [vmem:[%s5 + $0x1f0] sm:$0xff]
        %v1253 = vld [vmem:[%s5 + $0x1f8] sm:$0xff]
        %v1270 = vunpack.c.l.b16 %v1174
        %v1271 = vunpack.c.l.b16 %v1175
        %v1272 = vunpack.c.l.b16 %v1176
        %v1273 = vunpack.c.l.b16 %v1177
        %v1274 = vunpack.c.l.b16 %v1178
        %v1275 = vunpack.c.l.b16 %v1179
        %v1276 = vunpack.c.l.b16 %v1180
        %v1277 = vunpack.c.l.b16 %v1181
        %v1278 = vunpack.c.l.b16 %v1182
        %v1279 = vunpack.c.l.b16 %v1183
        %v1280 = vunpack.c.l.b16 %v1184
        %v1281 = vunpack.c.l.b16 %v1185
        %v1282 = vunpack.c.l.b16 %v1186
        %v1283 = vunpack.c.l.b16 %v1187
        %v1284 = vunpack.c.l.b16 %v1188
        %v1285 = vunpack.c.l.b16 %v1189
        %vm1286 = vcmask 1041409
        %v1287 = vsel %vm1286, %v1272, %v1270
        %vm1288 = vcmask 1042434
        %v1289 = vsel %vm1288, %v1274, %v1287
        %vm1290 = vcmask 1043459
        %v1291 = vsel %vm1290, %v1276, %v1289
        %vm1292 = vcmask 1044484
        %v1293 = vsel %vm1292, %v1278, %v1291
        %vm1294 = vcmask 1045509
        %v1295 = vsel %vm1294, %v1280, %v1293
        %vm1296 = vcmask 1046534
        %v1297 = vsel %vm1296, %v1282, %v1295
        %vm1298 = vcmask 1047559
        %v1299 = vsel %vm1298, %v1284, %v1297
        %v1300 = vsel %vm1286, %v1273, %v1271
        %v1301 = vsel %vm1288, %v1275, %v1300
        %v1302 = vsel %vm1290, %v1277, %v1301
        %v1303 = vsel %vm1292, %v1279, %v1302
        %v1304 = vsel %vm1294, %v1281, %v1303
        %v1305 = vsel %vm1296, %v1283, %v1304
        %v1306 = vsel %vm1298, %v1285, %v1305
        %v1307 = vpack.c.b16 %v1299, %v1299
        %v1308 = vpack.c.b16 %v1306, %v1306
        %v1375 = vunpack.c.l.b16 %v1190
        %v1376 = vunpack.c.h.b16 %v1190
        %v1377 = vunpack.c.l.b16 %v1191
        %v1378 = vunpack.c.h.b16 %v1191
        %v1379 = vunpack.c.l.b16 %v1192
        %v1380 = vunpack.c.h.b16 %v1192
        %v1381 = vunpack.c.l.b16 %v1193
        %v1382 = vunpack.c.h.b16 %v1193
        %v1383 = vunpack.c.l.b16 %v1194
        %v1384 = vunpack.c.h.b16 %v1194
        %v1385 = vunpack.c.l.b16 %v1195
        %v1386 = vunpack.c.h.b16 %v1195
        %v1387 = vunpack.c.l.b16 %v1196
        %v1388 = vunpack.c.h.b16 %v1196
        %v1389 = vunpack.c.l.b16 %v1197
        %v1390 = vunpack.c.h.b16 %v1197
        %v1391 = vunpack.c.l.b16 %v1198
        %v1392 = vunpack.c.h.b16 %v1198
        %v1393 = vunpack.c.l.b16 %v1199
        %v1394 = vunpack.c.h.b16 %v1199
        %v1395 = vunpack.c.l.b16 %v1200
        %v1396 = vunpack.c.h.b16 %v1200
        %v1397 = vunpack.c.l.b16 %v1201
        %v1398 = vunpack.c.h.b16 %v1201
        %v1399 = vunpack.c.l.b16 %v1202
        %v1400 = vunpack.c.h.b16 %v1202
        %v1401 = vunpack.c.l.b16 %v1203
        %v1402 = vunpack.c.h.b16 %v1203
        %v1403 = vunpack.c.l.b16 %v1204
        %v1404 = vunpack.c.h.b16 %v1204
        %v1405 = vunpack.c.l.b16 %v1205
        %v1406 = vunpack.c.h.b16 %v1205
        %v1407 = vunpack.c.l.b16 %v1206
        %v1408 = vunpack.c.h.b16 %v1206
        %v1409 = vunpack.c.l.b16 %v1207
        %v1410 = vunpack.c.h.b16 %v1207
        %v1411 = vunpack.c.l.b16 %v1208
        %v1412 = vunpack.c.h.b16 %v1208
        %v1413 = vunpack.c.l.b16 %v1209
        %v1414 = vunpack.c.h.b16 %v1209
        %v1415 = vunpack.c.l.b16 %v1210
        %v1416 = vunpack.c.h.b16 %v1210
        %v1417 = vunpack.c.l.b16 %v1211
        %v1418 = vunpack.c.h.b16 %v1211
        %v1419 = vunpack.c.l.b16 %v1212
        %v1420 = vunpack.c.h.b16 %v1212
        %v1421 = vunpack.c.l.b16 %v1213
        %v1422 = vunpack.c.h.b16 %v1213
        %v1423 = vunpack.c.l.b16 %v1214
        %v1424 = vunpack.c.h.b16 %v1214
        %v1425 = vunpack.c.l.b16 %v1215
        %v1426 = vunpack.c.h.b16 %v1215
        %v1427 = vunpack.c.l.b16 %v1216
        %v1428 = vunpack.c.h.b16 %v1216
        %v1429 = vunpack.c.l.b16 %v1217
        %v1430 = vunpack.c.h.b16 %v1217
        %v1431 = vunpack.c.l.b16 %v1218
        %v1432 = vunpack.c.h.b16 %v1218
        %v1433 = vunpack.c.l.b16 %v1219
        %v1434 = vunpack.c.h.b16 %v1219
        %v1435 = vunpack.c.l.b16 %v1220
        %v1436 = vunpack.c.h.b16 %v1220
        %v1437 = vunpack.c.l.b16 %v1221
        %v1438 = vunpack.c.h.b16 %v1221
        %v1439 = vunpack.c.l.b16 %v1222
        %v1440 = vunpack.c.h.b16 %v1222
        %v1441 = vunpack.c.l.b16 %v1223
        %v1442 = vunpack.c.h.b16 %v1223
        %v1443 = vunpack.c.l.b16 %v1224
        %v1444 = vunpack.c.h.b16 %v1224
        %v1445 = vunpack.c.l.b16 %v1225
        %v1446 = vunpack.c.h.b16 %v1225
        %v1447 = vunpack.c.l.b16 %v1226
        %v1448 = vunpack.c.h.b16 %v1226
        %v1449 = vunpack.c.l.b16 %v1227
        %v1450 = vunpack.c.h.b16 %v1227
        %v1451 = vunpack.c.l.b16 %v1228
        %v1452 = vunpack.c.h.b16 %v1228
        %v1453 = vunpack.c.l.b16 %v1229
        %v1454 = vunpack.c.h.b16 %v1229
        %v1455 = vunpack.c.l.b16 %v1230
        %v1456 = vunpack.c.h.b16 %v1230
        %v1457 = vunpack.c.l.b16 %v1231
        %v1458 = vunpack.c.h.b16 %v1231
        %v1459 = vunpack.c.l.b16 %v1232
        %v1460 = vunpack.c.h.b16 %v1232
        %v1461 = vunpack.c.l.b16 %v1233
        %v1462 = vunpack.c.h.b16 %v1233
        %v1463 = vunpack.c.l.b16 %v1234
        %v1464 = vunpack.c.h.b16 %v1234
        %v1465 = vunpack.c.l.b16 %v1235
        %v1466 = vunpack.c.h.b16 %v1235
        %v1467 = vunpack.c.l.b16 %v1236
        %v1468 = vunpack.c.h.b16 %v1236
        %v1469 = vunpack.c.l.b16 %v1237
        %v1470 = vunpack.c.h.b16 %v1237
        %v1471 = vunpack.c.l.b16 %v1238
        %v1472 = vunpack.c.h.b16 %v1238
        %v1473 = vunpack.c.l.b16 %v1239
        %v1474 = vunpack.c.h.b16 %v1239
        %v1475 = vunpack.c.l.b16 %v1240
        %v1476 = vunpack.c.h.b16 %v1240
        %v1477 = vunpack.c.l.b16 %v1241
        %v1478 = vunpack.c.h.b16 %v1241
        %v1479 = vunpack.c.l.b16 %v1242
        %v1480 = vunpack.c.h.b16 %v1242
        %v1481 = vunpack.c.l.b16 %v1243
        %v1482 = vunpack.c.h.b16 %v1243
        %v1483 = vunpack.c.l.b16 %v1244
        %v1484 = vunpack.c.h.b16 %v1244
        %v1485 = vunpack.c.l.b16 %v1245
        %v1486 = vunpack.c.h.b16 %v1245
        %v1487 = vunpack.c.l.b16 %v1246
        %v1488 = vunpack.c.h.b16 %v1246
        %v1489 = vunpack.c.l.b16 %v1247
        %v1490 = vunpack.c.h.b16 %v1247
        %v1491 = vunpack.c.l.b16 %v1248
        %v1492 = vunpack.c.h.b16 %v1248
        %v1493 = vunpack.c.l.b16 %v1249
        %v1494 = vunpack.c.h.b16 %v1249
        %v1495 = vunpack.c.l.b16 %v1250
        %v1496 = vunpack.c.h.b16 %v1250
        %v1497 = vunpack.c.l.b16 %v1251
        %v1498 = vunpack.c.h.b16 %v1251
        %v1499 = vunpack.c.l.b16 %v1252
        %v1500 = vunpack.c.h.b16 %v1252
        %v1501 = vunpack.c.l.b16 %v1253
        %v1502 = vunpack.c.h.b16 %v1253
        %v1503 = vpack.c.b16 %v1379, %v1375
        %v1504 = vpack.c.b16 %v1380, %v1376
        %v1505 = vpack.c.b16 %v1381, %v1377
        %v1506 = vpack.c.b16 %v1382, %v1378
        %v1507 = vpack.c.b16 %v1387, %v1383
        %v1508 = vpack.c.b16 %v1388, %v1384
        %v1509 = vpack.c.b16 %v1389, %v1385
        %v1510 = vpack.c.b16 %v1390, %v1386
        %v1511 = vpack.c.b16 %v1395, %v1391
        %v1512 = vpack.c.b16 %v1396, %v1392
        %v1513 = vpack.c.b16 %v1397, %v1393
        %v1514 = vpack.c.b16 %v1398, %v1394
        %v1515 = vpack.c.b16 %v1403, %v1399
        %v1516 = vpack.c.b16 %v1404, %v1400
        %v1517 = vpack.c.b16 %v1405, %v1401
        %v1518 = vpack.c.b16 %v1406, %v1402
        %v1519 = vpack.c.b16 %v1411, %v1407
        %v1520 = vpack.c.b16 %v1412, %v1408
        %v1521 = vpack.c.b16 %v1413, %v1409
        %v1522 = vpack.c.b16 %v1414, %v1410
        %v1523 = vpack.c.b16 %v1419, %v1415
        %v1524 = vpack.c.b16 %v1420, %v1416
        %v1525 = vpack.c.b16 %v1421, %v1417
        %v1526 = vpack.c.b16 %v1422, %v1418
        %v1527 = vpack.c.b16 %v1427, %v1423
        %v1528 = vpack.c.b16 %v1428, %v1424
        %v1529 = vpack.c.b16 %v1429, %v1425
        %v1530 = vpack.c.b16 %v1430, %v1426
        %v1531 = vpack.c.b16 %v1435, %v1431
        %v1532 = vpack.c.b16 %v1436, %v1432
        %v1533 = vpack.c.b16 %v1437, %v1433
        %v1534 = vpack.c.b16 %v1438, %v1434
        %v1535 = vpack.c.b16 %v1443, %v1439
        %v1536 = vpack.c.b16 %v1444, %v1440
        %v1537 = vpack.c.b16 %v1445, %v1441
        %v1538 = vpack.c.b16 %v1446, %v1442
        %v1539 = vpack.c.b16 %v1451, %v1447
        %v1540 = vpack.c.b16 %v1452, %v1448
        %v1541 = vpack.c.b16 %v1453, %v1449
        %v1542 = vpack.c.b16 %v1454, %v1450
        %v1543 = vpack.c.b16 %v1459, %v1455
        %v1544 = vpack.c.b16 %v1460, %v1456
        %v1545 = vpack.c.b16 %v1461, %v1457
        %v1546 = vpack.c.b16 %v1462, %v1458
        %v1547 = vpack.c.b16 %v1467, %v1463
        %v1548 = vpack.c.b16 %v1468, %v1464
        %v1549 = vpack.c.b16 %v1469, %v1465
        %v1550 = vpack.c.b16 %v1470, %v1466
        %v1551 = vpack.c.b16 %v1475, %v1471
        %v1552 = vpack.c.b16 %v1476, %v1472
        %v1553 = vpack.c.b16 %v1477, %v1473
        %v1554 = vpack.c.b16 %v1478, %v1474
        %v1555 = vpack.c.b16 %v1483, %v1479
        %v1556 = vpack.c.b16 %v1484, %v1480
        %v1557 = vpack.c.b16 %v1485, %v1481
        %v1558 = vpack.c.b16 %v1486, %v1482
        %v1559 = vpack.c.b16 %v1491, %v1487
        %v1560 = vpack.c.b16 %v1492, %v1488
        %v1561 = vpack.c.b16 %v1493, %v1489
        %v1562 = vpack.c.b16 %v1494, %v1490
        %v1563 = vpack.c.b16 %v1499, %v1495
        %v1564 = vpack.c.b16 %v1500, %v1496
        %v1565 = vpack.c.b16 %v1501, %v1497
        %v1566 = vpack.c.b16 %v1502, %v1498
        %1631 = vmatprep.subr.bf16.mxu0 %v1504
        %1632 = vmatpush1.bf16.msra.mxu0 %v1503
        %1633 = vmatprep.subr.bf16.mxu0 %v1508
        %1634 = vmatpush1.bf16.msra.mxu0 %v1507
        %1635 = vmatprep.subr.bf16.mxu0 %v1512
        %1636 = vmatpush1.bf16.msra.mxu0 %v1511
        %1637 = vmatprep.subr.bf16.mxu0 %v1516
        %1638 = vmatpush1.bf16.msra.mxu0 %v1515
        %1639 = vmatprep.subr.bf16.mxu0 %v1520
        %1640 = vmatpush1.bf16.msra.mxu0 %v1519
        %1641 = vmatprep.subr.bf16.mxu0 %v1524
        %1642 = vmatpush1.bf16.msra.mxu0 %v1523
        %1643 = vmatprep.subr.bf16.mxu0 %v1528
        %1644 = vmatpush1.bf16.msra.mxu0 %v1527
        %1645 = vmatprep.subr.bf16.mxu0 %v1532
        %1646 = vmatpush1.bf16.msra.mxu0 %v1531
        %1647 = vmatprep.subr.bf16.mxu0 %v1536
        %1648 = vmatpush1.bf16.msra.mxu0 %v1535
        %1649 = vmatprep.subr.bf16.mxu0 %v1540
        %1650 = vmatpush1.bf16.msra.mxu0 %v1539
        %1651 = vmatprep.subr.bf16.mxu0 %v1544
        %1652 = vmatpush1.bf16.msra.mxu0 %v1543
        %1653 = vmatprep.subr.bf16.mxu0 %v1548
        %1654 = vmatpush1.bf16.msra.mxu0 %v1547
        %1655 = vmatprep.subr.bf16.mxu0 %v1552
        %1656 = vmatpush1.bf16.msra.mxu0 %v1551
        %1657 = vmatprep.subr.bf16.mxu0 %v1556
        %1658 = vmatpush1.bf16.msra.mxu0 %v1555
        %1659 = vmatprep.subr.bf16.mxu0 %v1560
        %1660 = vmatpush1.bf16.msra.mxu0 %v1559
        %1661 = vmatprep.subr.bf16.mxu0 %v1564
        %1662 = vmatpush1.bf16.msra.mxu0 %v1563
        %1663 = vmatprep.mubr.bf16.mxu0 %v1308
        %1664 = vmatmul.mubr.bf16.gmra.mrb[0].mxu0 %v1307
        %v1665 = vpop.f32.mrb[0].mxu0
        %v1666 = vadd.f32 0.0, %v1665
        %v1667 = vpop.f32.mrb[0].mxu0
        %v1668 = vadd.f32 0.0, %v1667
        %v1669 = vpop.f32.mrb[0].mxu0
        %v1670 = vpop.f32.mrb[0].mxu0
        %1671 = vdwg.mxu0
        %1672 = vmatprep.subr.bf16.mxu0 %v1506
        %1673 = vmatpush1.bf16.msra.mxu0 %v1505
        %1674 = vmatprep.subr.bf16.mxu0 %v1510
        %1675 = vmatpush1.bf16.msra.mxu0 %v1509
        %1676 = vmatprep.subr.bf16.mxu0 %v1514
        %1677 = vmatpush1.bf16.msra.mxu0 %v1513
        %1678 = vmatprep.subr.bf16.mxu0 %v1518
        %1679 = vmatpush1.bf16.msra.mxu0 %v1517
        %1680 = vmatprep.subr.bf16.mxu0 %v1522
        %1681 = vmatpush1.bf16.msra.mxu0 %v1521
        %1682 = vmatprep.subr.bf16.mxu0 %v1526
        %1683 = vmatpush1.bf16.msra.mxu0 %v1525
        %1684 = vmatprep.subr.bf16.mxu0 %v1530
        %1685 = vmatpush1.bf16.msra.mxu0 %v1529
        %1686 = vmatprep.subr.bf16.mxu0 %v1534
        %1687 = vmatpush1.bf16.msra.mxu0 %v1533
        %1688 = vmatprep.subr.bf16.mxu0 %v1538
        %1689 = vmatpush1.bf16.msra.mxu0 %v1537
        %1690 = vmatprep.subr.bf16.mxu0 %v1542
        %1691 = vmatpush1.bf16.msra.mxu0 %v1541
        %1692 = vmatprep.subr.bf16.mxu0 %v1546
        %1693 = vmatpush1.bf16.msra.mxu0 %v1545
        %1694 = vmatprep.subr.bf16.mxu0 %v1550
        %1695 = vmatpush1.bf16.msra.mxu0 %v1549
        %1696 = vmatprep.subr.bf16.mxu0 %v1554
        %1697 = vmatpush1.bf16.msra.mxu0 %v1553
        %1698 = vmatprep.subr.bf16.mxu0 %v1558
        %1699 = vmatpush1.bf16.msra.mxu0 %v1557
        %1700 = vmatprep.subr.bf16.mxu0 %v1562
        %1701 = vmatpush1.bf16.msra.mxu0 %v1561
        %1702 = vmatprep.subr.bf16.mxu0 %v1566
        %1703 = vmatpush1.bf16.msra.mxu0 %v1565
        %1704 = vmatprep.mubr.bf16.mxu0 %v1308
        %1705 = vmatmul.mubr.bf16.gmra.mrb[0].mxu0 %v1307
        %v1706 = vpop.f32.mrb[0].mxu0
        %v1707 = vadd.f32 0.0, %v1706
        %v1708 = vpop.f32.mrb[0].mxu0
        %v1709 = vadd.f32 0.0, %v1708
        %v1710 = vpop.f32.mrb[0].mxu0
        %v1711 = vpop.f32.mrb[0].mxu0
        %1712 = vdwg.mxu0
        %v1713 = vpack.c.bf16 %v876, %v872
        %v1714 = vpack.c.bf16 %v878, %v874
        %v1715 = vpack.c.bf16 %v886, %v882
        %v1716 = vpack.c.bf16 %v888, %v884
        %v1717 = vpack.c.bf16 %v896, %v892
        %v1718 = vpack.c.bf16 %v898, %v894
        %v1719 = vpack.c.bf16 %v906, %v902
        %v1720 = vpack.c.bf16 %v908, %v904
        %v1721 = vpack.c.bf16 %v916, %v912
        %v1722 = vpack.c.bf16 %v918, %v914
        %v1723 = vpack.c.bf16 %v926, %v922
        %v1724 = vpack.c.bf16 %v928, %v924
        %v1725 = vpack.c.bf16 %v936, %v932
        %v1726 = vpack.c.bf16 %v938, %v934
        %v1727 = vpack.c.bf16 %v946, %v942
        %v1728 = vpack.c.bf16 %v948, %v944
        %v1729 = vpack.c.bf16 %v956, %v952
        %v1730 = vpack.c.bf16 %v958, %v954
        %v1731 = vpack.c.bf16 %v966, %v962
        %v1732 = vpack.c.bf16 %v968, %v964
        %v1733 = vpack.c.bf16 %v976, %v972
        %v1734 = vpack.c.bf16 %v978, %v974
        %v1735 = vpack.c.bf16 %v986, %v982
        %v1736 = vpack.c.bf16 %v988, %v984
        %v1737 = vpack.c.bf16 %v996, %v992
        %v1738 = vpack.c.bf16 %v998, %v994
        %v1739 = vpack.c.bf16 %v1006, %v1002
        %v1740 = vpack.c.bf16 %v1008, %v1004
        %v1741 = vpack.c.bf16 %v1016, %v1012
        %v1742 = vpack.c.bf16 %v1018, %v1014
        %v1743 = vpack.c.bf16 %v1026, %v1022
        %v1744 = vpack.c.bf16 %v1028, %v1024
        %v1745 = vld [vmem:[#allocation5] sm:$0xff]
        %v1746 = vld [vmem:[#allocation5 + $0x8] sm:$0xff]
        %v1747 = vld [vmem:[#allocation5 + $0x10] sm:$0xff]
        %v1748 = vld [vmem:[#allocation5 + $0x18] sm:$0xff]
        %v1749 = vld [vmem:[#allocation5 + $0x20] sm:$0xff]
        %v1750 = vld [vmem:[#allocation5 + $0x28] sm:$0xff]
        %v1751 = vld [vmem:[#allocation5 + $0x30] sm:$0xff]
        %v1752 = vld [vmem:[#allocation5 + $0x38] sm:$0xff]
        %v1753 = vld [vmem:[#allocation5 + $0x40] sm:$0xff]
        %v1754 = vld [vmem:[#allocation5 + $0x48] sm:$0xff]
        %v1755 = vld [vmem:[#allocation5 + $0x50] sm:$0xff]
        %v1756 = vld [vmem:[#allocation5 + $0x58] sm:$0xff]
        %v1757 = vld [vmem:[#allocation5 + $0x60] sm:$0xff]
        %v1758 = vld [vmem:[#allocation5 + $0x68] sm:$0xff]
        %v1759 = vld [vmem:[#allocation5 + $0x70] sm:$0xff]
        %v1760 = vld [vmem:[#allocation5 + $0x78] sm:$0xff]
        %v1761 = vld [vmem:[#allocation5 + $0x80] sm:$0xff]
        %v1762 = vld [vmem:[#allocation5 + $0x88] sm:$0xff]
        %v1763 = vld [vmem:[#allocation5 + $0x90] sm:$0xff]
        %v1764 = vld [vmem:[#allocation5 + $0x98] sm:$0xff]
        %v1765 = vld [vmem:[#allocation5 + $0xa0] sm:$0xff]
        %v1766 = vld [vmem:[#allocation5 + $0xa8] sm:$0xff]
        %v1767 = vld [vmem:[#allocation5 + $0xb0] sm:$0xff]
        %v1768 = vld [vmem:[#allocation5 + $0xb8] sm:$0xff]
        %v1769 = vld [vmem:[#allocation5 + $0xc0] sm:$0xff]
        %v1770 = vld [vmem:[#allocation5 + $0xc8] sm:$0xff]
        %v1771 = vld [vmem:[#allocation5 + $0xd0] sm:$0xff]
        %v1772 = vld [vmem:[#allocation5 + $0xd8] sm:$0xff]
        %v1773 = vld [vmem:[#allocation5 + $0xe0] sm:$0xff]
        %v1774 = vld [vmem:[#allocation5 + $0xe8] sm:$0xff]
        %v1775 = vld [vmem:[#allocation5 + $0xf0] sm:$0xff]
        %v1776 = vld [vmem:[#allocation5 + $0xf8] sm:$0xff]
        %v1777 = vld [vmem:[#allocation5 + $0x100] sm:$0xff]
        %v1778 = vld [vmem:[#allocation5 + $0x108] sm:$0xff]
        %v1779 = vld [vmem:[#allocation5 + $0x110] sm:$0xff]
        %v1780 = vld [vmem:[#allocation5 + $0x118] sm:$0xff]
        %v1781 = vld [vmem:[#allocation5 + $0x120] sm:$0xff]
        %v1782 = vld [vmem:[#allocation5 + $0x128] sm:$0xff]
        %v1783 = vld [vmem:[#allocation5 + $0x130] sm:$0xff]
        %v1784 = vld [vmem:[#allocation5 + $0x138] sm:$0xff]
        %v1785 = vld [vmem:[#allocation5 + $0x140] sm:$0xff]
        %v1786 = vld [vmem:[#allocation5 + $0x148] sm:$0xff]
        %v1787 = vld [vmem:[#allocation5 + $0x150] sm:$0xff]
        %v1788 = vld [vmem:[#allocation5 + $0x158] sm:$0xff]
        %v1789 = vld [vmem:[#allocation5 + $0x160] sm:$0xff]
        %v1790 = vld [vmem:[#allocation5 + $0x168] sm:$0xff]
        %v1791 = vld [vmem:[#allocation5 + $0x170] sm:$0xff]
        %v1792 = vld [vmem:[#allocation5 + $0x178] sm:$0xff]
        %v1793 = vld [vmem:[#allocation5 + $0x180] sm:$0xff]
        %v1794 = vld [vmem:[#allocation5 + $0x188] sm:$0xff]
        %v1795 = vld [vmem:[#allocation5 + $0x190] sm:$0xff]
        %v1796 = vld [vmem:[#allocation5 + $0x198] sm:$0xff]
        %v1797 = vld [vmem:[#allocation5 + $0x1a0] sm:$0xff]
        %v1798 = vld [vmem:[#allocation5 + $0x1a8] sm:$0xff]
        %v1799 = vld [vmem:[#allocation5 + $0x1b0] sm:$0xff]
        %v1800 = vld [vmem:[#allocation5 + $0x1b8] sm:$0xff]
        %v1801 = vld [vmem:[#allocation5 + $0x1c0] sm:$0xff]
        %v1802 = vld [vmem:[#allocation5 + $0x1c8] sm:$0xff]
        %v1803 = vld [vmem:[#allocation5 + $0x1d0] sm:$0xff]
        %v1804 = vld [vmem:[#allocation5 + $0x1d8] sm:$0xff]
        %v1805 = vld [vmem:[#allocation5 + $0x1e0] sm:$0xff]
        %v1806 = vld [vmem:[#allocation5 + $0x1e8] sm:$0xff]
        %v1807 = vld [vmem:[#allocation5 + $0x1f0] sm:$0xff]
        %v1808 = vld [vmem:[#allocation5 + $0x1f8] sm:$0xff]
        %v1873 = vunpack.c.l.b16 %v1745
        %v1874 = vunpack.c.h.b16 %v1745
        %v1875 = vunpack.c.l.b16 %v1746
        %v1876 = vunpack.c.h.b16 %v1746
        %v1877 = vunpack.c.l.b16 %v1747
        %v1878 = vunpack.c.h.b16 %v1747
        %v1879 = vunpack.c.l.b16 %v1748
        %v1880 = vunpack.c.h.b16 %v1748
        %v1881 = vunpack.c.l.b16 %v1749
        %v1882 = vunpack.c.h.b16 %v1749
        %v1883 = vunpack.c.l.b16 %v1750
        %v1884 = vunpack.c.h.b16 %v1750
        %v1885 = vunpack.c.l.b16 %v1751
        %v1886 = vunpack.c.h.b16 %v1751
        %v1887 = vunpack.c.l.b16 %v1752
        %v1888 = vunpack.c.h.b16 %v1752
        %v1889 = vunpack.c.l.b16 %v1753
        %v1890 = vunpack.c.h.b16 %v1753
        %v1891 = vunpack.c.l.b16 %v1754
        %v1892 = vunpack.c.h.b16 %v1754
        %v1893 = vunpack.c.l.b16 %v1755
        %v1894 = vunpack.c.h.b16 %v1755
        %v1895 = vunpack.c.l.b16 %v1756
        %v1896 = vunpack.c.h.b16 %v1756
        %v1897 = vunpack.c.l.b16 %v1757
        %v1898 = vunpack.c.h.b16 %v1757
        %v1899 = vunpack.c.l.b16 %v1758
        %v1900 = vunpack.c.h.b16 %v1758
        %v1901 = vunpack.c.l.b16 %v1759
        %v1902 = vunpack.c.h.b16 %v1759
        %v1903 = vunpack.c.l.b16 %v1760
        %v1904 = vunpack.c.h.b16 %v1760
        %v1905 = vunpack.c.l.b16 %v1761
        %v1906 = vunpack.c.h.b16 %v1761
        %v1907 = vunpack.c.l.b16 %v1762
        %v1908 = vunpack.c.h.b16 %v1762
        %v1909 = vunpack.c.l.b16 %v1763
        %v1910 = vunpack.c.h.b16 %v1763
        %v1911 = vunpack.c.l.b16 %v1764
        %v1912 = vunpack.c.h.b16 %v1764
        %v1913 = vunpack.c.l.b16 %v1765
        %v1914 = vunpack.c.h.b16 %v1765
        %v1915 = vunpack.c.l.b16 %v1766
        %v1916 = vunpack.c.h.b16 %v1766
        %v1917 = vunpack.c.l.b16 %v1767
        %v1918 = vunpack.c.h.b16 %v1767
        %v1919 = vunpack.c.l.b16 %v1768
        %v1920 = vunpack.c.h.b16 %v1768
        %v1921 = vunpack.c.l.b16 %v1769
        %v1922 = vunpack.c.h.b16 %v1769
        %v1923 = vunpack.c.l.b16 %v1770
        %v1924 = vunpack.c.h.b16 %v1770
        %v1925 = vunpack.c.l.b16 %v1771
        %v1926 = vunpack.c.h.b16 %v1771
        %v1927 = vunpack.c.l.b16 %v1772
        %v1928 = vunpack.c.h.b16 %v1772
        %v1929 = vunpack.c.l.b16 %v1773
        %v1930 = vunpack.c.h.b16 %v1773
        %v1931 = vunpack.c.l.b16 %v1774
        %v1932 = vunpack.c.h.b16 %v1774
        %v1933 = vunpack.c.l.b16 %v1775
        %v1934 = vunpack.c.h.b16 %v1775
        %v1935 = vunpack.c.l.b16 %v1776
        %v1936 = vunpack.c.h.b16 %v1776
        %v1937 = vunpack.c.l.b16 %v1777
        %v1938 = vunpack.c.h.b16 %v1777
        %v1939 = vunpack.c.l.b16 %v1778
        %v1940 = vunpack.c.h.b16 %v1778
        %v1941 = vunpack.c.l.b16 %v1779
        %v1942 = vunpack.c.h.b16 %v1779
        %v1943 = vunpack.c.l.b16 %v1780
        %v1944 = vunpack.c.h.b16 %v1780
        %v1945 = vunpack.c.l.b16 %v1781
        %v1946 = vunpack.c.h.b16 %v1781
        %v1947 = vunpack.c.l.b16 %v1782
        %v1948 = vunpack.c.h.b16 %v1782
        %v1949 = vunpack.c.l.b16 %v1783
        %v1950 = vunpack.c.h.b16 %v1783
        %v1951 = vunpack.c.l.b16 %v1784
        %v1952 = vunpack.c.h.b16 %v1784
        %v1953 = vunpack.c.l.b16 %v1785
        %v1954 = vunpack.c.h.b16 %v1785
        %v1955 = vunpack.c.l.b16 %v1786
        %v1956 = vunpack.c.h.b16 %v1786
        %v1957 = vunpack.c.l.b16 %v1787
        %v1958 = vunpack.c.h.b16 %v1787
        %v1959 = vunpack.c.l.b16 %v1788
        %v1960 = vunpack.c.h.b16 %v1788
        %v1961 = vunpack.c.l.b16 %v1789
        %v1962 = vunpack.c.h.b16 %v1789
        %v1963 = vunpack.c.l.b16 %v1790
        %v1964 = vunpack.c.h.b16 %v1790
        %v1965 = vunpack.c.l.b16 %v1791
        %v1966 = vunpack.c.h.b16 %v1791
        %v1967 = vunpack.c.l.b16 %v1792
        %v1968 = vunpack.c.h.b16 %v1792
        %v1969 = vunpack.c.l.b16 %v1793
        %v1970 = vunpack.c.h.b16 %v1793
        %v1971 = vunpack.c.l.b16 %v1794
        %v1972 = vunpack.c.h.b16 %v1794
        %v1973 = vunpack.c.l.b16 %v1795
        %v1974 = vunpack.c.h.b16 %v1795
        %v1975 = vunpack.c.l.b16 %v1796
        %v1976 = vunpack.c.h.b16 %v1796
        %v1977 = vunpack.c.l.b16 %v1797
        %v1978 = vunpack.c.h.b16 %v1797
        %v1979 = vunpack.c.l.b16 %v1798
        %v1980 = vunpack.c.h.b16 %v1798
        %v1981 = vunpack.c.l.b16 %v1799
        %v1982 = vunpack.c.h.b16 %v1799
        %v1983 = vunpack.c.l.b16 %v1800
        %v1984 = vunpack.c.h.b16 %v1800
        %v1985 = vunpack.c.l.b16 %v1801
        %v1986 = vunpack.c.h.b16 %v1801
        %v1987 = vunpack.c.l.b16 %v1802
        %v1988 = vunpack.c.h.b16 %v1802
        %v1989 = vunpack.c.l.b16 %v1803
        %v1990 = vunpack.c.h.b16 %v1803
        %v1991 = vunpack.c.l.b16 %v1804
        %v1992 = vunpack.c.h.b16 %v1804
        %v1993 = vunpack.c.l.b16 %v1805
        %v1994 = vunpack.c.h.b16 %v1805
        %v1995 = vunpack.c.l.b16 %v1806
        %v1996 = vunpack.c.h.b16 %v1806
        %v1997 = vunpack.c.l.b16 %v1807
        %v1998 = vunpack.c.h.b16 %v1807
        %v1999 = vunpack.c.l.b16 %v1808
        %v2000 = vunpack.c.h.b16 %v1808
        %v2001 = vpack.c.b16 %v1877, %v1873
        %v2002 = vpack.c.b16 %v1878, %v1874
        %v2003 = vpack.c.b16 %v1879, %v1875
        %v2004 = vpack.c.b16 %v1880, %v1876
        %v2005 = vpack.c.b16 %v1885, %v1881
        %v2006 = vpack.c.b16 %v1886, %v1882
        %v2007 = vpack.c.b16 %v1887, %v1883
        %v2008 = vpack.c.b16 %v1888, %v1884
        %v2009 = vpack.c.b16 %v1893, %v1889
        %v2010 = vpack.c.b16 %v1894, %v1890
        %v2011 = vpack.c.b16 %v1895, %v1891
        %v2012 = vpack.c.b16 %v1896, %v1892
        %v2013 = vpack.c.b16 %v1901, %v1897
        %v2014 = vpack.c.b16 %v1902, %v1898
        %v2015 = vpack.c.b16 %v1903, %v1899
        %v2016 = vpack.c.b16 %v1904, %v1900
        %v2017 = vpack.c.b16 %v1909, %v1905
        %v2018 = vpack.c.b16 %v1910, %v1906
        %v2019 = vpack.c.b16 %v1911, %v1907
        %v2020 = vpack.c.b16 %v1912, %v1908
        %v2021 = vpack.c.b16 %v1917, %v1913
        %v2022 = vpack.c.b16 %v1918, %v1914
        %v2023 = vpack.c.b16 %v1919, %v1915
        %v2024 = vpack.c.b16 %v1920, %v1916
        %v2025 = vpack.c.b16 %v1925, %v1921
        %v2026 = vpack.c.b16 %v1926, %v1922
        %v2027 = vpack.c.b16 %v1927, %v1923
        %v2028 = vpack.c.b16 %v1928, %v1924
        %v2029 = vpack.c.b16 %v1933, %v1929
        %v2030 = vpack.c.b16 %v1934, %v1930
        %v2031 = vpack.c.b16 %v1935, %v1931
        %v2032 = vpack.c.b16 %v1936, %v1932
        %v2033 = vpack.c.b16 %v1941, %v1937
        %v2034 = vpack.c.b16 %v1942, %v1938
        %v2035 = vpack.c.b16 %v1943, %v1939
        %v2036 = vpack.c.b16 %v1944, %v1940
        %v2037 = vpack.c.b16 %v1949, %v1945
        %v2038 = vpack.c.b16 %v1950, %v1946
        %v2039 = vpack.c.b16 %v1951, %v1947
        %v2040 = vpack.c.b16 %v1952, %v1948
        %v2041 = vpack.c.b16 %v1957, %v1953
        %v2042 = vpack.c.b16 %v1958, %v1954
        %v2043 = vpack.c.b16 %v1959, %v1955
        %v2044 = vpack.c.b16 %v1960, %v1956
        %v2045 = vpack.c.b16 %v1965, %v1961
        %v2046 = vpack.c.b16 %v1966, %v1962
        %v2047 = vpack.c.b16 %v1967, %v1963
        %v2048 = vpack.c.b16 %v1968, %v1964
        %v2049 = vpack.c.b16 %v1973, %v1969
        %v2050 = vpack.c.b16 %v1974, %v1970
        %v2051 = vpack.c.b16 %v1975, %v1971
        %v2052 = vpack.c.b16 %v1976, %v1972
        %v2053 = vpack.c.b16 %v1981, %v1977
        %v2054 = vpack.c.b16 %v1982, %v1978
        %v2055 = vpack.c.b16 %v1983, %v1979
        %v2056 = vpack.c.b16 %v1984, %v1980
        %v2057 = vpack.c.b16 %v1989, %v1985
        %v2058 = vpack.c.b16 %v1990, %v1986
        %v2059 = vpack.c.b16 %v1991, %v1987
        %v2060 = vpack.c.b16 %v1992, %v1988
        %v2061 = vpack.c.b16 %v1997, %v1993
        %v2062 = vpack.c.b16 %v1998, %v1994
        %v2063 = vpack.c.b16 %v1999, %v1995
        %v2064 = vpack.c.b16 %v2000, %v1996
        %2129 = vmatprep.subr.bf16.mxu0 %v2002
        %2130 = vmatpush1.bf16.msra.mxu0 %v2001
        %2131 = vmatprep.subr.bf16.mxu0 %v2006
        %2132 = vmatpush1.bf16.msra.mxu0 %v2005
        %2133 = vmatprep.subr.bf16.mxu0 %v2010
        %2134 = vmatpush1.bf16.msra.mxu0 %v2009
        %2135 = vmatprep.subr.bf16.mxu0 %v2014
        %2136 = vmatpush1.bf16.msra.mxu0 %v2013
        %2137 = vmatprep.subr.bf16.mxu0 %v2018
        %2138 = vmatpush1.bf16.msra.mxu0 %v2017
        %2139 = vmatprep.subr.bf16.mxu0 %v2022
        %2140 = vmatpush1.bf16.msra.mxu0 %v2021
        %2141 = vmatprep.subr.bf16.mxu0 %v2026
        %2142 = vmatpush1.bf16.msra.mxu0 %v2025
        %2143 = vmatprep.subr.bf16.mxu0 %v2030
        %2144 = vmatpush1.bf16.msra.mxu0 %v2029
        %2145 = vmatprep.subr.bf16.mxu0 %v2034
        %2146 = vmatpush1.bf16.msra.mxu0 %v2033
        %2147 = vmatprep.subr.bf16.mxu0 %v2038
        %2148 = vmatpush1.bf16.msra.mxu0 %v2037
        %2149 = vmatprep.subr.bf16.mxu0 %v2042
        %2150 = vmatpush1.bf16.msra.mxu0 %v2041
        %2151 = vmatprep.subr.bf16.mxu0 %v2046
        %2152 = vmatpush1.bf16.msra.mxu0 %v2045
        %2153 = vmatprep.subr.bf16.mxu0 %v2050
        %2154 = vmatpush1.bf16.msra.mxu0 %v2049
        %2155 = vmatprep.subr.bf16.mxu0 %v2054
        %2156 = vmatpush1.bf16.msra.mxu0 %v2053
        %2157 = vmatprep.subr.bf16.mxu0 %v2058
        %2158 = vmatpush1.bf16.msra.mxu0 %v2057
        %2159 = vmatprep.subr.bf16.mxu0 %v2062
        %2160 = vmatpush1.bf16.msra.mxu0 %v2061
        %2161 = vmatprep.mubr.bf16.mxu0 %v1714
        %2162 = vmatmul.mubr.bf16.gmra.mrb[0].mxu0 %v1713
        %v2163 = vpop.f32.mrb[0].mxu0
        %v2164 = vadd.f32 0.0, %v2163
        %v2165 = vpop.f32.mrb[0].mxu0
        %v2166 = vadd.f32 0.0, %v2165
        %v2167 = vpop.f32.mrb[0].mxu0
        %v2168 = vadd.f32 0.0, %v2167
        %v2169 = vpop.f32.mrb[0].mxu0
        %v2170 = vadd.f32 0.0, %v2169
        %2171 = vmatprep.mubr.bf16.mxu0 %v1716
        %2172 = vmatmul.mubr.bf16.gmra.mrb[0].mxu0 %v1715
        %v2173 = vpop.f32.mrb[0].mxu0
        %v2174 = vadd.f32 0.0, %v2173
        %v2175 = vpop.f32.mrb[0].mxu0
        %v2176 = vadd.f32 0.0, %v2175
        %v2177 = vpop.f32.mrb[0].mxu0
        %v2178 = vadd.f32 0.0, %v2177
        %v2179 = vpop.f32.mrb[0].mxu0
        %v2180 = vadd.f32 0.0, %v2179
        %2181 = vmatprep.mubr.bf16.mxu0 %v1718
        %2182 = vmatmul.mubr.bf16.gmra.mrb[0].mxu0 %v1717
        %v2183 = vpop.f32.mrb[0].mxu0
        %v2184 = vadd.f32 0.0, %v2183
        %v2185 = vpop.f32.mrb[0].mxu0
        %v2186 = vadd.f32 0.0, %v2185
        %v2187 = vpop.f32.mrb[0].mxu0
        %v2188 = vadd.f32 0.0, %v2187
        %v2189 = vpop.f32.mrb[0].mxu0
        %v2190 = vadd.f32 0.0, %v2189
        %2191 = vmatprep.mubr.bf16.mxu0 %v1720
        %2192 = vmatmul.mubr.bf16.gmra.mrb[0].mxu0 %v1719
        %v2193 = vpop.f32.mrb[0].mxu0
        %v2194 = vadd.f32 0.0, %v2193
        %v2195 = vpop.f32.mrb[0].mxu0
        %v2196 = vadd.f32 0.0, %v2195
        %v2197 = vpop.f32.mrb[0].mxu0
        %v2198 = vadd.f32 0.0, %v2197
        %v2199 = vpop.f32.mrb[0].mxu0
        %v2200 = vadd.f32 0.0, %v2199
        %2201 = vmatprep.mubr.bf16.mxu0 %v1722
        %2202 = vmatmul.mubr.bf16.gmra.mrb[0].mxu0 %v1721
        %v2203 = vpop.f32.mrb[0].mxu0
        %v2204 = vadd.f32 0.0, %v2203
        %v2205 = vpop.f32.mrb[0].mxu0
        %v2206 = vadd.f32 0.0, %v2205
        %v2207 = vpop.f32.mrb[0].mxu0
        %v2208 = vadd.f32 0.0, %v2207
        %v2209 = vpop.f32.mrb[0].mxu0
        %v2210 = vadd.f32 0.0, %v2209
        %2211 = vmatprep.mubr.bf16.mxu0 %v1724
        %2212 = vmatmul.mubr.bf16.gmra.mrb[0].mxu0 %v1723
        %v2213 = vpop.f32.mrb[0].mxu0
        %v2214 = vadd.f32 0.0, %v2213
        %v2215 = vpop.f32.mrb[0].mxu0
        %v2216 = vadd.f32 0.0, %v2215
        %v2217 = vpop.f32.mrb[0].mxu0
        %v2218 = vadd.f32 0.0, %v2217
        %v2219 = vpop.f32.mrb[0].mxu0
        %v2220 = vadd.f32 0.0, %v2219
        %2221 = vmatprep.mubr.bf16.mxu0 %v1726
        %2222 = vmatmul.mubr.bf16.gmra.mrb[0].mxu0 %v1725
        %v2223 = vpop.f32.mrb[0].mxu0
        %v2224 = vadd.f32 0.0, %v2223
        %v2225 = vpop.f32.mrb[0].mxu0
        %v2226 = vadd.f32 0.0, %v2225
        %v2227 = vpop.f32.mrb[0].mxu0
        %v2228 = vadd.f32 0.0, %v2227
        %v2229 = vpop.f32.mrb[0].mxu0
        %v2230 = vadd.f32 0.0, %v2229
        %2231 = vmatprep.mubr.bf16.mxu0 %v1728
        %2232 = vmatmul.mubr.bf16.gmra.mrb[0].mxu0 %v1727
        %v2233 = vpop.f32.mrb[0].mxu0
        %v2234 = vadd.f32 0.0, %v2233
        %v2235 = vpop.f32.mrb[0].mxu0
        %v2236 = vadd.f32 0.0, %v2235
        %v2237 = vpop.f32.mrb[0].mxu0
        %v2238 = vadd.f32 0.0, %v2237
        %v2239 = vpop.f32.mrb[0].mxu0
        %v2240 = vadd.f32 0.0, %v2239
        %2241 = vmatprep.mubr.bf16.mxu0 %v1730
        %2242 = vmatmul.mubr.bf16.gmra.mrb[0].mxu0 %v1729
        %v2243 = vpop.f32.mrb[0].mxu0
        %v2244 = vadd.f32 0.0, %v2243
        %v2245 = vpop.f32.mrb[0].mxu0
        %v2246 = vadd.f32 0.0, %v2245
        %v2247 = vpop.f32.mrb[0].mxu0
        %v2248 = vadd.f32 0.0, %v2247
        %v2249 = vpop.f32.mrb[0].mxu0
        %v2250 = vadd.f32 0.0, %v2249
        %2251 = vmatprep.mubr.bf16.mxu0 %v1732
        %2252 = vmatmul.mubr.bf16.gmra.mrb[0].mxu0 %v1731
        %v2253 = vpop.f32.mrb[0].mxu0
        %v2254 = vadd.f32 0.0, %v2253
        %v2255 = vpop.f32.mrb[0].mxu0
        %v2256 = vadd.f32 0.0, %v2255
        %v2257 = vpop.f32.mrb[0].mxu0
        %v2258 = vadd.f32 0.0, %v2257
        %v2259 = vpop.f32.mrb[0].mxu0
        %v2260 = vadd.f32 0.0, %v2259
        %2261 = vmatprep.mubr.bf16.mxu0 %v1734
        %2262 = vmatmul.mubr.bf16.gmra.mrb[0].mxu0 %v1733
        %v2263 = vpop.f32.mrb[0].mxu0
        %v2264 = vadd.f32 0.0, %v2263
        %v2265 = vpop.f32.mrb[0].mxu0
        %v2266 = vadd.f32 0.0, %v2265
        %v2267 = vpop.f32.mrb[0].mxu0
        %v2268 = vadd.f32 0.0, %v2267
        %v2269 = vpop.f32.mrb[0].mxu0
        %v2270 = vadd.f32 0.0, %v2269
        %2271 = vmatprep.mubr.bf16.mxu0 %v1736
        %2272 = vmatmul.mubr.bf16.gmra.mrb[0].mxu0 %v1735
        %v2273 = vpop.f32.mrb[0].mxu0
        %v2274 = vadd.f32 0.0, %v2273
        %v2275 = vpop.f32.mrb[0].mxu0
        %v2276 = vadd.f32 0.0, %v2275
        %v2277 = vpop.f32.mrb[0].mxu0
        %v2278 = vadd.f32 0.0, %v2277
        %v2279 = vpop.f32.mrb[0].mxu0
        %v2280 = vadd.f32 0.0, %v2279
        %2281 = vmatprep.mubr.bf16.mxu0 %v1738
        %2282 = vmatmul.mubr.bf16.gmra.mrb[0].mxu0 %v1737
        %v2283 = vpop.f32.mrb[0].mxu0
        %v2284 = vadd.f32 0.0, %v2283
        %v2285 = vpop.f32.mrb[0].mxu0
        %v2286 = vadd.f32 0.0, %v2285
        %v2287 = vpop.f32.mrb[0].mxu0
        %v2288 = vadd.f32 0.0, %v2287
        %v2289 = vpop.f32.mrb[0].mxu0
        %v2290 = vadd.f32 0.0, %v2289
        %2291 = vmatprep.mubr.bf16.mxu0 %v1740
        %2292 = vmatmul.mubr.bf16.gmra.mrb[0].mxu0 %v1739
        %v2293 = vpop.f32.mrb[0].mxu0
        %v2294 = vadd.f32 0.0, %v2293
        %v2295 = vpop.f32.mrb[0].mxu0
        %v2296 = vadd.f32 0.0, %v2295
        %v2297 = vpop.f32.mrb[0].mxu0
        %v2298 = vadd.f32 0.0, %v2297
        %v2299 = vpop.f32.mrb[0].mxu0
        %v2300 = vadd.f32 0.0, %v2299
        %2301 = vmatprep.mubr.bf16.mxu0 %v1742
        %2302 = vmatmul.mubr.bf16.gmra.mrb[0].mxu0 %v1741
        %v2303 = vpop.f32.mrb[0].mxu0
        %v2304 = vadd.f32 0.0, %v2303
        %v2305 = vpop.f32.mrb[0].mxu0
        %v2306 = vadd.f32 0.0, %v2305
        %v2307 = vpop.f32.mrb[0].mxu0
        %v2308 = vadd.f32 0.0, %v2307
        %v2309 = vpop.f32.mrb[0].mxu0
        %v2310 = vadd.f32 0.0, %v2309
        %2311 = vmatprep.mubr.bf16.mxu0 %v1744
        %2312 = vmatmul.mubr.bf16.gmra.mrb[0].mxu0 %v1743
        %v2313 = vpop.f32.mrb[0].mxu0
        %v2314 = vadd.f32 0.0, %v2313
        %v2315 = vpop.f32.mrb[0].mxu0
        %v2316 = vadd.f32 0.0, %v2315
        %v2317 = vpop.f32.mrb[0].mxu0
        %v2318 = vadd.f32 0.0, %v2317
        %v2319 = vpop.f32.mrb[0].mxu0
        %v2320 = vadd.f32 0.0, %v2319
        %2321 = vdwg.mxu0
        %2322 = vmatprep.subr.bf16.mxu0 %v2004
        %2323 = vmatpush1.bf16.msra.mxu0 %v2003
        %2324 = vmatprep.subr.bf16.mxu0 %v2008
        %2325 = vmatpush1.bf16.msra.mxu0 %v2007
        %2326 = vmatprep.subr.bf16.mxu0 %v2012
        %2327 = vmatpush1.bf16.msra.mxu0 %v2011
        %2328 = vmatprep.subr.bf16.mxu0 %v2016
        %2329 = vmatpush1.bf16.msra.mxu0 %v2015
        %2330 = vmatprep.subr.bf16.mxu0 %v2020
        %2331 = vmatpush1.bf16.msra.mxu0 %v2019
        %2332 = vmatprep.subr.bf16.mxu0 %v2024
        %2333 = vmatpush1.bf16.msra.mxu0 %v2023
        %2334 = vmatprep.subr.bf16.mxu0 %v2028
        %2335 = vmatpush1.bf16.msra.mxu0 %v2027
        %2336 = vmatprep.subr.bf16.mxu0 %v2032
        %2337 = vmatpush1.bf16.msra.mxu0 %v2031
        %2338 = vmatprep.subr.bf16.mxu0 %v2036
        %2339 = vmatpush1.bf16.msra.mxu0 %v2035
        %2340 = vmatprep.subr.bf16.mxu0 %v2040
        %2341 = vmatpush1.bf16.msra.mxu0 %v2039
        %2342 = vmatprep.subr.bf16.mxu0 %v2044
        %2343 = vmatpush1.bf16.msra.mxu0 %v2043
        %2344 = vmatprep.subr.bf16.mxu0 %v2048
        %2345 = vmatpush1.bf16.msra.mxu0 %v2047
        %2346 = vmatprep.subr.bf16.mxu0 %v2052
        %2347 = vmatpush1.bf16.msra.mxu0 %v2051
        %2348 = vmatprep.subr.bf16.mxu0 %v2056
        %2349 = vmatpush1.bf16.msra.mxu0 %v2055
        %2350 = vmatprep.subr.bf16.mxu0 %v2060
        %2351 = vmatpush1.bf16.msra.mxu0 %v2059
        %2352 = vmatprep.subr.bf16.mxu0 %v2064
        %2353 = vmatpush1.bf16.msra.mxu0 %v2063
        %2354 = vmatprep.mubr.bf16.mxu0 %v1714
        %2355 = vmatmul.mubr.bf16.gmra.mrb[0].mxu0 %v1713
        %v2356 = vpop.f32.mrb[0].mxu0
        %v2357 = vadd.f32 0.0, %v2356
        %v2358 = vpop.f32.mrb[0].mxu0
        %v2359 = vadd.f32 0.0, %v2358
        %v2360 = vpop.f32.mrb[0].mxu0
        %v2361 = vadd.f32 0.0, %v2360
        %v2362 = vpop.f32.mrb[0].mxu0
        %v2363 = vadd.f32 0.0, %v2362
        %2364 = vmatprep.mubr.bf16.mxu0 %v1716
        %2365 = vmatmul.mubr.bf16.gmra.mrb[0].mxu0 %v1715
        %v2366 = vpop.f32.mrb[0].mxu0
        %v2367 = vadd.f32 0.0, %v2366
        %v2368 = vpop.f32.mrb[0].mxu0
        %v2369 = vadd.f32 0.0, %v2368
        %v2370 = vpop.f32.mrb[0].mxu0
        %v2371 = vadd.f32 0.0, %v2370
        %v2372 = vpop.f32.mrb[0].mxu0
        %v2373 = vadd.f32 0.0, %v2372
        %2374 = vmatprep.mubr.bf16.mxu0 %v1718
        %2375 = vmatmul.mubr.bf16.gmra.mrb[0].mxu0 %v1717
        %v2376 = vpop.f32.mrb[0].mxu0
        %v2377 = vadd.f32 0.0, %v2376
        %v2378 = vpop.f32.mrb[0].mxu0
        %v2379 = vadd.f32 0.0, %v2378
        %v2380 = vpop.f32.mrb[0].mxu0
        %v2381 = vadd.f32 0.0, %v2380
        %v2382 = vpop.f32.mrb[0].mxu0
        %v2383 = vadd.f32 0.0, %v2382
        %2384 = vmatprep.mubr.bf16.mxu0 %v1720
        %2385 = vmatmul.mubr.bf16.gmra.mrb[0].mxu0 %v1719
        %v2386 = vpop.f32.mrb[0].mxu0
        %v2387 = vadd.f32 0.0, %v2386
        %v2388 = vpop.f32.mrb[0].mxu0
        %v2389 = vadd.f32 0.0, %v2388
        %v2390 = vpop.f32.mrb[0].mxu0
        %v2391 = vadd.f32 0.0, %v2390
        %v2392 = vpop.f32.mrb[0].mxu0
        %v2393 = vadd.f32 0.0, %v2392
        %2394 = vmatprep.mubr.bf16.mxu0 %v1722
        %2395 = vmatmul.mubr.bf16.gmra.mrb[0].mxu0 %v1721
        %v2396 = vpop.f32.mrb[0].mxu0
        %v2397 = vadd.f32 0.0, %v2396
        %v2398 = vpop.f32.mrb[0].mxu0
        %v2399 = vadd.f32 0.0, %v2398
        %v2400 = vpop.f32.mrb[0].mxu0
        %v2401 = vadd.f32 0.0, %v2400
        %v2402 = vpop.f32.mrb[0].mxu0
        %v2403 = vadd.f32 0.0, %v2402
        %2404 = vmatprep.mubr.bf16.mxu0 %v1724
        %2405 = vmatmul.mubr.bf16.gmra.mrb[0].mxu0 %v1723
        %v2406 = vpop.f32.mrb[0].mxu0
        %v2407 = vadd.f32 0.0, %v2406
        %v2408 = vpop.f32.mrb[0].mxu0
        %v2409 = vadd.f32 0.0, %v2408
        %v2410 = vpop.f32.mrb[0].mxu0
        %v2411 = vadd.f32 0.0, %v2410
        %v2412 = vpop.f32.mrb[0].mxu0
        %v2413 = vadd.f32 0.0, %v2412
        %2414 = vmatprep.mubr.bf16.mxu0 %v1726
        %2415 = vmatmul.mubr.bf16.gmra.mrb[0].mxu0 %v1725
        %v2416 = vpop.f32.mrb[0].mxu0
        %v2417 = vadd.f32 0.0, %v2416
        %v2418 = vpop.f32.mrb[0].mxu0
        %v2419 = vadd.f32 0.0, %v2418
        %v2420 = vpop.f32.mrb[0].mxu0
        %v2421 = vadd.f32 0.0, %v2420
        %v2422 = vpop.f32.mrb[0].mxu0
        %v2423 = vadd.f32 0.0, %v2422
        %2424 = vmatprep.mubr.bf16.mxu0 %v1728
        %2425 = vmatmul.mubr.bf16.gmra.mrb[0].mxu0 %v1727
        %v2426 = vpop.f32.mrb[0].mxu0
        %v2427 = vadd.f32 0.0, %v2426
        %v2428 = vpop.f32.mrb[0].mxu0
        %v2429 = vadd.f32 0.0, %v2428
        %v2430 = vpop.f32.mrb[0].mxu0
        %v2431 = vadd.f32 0.0, %v2430
        %v2432 = vpop.f32.mrb[0].mxu0
        %v2433 = vadd.f32 0.0, %v2432
        %2434 = vmatprep.mubr.bf16.mxu0 %v1730
        %2435 = vmatmul.mubr.bf16.gmra.mrb[0].mxu0 %v1729
        %v2436 = vpop.f32.mrb[0].mxu0
        %v2437 = vadd.f32 0.0, %v2436
        %v2438 = vpop.f32.mrb[0].mxu0
        %v2439 = vadd.f32 0.0, %v2438
        %v2440 = vpop.f32.mrb[0].mxu0
        %v2441 = vadd.f32 0.0, %v2440
        %v2442 = vpop.f32.mrb[0].mxu0
        %v2443 = vadd.f32 0.0, %v2442
        %2444 = vmatprep.mubr.bf16.mxu0 %v1732
        %2445 = vmatmul.mubr.bf16.gmra.mrb[0].mxu0 %v1731
        %v2446 = vpop.f32.mrb[0].mxu0
        %v2447 = vadd.f32 0.0, %v2446
        %v2448 = vpop.f32.mrb[0].mxu0
        %v2449 = vadd.f32 0.0, %v2448
        %v2450 = vpop.f32.mrb[0].mxu0
        %v2451 = vadd.f32 0.0, %v2450
        %v2452 = vpop.f32.mrb[0].mxu0
        %v2453 = vadd.f32 0.0, %v2452
        %2454 = vmatprep.mubr.bf16.mxu0 %v1734
        %2455 = vmatmul.mubr.bf16.gmra.mrb[0].mxu0 %v1733
        %v2456 = vpop.f32.mrb[0].mxu0
        %v2457 = vadd.f32 0.0, %v2456
        %v2458 = vpop.f32.mrb[0].mxu0
        %v2459 = vadd.f32 0.0, %v2458
        %v2460 = vpop.f32.mrb[0].mxu0
        %v2461 = vadd.f32 0.0, %v2460
        %v2462 = vpop.f32.mrb[0].mxu0
        %v2463 = vadd.f32 0.0, %v2462
        %2464 = vmatprep.mubr.bf16.mxu0 %v1736
        %2465 = vmatmul.mubr.bf16.gmra.mrb[0].mxu0 %v1735
        %v2466 = vpop.f32.mrb[0].mxu0
        %v2467 = vadd.f32 0.0, %v2466
        %v2468 = vpop.f32.mrb[0].mxu0
        %v2469 = vadd.f32 0.0, %v2468
        %v2470 = vpop.f32.mrb[0].mxu0
        %v2471 = vadd.f32 0.0, %v2470
        %v2472 = vpop.f32.mrb[0].mxu0
        %v2473 = vadd.f32 0.0, %v2472
        %2474 = vmatprep.mubr.bf16.mxu0 %v1738
        %2475 = vmatmul.mubr.bf16.gmra.mrb[0].mxu0 %v1737
        %v2476 = vpop.f32.mrb[0].mxu0
        %v2477 = vadd.f32 0.0, %v2476
        %v2478 = vpop.f32.mrb[0].mxu0
        %v2479 = vadd.f32 0.0, %v2478
        %v2480 = vpop.f32.mrb[0].mxu0
        %v2481 = vadd.f32 0.0, %v2480
        %v2482 = vpop.f32.mrb[0].mxu0
        %v2483 = vadd.f32 0.0, %v2482
        %2484 = vmatprep.mubr.bf16.mxu0 %v1740
        %2485 = vmatmul.mubr.bf16.gmra.mrb[0].mxu0 %v1739
        %v2486 = vpop.f32.mrb[0].mxu0
        %v2487 = vadd.f32 0.0, %v2486
        %v2488 = vpop.f32.mrb[0].mxu0
        %v2489 = vadd.f32 0.0, %v2488
        %v2490 = vpop.f32.mrb[0].mxu0
        %v2491 = vadd.f32 0.0, %v2490
        %v2492 = vpop.f32.mrb[0].mxu0
        %v2493 = vadd.f32 0.0, %v2492
        %2494 = vmatprep.mubr.bf16.mxu0 %v1742
        %2495 = vmatmul.mubr.bf16.gmra.mrb[0].mxu0 %v1741
        %v2496 = vpop.f32.mrb[0].mxu0
        %v2497 = vadd.f32 0.0, %v2496
        %v2498 = vpop.f32.mrb[0].mxu0
        %v2499 = vadd.f32 0.0, %v2498
        %v2500 = vpop.f32.mrb[0].mxu0
        %v2501 = vadd.f32 0.0, %v2500
        %v2502 = vpop.f32.mrb[0].mxu0
        %v2503 = vadd.f32 0.0, %v2502
        %2504 = vmatprep.mubr.bf16.mxu0 %v1744
        %2505 = vmatmul.mubr.bf16.gmra.mrb[0].mxu0 %v1743
        %v2506 = vpop.f32.mrb[0].mxu0
        %v2507 = vadd.f32 0.0, %v2506
        %v2508 = vpop.f32.mrb[0].mxu0
        %v2509 = vadd.f32 0.0, %v2508
        %v2510 = vpop.f32.mrb[0].mxu0
        %v2511 = vadd.f32 0.0, %v2510
        %v2512 = vpop.f32.mrb[0].mxu0
        %v2513 = vadd.f32 0.0, %v2512
        %2514 = vdwg.mxu0
        %v2519 = vcombine.low %v1666, %v1668
        %v2520 = vcombine.high %v1666, %v1668
        %v2521 = vcombine.low %v1707, %v1709
        %v2522 = vcombine.high %v1707, %v1709
        %v2524 = vunpack.c.l.s4 1966171168
        %v2525 = vunpack.c.0.s8 %v2524
        %v2526 = vlaneseq
        %v2527 = vshrl.u32 %v2526, 7
        %v2528 = vsub.s32 %v2525, %v2527
        %v2529 = vrot.slane %v2519, %v2528
        %v2531 = vunpack.c.l.s4 1966171168
        %v2532 = vunpack.c.0.s8 %v2531
        %v2533 = vlaneseq
        %v2534 = vshrl.u32 %v2533, 7
        %v2535 = vsub.s32 %v2532, %v2534
        %v2536 = vrot.slane %v2520, %v2535
        %v2538 = vunpack.c.l.s4 1966171168
        %v2539 = vunpack.c.0.s8 %v2538
        %v2540 = vlaneseq
        %v2541 = vshrl.u32 %v2540, 7
        %v2542 = vsub.s32 %v2539, %v2541
        %v2543 = vrot.slane %v2521, %v2542
        %v2545 = vunpack.c.l.s4 1966171168
        %v2546 = vunpack.c.0.s8 %v2545
        %v2547 = vlaneseq
        %v2548 = vshrl.u32 %v2547, 7
        %v2549 = vsub.s32 %v2546, %v2548
        %v2550 = vrot.slane %v2522, %v2549
        %v2551 = vcombine.low %v2529, %v2543
        %v2552 = vcombine.high %v2529, %v2543
        %v2553 = vcombine.low %v2536, %v2550
        %v2554 = vcombine.high %v2536, %v2550
        %v2556 = vunpack.c.l.s4 1966171168
        %v2557 = vunpack.c.0.s8 %v2556
        %v2558 = vlaneseq
        %v2559 = vshrl.u32 %v2558, 7
        %v2560 = vsub.s32 %v2557, %v2559
        %v2561 = vrot.slane %v2551, %v2560
        %v2563 = vunpack.c.l.s4 1966171168
        %v2564 = vunpack.c.0.s8 %v2563
        %v2565 = vlaneseq
        %v2566 = vshrl.u32 %v2565, 7
        %v2567 = vsub.s32 %v2564, %v2566
        %v2568 = vrot.slane %v2553, %v2567
        %v2570 = vunpack.c.l.s4 1966171168
        %v2571 = vunpack.c.0.s8 %v2570
        %v2572 = vlaneseq
        %v2573 = vshrl.u32 %v2572, 7
        %v2574 = vsub.s32 %v2571, %v2573
        %v2575 = vrot.slane %v2552, %v2574
        %v2577 = vunpack.c.l.s4 1966171168
        %v2578 = vunpack.c.0.s8 %v2577
        %v2579 = vlaneseq
        %v2580 = vshrl.u32 %v2579, 7
        %v2581 = vsub.s32 %v2578, %v2580
        %v2582 = vrot.slane %v2554, %v2581
        %v2583 = vcombine.high %v2561, %v2561
        %v2584 = vcombine.high %v2568, %v2568
        %v2585 = vcombine.high %v2575, %v2575
        %v2586 = vcombine.high %v2582, %v2582
        %v2587 = vlaneseq
        %v2588 = vshrl.u32 %v2587, 7
        %v2589 = vsub.s32 0, %v2588
        %v2590 = vrot.slane %v2561, %v2589
        %v2591 = vlaneseq
        %v2592 = vshrl.u32 %v2591, 7
        %v2593 = vsub.s32 1, %v2592
        %v2594 = vrot.slane %v2561, %v2593
        %v2595 = vlaneseq
        %v2596 = vshrl.u32 %v2595, 7
        %v2597 = vsub.s32 2, %v2596
        %v2598 = vrot.slane %v2561, %v2597
        %v2599 = vlaneseq
        %v2600 = vshrl.u32 %v2599, 7
        %v2601 = vsub.s32 3, %v2600
        %v2602 = vrot.slane %v2561, %v2601
        %v2603 = vlaneseq
        %v2604 = vshrl.u32 %v2603, 7
        %v2605 = vsub.s32 0, %v2604
        %v2606 = vrot.slane %v2575, %v2605
        %v2607 = vlaneseq
        %v2608 = vshrl.u32 %v2607, 7
        %v2609 = vsub.s32 1, %v2608
        %v2610 = vrot.slane %v2575, %v2609
        %v2611 = vlaneseq
        %v2612 = vshrl.u32 %v2611, 7
        %v2613 = vsub.s32 2, %v2612
        %v2614 = vrot.slane %v2575, %v2613
        %v2615 = vlaneseq
        %v2616 = vshrl.u32 %v2615, 7
        %v2617 = vsub.s32 3, %v2616
        %v2618 = vrot.slane %v2575, %v2617
        %v2619 = vlaneseq
        %v2620 = vshrl.u32 %v2619, 7
        %v2621 = vsub.s32 0, %v2620
        %v2622 = vrot.slane %v2583, %v2621
        %v2623 = vlaneseq
        %v2624 = vshrl.u32 %v2623, 7
        %v2625 = vsub.s32 1, %v2624
        %v2626 = vrot.slane %v2583, %v2625
        %v2627 = vlaneseq
        %v2628 = vshrl.u32 %v2627, 7
        %v2629 = vsub.s32 2, %v2628
        %v2630 = vrot.slane %v2583, %v2629
        %v2631 = vlaneseq
        %v2632 = vshrl.u32 %v2631, 7
        %v2633 = vsub.s32 3, %v2632
        %v2634 = vrot.slane %v2583, %v2633
        %v2635 = vlaneseq
        %v2636 = vshrl.u32 %v2635, 7
        %v2637 = vsub.s32 0, %v2636
        %v2638 = vrot.slane %v2585, %v2637
        %v2639 = vlaneseq
        %v2640 = vshrl.u32 %v2639, 7
        %v2641 = vsub.s32 1, %v2640
        %v2642 = vrot.slane %v2585, %v2641
        %v2643 = vlaneseq
        %v2644 = vshrl.u32 %v2643, 7
        %v2645 = vsub.s32 2, %v2644
        %v2646 = vrot.slane %v2585, %v2645
        %v2647 = vlaneseq
        %v2648 = vshrl.u32 %v2647, 7
        %v2649 = vsub.s32 3, %v2648
        %v2650 = vrot.slane %v2585, %v2649
        %v2651 = vlaneseq
        %v2652 = vshrl.u32 %v2651, 7
        %v2653 = vsub.s32 0, %v2652
        %v2654 = vrot.slane %v2568, %v2653
        %v2655 = vlaneseq
        %v2656 = vshrl.u32 %v2655, 7
        %v2657 = vsub.s32 1, %v2656
        %v2658 = vrot.slane %v2568, %v2657
        %v2659 = vlaneseq
        %v2660 = vshrl.u32 %v2659, 7
        %v2661 = vsub.s32 2, %v2660
        %v2662 = vrot.slane %v2568, %v2661
        %v2663 = vlaneseq
        %v2664 = vshrl.u32 %v2663, 7
        %v2665 = vsub.s32 3, %v2664
        %v2666 = vrot.slane %v2568, %v2665
        %v2667 = vlaneseq
        %v2668 = vshrl.u32 %v2667, 7
        %v2669 = vsub.s32 0, %v2668
        %v2670 = vrot.slane %v2582, %v2669
        %v2671 = vlaneseq
        %v2672 = vshrl.u32 %v2671, 7
        %v2673 = vsub.s32 1, %v2672
        %v2674 = vrot.slane %v2582, %v2673
        %v2675 = vlaneseq
        %v2676 = vshrl.u32 %v2675, 7
        %v2677 = vsub.s32 2, %v2676
        %v2678 = vrot.slane %v2582, %v2677
        %v2679 = vlaneseq
        %v2680 = vshrl.u32 %v2679, 7
        %v2681 = vsub.s32 3, %v2680
        %v2682 = vrot.slane %v2582, %v2681
        %v2683 = vlaneseq
        %v2684 = vshrl.u32 %v2683, 7
        %v2685 = vsub.s32 0, %v2684
        %v2686 = vrot.slane %v2584, %v2685
        %v2687 = vlaneseq
        %v2688 = vshrl.u32 %v2687, 7
        %v2689 = vsub.s32 1, %v2688
        %v2690 = vrot.slane %v2584, %v2689
        %v2691 = vlaneseq
        %v2692 = vshrl.u32 %v2691, 7
        %v2693 = vsub.s32 2, %v2692
        %v2694 = vrot.slane %v2584, %v2693
        %v2695 = vlaneseq
        %v2696 = vshrl.u32 %v2695, 7
        %v2697 = vsub.s32 3, %v2696
        %v2698 = vrot.slane %v2584, %v2697
        %v2699 = vlaneseq
        %v2700 = vshrl.u32 %v2699, 7
        %v2701 = vsub.s32 0, %v2700
        %v2702 = vrot.slane %v2586, %v2701
        %v2703 = vlaneseq
        %v2704 = vshrl.u32 %v2703, 7
        %v2705 = vsub.s32 1, %v2704
        %v2706 = vrot.slane %v2586, %v2705
        %v2707 = vlaneseq
        %v2708 = vshrl.u32 %v2707, 7
        %v2709 = vsub.s32 2, %v2708
        %v2710 = vrot.slane %v2586, %v2709
        %v2711 = vlaneseq
        %v2712 = vshrl.u32 %v2711, 7
        %v2713 = vsub.s32 3, %v2712
        %v2714 = vrot.slane %v2586, %v2713
        %v2747 = vadd.f32 %v2164, %v2590
        %v2748 = vadd.f32 %v2166, %v2594
        %v2749 = vadd.f32 %v2357, %v2598
        %v2750 = vadd.f32 %v2359, %v2602
        %v2751 = vadd.f32 %v2168, %v2590
        %v2752 = vadd.f32 %v2170, %v2594
        %v2753 = vadd.f32 %v2361, %v2598
        %v2754 = vadd.f32 %v2363, %v2602
        %v2755 = vadd.f32 %v2174, %v2590
        %v2756 = vadd.f32 %v2176, %v2594
        %v2757 = vadd.f32 %v2367, %v2598
        %v2758 = vadd.f32 %v2369, %v2602
        %v2759 = vadd.f32 %v2178, %v2590
        %v2760 = vadd.f32 %v2180, %v2594
        %v2761 = vadd.f32 %v2371, %v2598
        %v2762 = vadd.f32 %v2373, %v2602
        %v2763 = vadd.f32 %v2184, %v2606
        %v2764 = vadd.f32 %v2186, %v2610
        %v2765 = vadd.f32 %v2377, %v2614
        %v2766 = vadd.f32 %v2379, %v2618
        %v2767 = vadd.f32 %v2188, %v2606
        %v2768 = vadd.f32 %v2190, %v2610
        %v2769 = vadd.f32 %v2381, %v2614
        %v2770 = vadd.f32 %v2383, %v2618
        %v2771 = vadd.f32 %v2194, %v2606
        %v2772 = vadd.f32 %v2196, %v2610
        %v2773 = vadd.f32 %v2387, %v2614
        %v2774 = vadd.f32 %v2389, %v2618
        %v2775 = vadd.f32 %v2198, %v2606
        %v2776 = vadd.f32 %v2200, %v2610
        %v2777 = vadd.f32 %v2391, %v2614
        %v2778 = vadd.f32 %v2393, %v2618
        %v2779 = vadd.f32 %v2204, %v2622
        %v2780 = vadd.f32 %v2206, %v2626
        %v2781 = vadd.f32 %v2397, %v2630
        %v2782 = vadd.f32 %v2399, %v2634
        %v2783 = vadd.f32 %v2208, %v2622
        %v2784 = vadd.f32 %v2210, %v2626
        %v2785 = vadd.f32 %v2401, %v2630
        %v2786 = vadd.f32 %v2403, %v2634
        %v2787 = vadd.f32 %v2214, %v2622
        %v2788 = vadd.f32 %v2216, %v2626
        %v2789 = vadd.f32 %v2407, %v2630
        %v2790 = vadd.f32 %v2409, %v2634
        %v2791 = vadd.f32 %v2218, %v2622
        %v2792 = vadd.f32 %v2220, %v2626
        %v2793 = vadd.f32 %v2411, %v2630
        %v2794 = vadd.f32 %v2413, %v2634
        %v2795 = vadd.f32 %v2224, %v2638
        %v2796 = vadd.f32 %v2226, %v2642
        %v2797 = vadd.f32 %v2417, %v2646
        %v2798 = vadd.f32 %v2419, %v2650
        %v2799 = vadd.f32 %v2228, %v2638
        %v2800 = vadd.f32 %v2230, %v2642
        %v2801 = vadd.f32 %v2421, %v2646
        %v2802 = vadd.f32 %v2423, %v2650
        %v2803 = vadd.f32 %v2234, %v2638
        %v2804 = vadd.f32 %v2236, %v2642
        %v2805 = vadd.f32 %v2427, %v2646
        %v2806 = vadd.f32 %v2429, %v2650
        %v2807 = vadd.f32 %v2238, %v2638
        %v2808 = vadd.f32 %v2240, %v2642
        %v2809 = vadd.f32 %v2431, %v2646
        %v2810 = vadd.f32 %v2433, %v2650
        %v2811 = vadd.f32 %v2244, %v2654
        %v2812 = vadd.f32 %v2246, %v2658
        %v2813 = vadd.f32 %v2437, %v2662
        %v2814 = vadd.f32 %v2439, %v2666
        %v2815 = vadd.f32 %v2248, %v2654
        %v2816 = vadd.f32 %v2250, %v2658
        %v2817 = vadd.f32 %v2441, %v2662
        %v2818 = vadd.f32 %v2443, %v2666
        %v2819 = vadd.f32 %v2254, %v2654
        %v2820 = vadd.f32 %v2256, %v2658
        %v2821 = vadd.f32 %v2447, %v2662
        %v2822 = vadd.f32 %v2449, %v2666
        %v2823 = vadd.f32 %v2258, %v2654
        %v2824 = vadd.f32 %v2260, %v2658
        %v2825 = vadd.f32 %v2451, %v2662
        %v2826 = vadd.f32 %v2453, %v2666
        %v2827 = vadd.f32 %v2264, %v2670
        %v2828 = vadd.f32 %v2266, %v2674
        %v2829 = vadd.f32 %v2457, %v2678
        %v2830 = vadd.f32 %v2459, %v2682
        %v2831 = vadd.f32 %v2268, %v2670
        %v2832 = vadd.f32 %v2270, %v2674
        %v2833 = vadd.f32 %v2461, %v2678
        %v2834 = vadd.f32 %v2463, %v2682
        %v2835 = vadd.f32 %v2274, %v2670
        %v2836 = vadd.f32 %v2276, %v2674
        %v2837 = vadd.f32 %v2467, %v2678
        %v2838 = vadd.f32 %v2469, %v2682
        %v2839 = vadd.f32 %v2278, %v2670
        %v2840 = vadd.f32 %v2280, %v2674
        %v2841 = vadd.f32 %v2471, %v2678
        %v2842 = vadd.f32 %v2473, %v2682
        %v2843 = vadd.f32 %v2284, %v2686
        %v2844 = vadd.f32 %v2286, %v2690
        %v2845 = vadd.f32 %v2477, %v2694
        %v2846 = vadd.f32 %v2479, %v2698
        %v2847 = vadd.f32 %v2288, %v2686
        %v2848 = vadd.f32 %v2290, %v2690
        %v2849 = vadd.f32 %v2481, %v2694
        %v2850 = vadd.f32 %v2483, %v2698
        %v2851 = vadd.f32 %v2294, %v2686
        %v2852 = vadd.f32 %v2296, %v2690
        %v2853 = vadd.f32 %v2487, %v2694
        %v2854 = vadd.f32 %v2489, %v2698
        %v2855 = vadd.f32 %v2298, %v2686
        %v2856 = vadd.f32 %v2300, %v2690
        %v2857 = vadd.f32 %v2491, %v2694
        %v2858 = vadd.f32 %v2493, %v2698
        %v2859 = vadd.f32 %v2304, %v2702
        %v2860 = vadd.f32 %v2306, %v2706
        %v2861 = vadd.f32 %v2497, %v2710
        %v2862 = vadd.f32 %v2499, %v2714
        %v2863 = vadd.f32 %v2308, %v2702
        %v2864 = vadd.f32 %v2310, %v2706
        %v2865 = vadd.f32 %v2501, %v2710
        %v2866 = vadd.f32 %v2503, %v2714
        %v2867 = vadd.f32 %v2314, %v2702
        %v2868 = vadd.f32 %v2316, %v2706
        %v2869 = vadd.f32 %v2507, %v2710
        %v2870 = vadd.f32 %v2509, %v2714
        %v2871 = vadd.f32 %v2318, %v2702
        %v2872 = vadd.f32 %v2320, %v2706
        %v2873 = vadd.f32 %v2511, %v2710
        %v2874 = vadd.f32 %v2513, %v2714
        %v2875 = vld [vmem:[%s7] sm:$0xf]
        %v2877 = vlaneseq
        %v2878 = vshrl.u32 %v2877, 7
        %v2879 = vsub.s32 0, %v2878
        %v2880 = vrot.slane %v2875, %v2879
        %v2881 = vlaneseq
        %v2882 = vshrl.u32 %v2881, 7
        %v2883 = vsub.s32 1, %v2882
        %v2884 = vrot.slane %v2875, %v2883
        %v2885 = vlaneseq
        %v2886 = vshrl.u32 %v2885, 7
        %v2887 = vsub.s32 2, %v2886
        %v2888 = vrot.slane %v2875, %v2887
        %v2889 = vlaneseq
        %v2890 = vshrl.u32 %v2889, 7
        %v2891 = vsub.s32 3, %v2890
        %v2892 = vrot.slane %v2875, %v2891
        %v2897 = vadd.f32 %v2747, %v2880
        %v2898 = vadd.f32 %v2748, %v2884
        %v2899 = vadd.f32 %v2749, %v2888
        %v2900 = vadd.f32 %v2750, %v2892
        %v2901 = vadd.f32 %v2751, %v2880
        %v2902 = vadd.f32 %v2752, %v2884
        %v2903 = vadd.f32 %v2753, %v2888
        %v2904 = vadd.f32 %v2754, %v2892
        %v2905 = vadd.f32 %v2755, %v2880
        %v2906 = vadd.f32 %v2756, %v2884
        %v2907 = vadd.f32 %v2757, %v2888
        %v2908 = vadd.f32 %v2758, %v2892
        %v2909 = vadd.f32 %v2759, %v2880
        %v2910 = vadd.f32 %v2760, %v2884
        %v2911 = vadd.f32 %v2761, %v2888
        %v2912 = vadd.f32 %v2762, %v2892
        %v2913 = vadd.f32 %v2763, %v2880
        %v2914 = vadd.f32 %v2764, %v2884
        %v2915 = vadd.f32 %v2765, %v2888
        %v2916 = vadd.f32 %v2766, %v2892
        %v2917 = vadd.f32 %v2767, %v2880
        %v2918 = vadd.f32 %v2768, %v2884
        %v2919 = vadd.f32 %v2769, %v2888
        %v2920 = vadd.f32 %v2770, %v2892
        %v2921 = vadd.f32 %v2771, %v2880
        %v2922 = vadd.f32 %v2772, %v2884
        %v2923 = vadd.f32 %v2773, %v2888
        %v2924 = vadd.f32 %v2774, %v2892
        %v2925 = vadd.f32 %v2775, %v2880
        %v2926 = vadd.f32 %v2776, %v2884
        %v2927 = vadd.f32 %v2777, %v2888
        %v2928 = vadd.f32 %v2778, %v2892
        %v2929 = vadd.f32 %v2779, %v2880
        %v2930 = vadd.f32 %v2780, %v2884
        %v2931 = vadd.f32 %v2781, %v2888
        %v2932 = vadd.f32 %v2782, %v2892
        %v2933 = vadd.f32 %v2783, %v2880
        %v2934 = vadd.f32 %v2784, %v2884
        %v2935 = vadd.f32 %v2785, %v2888
        %v2936 = vadd.f32 %v2786, %v2892
        %v2937 = vadd.f32 %v2787, %v2880
        %v2938 = vadd.f32 %v2788, %v2884
        %v2939 = vadd.f32 %v2789, %v2888
        %v2940 = vadd.f32 %v2790, %v2892
        %v2941 = vadd.f32 %v2791, %v2880
        %v2942 = vadd.f32 %v2792, %v2884
        %v2943 = vadd.f32 %v2793, %v2888
        %v2944 = vadd.f32 %v2794, %v2892
        %v2945 = vadd.f32 %v2795, %v2880
        %v2946 = vadd.f32 %v2796, %v2884
        %v2947 = vadd.f32 %v2797, %v2888
        %v2948 = vadd.f32 %v2798, %v2892
        %v2949 = vadd.f32 %v2799, %v2880
        %v2950 = vadd.f32 %v2800, %v2884
        %v2951 = vadd.f32 %v2801, %v2888
        %v2952 = vadd.f32 %v2802, %v2892
        %v2953 = vadd.f32 %v2803, %v2880
        %v2954 = vadd.f32 %v2804, %v2884
        %v2955 = vadd.f32 %v2805, %v2888
        %v2956 = vadd.f32 %v2806, %v2892
        %v2957 = vadd.f32 %v2807, %v2880
        %v2958 = vadd.f32 %v2808, %v2884
        %v2959 = vadd.f32 %v2809, %v2888
        %v2960 = vadd.f32 %v2810, %v2892
        %v2961 = vadd.f32 %v2811, %v2880
        %v2962 = vadd.f32 %v2812, %v2884
        %v2963 = vadd.f32 %v2813, %v2888
        %v2964 = vadd.f32 %v2814, %v2892
        %v2965 = vadd.f32 %v2815, %v2880
        %v2966 = vadd.f32 %v2816, %v2884
        %v2967 = vadd.f32 %v2817, %v2888
        %v2968 = vadd.f32 %v2818, %v2892
        %v2969 = vadd.f32 %v2819, %v2880
        %v2970 = vadd.f32 %v2820, %v2884
        %v2971 = vadd.f32 %v2821, %v2888
        %v2972 = vadd.f32 %v2822, %v2892
        %v2973 = vadd.f32 %v2823, %v2880
        %v2974 = vadd.f32 %v2824, %v2884
        %v2975 = vadd.f32 %v2825, %v2888
        %v2976 = vadd.f32 %v2826, %v2892
        %v2977 = vadd.f32 %v2827, %v2880
        %v2978 = vadd.f32 %v2828, %v2884
        %v2979 = vadd.f32 %v2829, %v2888
        %v2980 = vadd.f32 %v2830, %v2892
        %v2981 = vadd.f32 %v2831, %v2880
        %v2982 = vadd.f32 %v2832, %v2884
        %v2983 = vadd.f32 %v2833, %v2888
        %v2984 = vadd.f32 %v2834, %v2892
        %v2985 = vadd.f32 %v2835, %v2880
        %v2986 = vadd.f32 %v2836, %v2884
        %v2987 = vadd.f32 %v2837, %v2888
        %v2988 = vadd.f32 %v2838, %v2892
        %v2989 = vadd.f32 %v2839, %v2880
        %v2990 = vadd.f32 %v2840, %v2884
        %v2991 = vadd.f32 %v2841, %v2888
        %v2992 = vadd.f32 %v2842, %v2892
        %v2993 = vadd.f32 %v2843, %v2880
        %v2994 = vadd.f32 %v2844, %v2884
        %v2995 = vadd.f32 %v2845, %v2888
        %v2996 = vadd.f32 %v2846, %v2892
        %v2997 = vadd.f32 %v2847, %v2880
        %v2998 = vadd.f32 %v2848, %v2884
        %v2999 = vadd.f32 %v2849, %v2888
        %v3000 = vadd.f32 %v2850, %v2892
        %v3001 = vadd.f32 %v2851, %v2880
        %v3002 = vadd.f32 %v2852, %v2884
        %v3003 = vadd.f32 %v2853, %v2888
        %v3004 = vadd.f32 %v2854, %v2892
        %v3005 = vadd.f32 %v2855, %v2880
        %v3006 = vadd.f32 %v2856, %v2884
        %v3007 = vadd.f32 %v2857, %v2888
        %v3008 = vadd.f32 %v2858, %v2892
        %v3009 = vadd.f32 %v2859, %v2880
        %v3010 = vadd.f32 %v2860, %v2884
        %v3011 = vadd.f32 %v2861, %v2888
        %v3012 = vadd.f32 %v2862, %v2892
        %v3013 = vadd.f32 %v2863, %v2880
        %v3014 = vadd.f32 %v2864, %v2884
        %v3015 = vadd.f32 %v2865, %v2888
        %v3016 = vadd.f32 %v2866, %v2892
        %v3017 = vadd.f32 %v2867, %v2880
        %v3018 = vadd.f32 %v2868, %v2884
        %v3019 = vadd.f32 %v2869, %v2888
        %v3020 = vadd.f32 %v2870, %v2892
        %v3021 = vadd.f32 %v2871, %v2880
        %v3022 = vadd.f32 %v2872, %v2884
        %v3023 = vadd.f32 %v2873, %v2888
        %v3024 = vadd.f32 %v2874, %v2892
        %v3025 = vmax.f32 %v2897, 0.0
        %v3026 = vmax.f32 %v2898, 0.0
        %v3027 = vmax.f32 %v2899, 0.0
        %v3028 = vmax.f32 %v2900, 0.0
        %v3029 = vmax.f32 %v2901, 0.0
        %v3030 = vmax.f32 %v2902, 0.0
        %v3031 = vmax.f32 %v2903, 0.0
        %v3032 = vmax.f32 %v2904, 0.0
        %v3033 = vmax.f32 %v2905, 0.0
        %v3034 = vmax.f32 %v2906, 0.0
        %v3035 = vmax.f32 %v2907, 0.0
        %v3036 = vmax.f32 %v2908, 0.0
        %v3037 = vmax.f32 %v2909, 0.0
        %v3038 = vmax.f32 %v2910, 0.0
        %v3039 = vmax.f32 %v2911, 0.0
        %v3040 = vmax.f32 %v2912, 0.0
        %v3041 = vmax.f32 %v2913, 0.0
        %v3042 = vmax.f32 %v2914, 0.0
        %v3043 = vmax.f32 %v2915, 0.0
        %v3044 = vmax.f32 %v2916, 0.0
        %v3045 = vmax.f32 %v2917, 0.0
        %v3046 = vmax.f32 %v2918, 0.0
        %v3047 = vmax.f32 %v2919, 0.0
        %v3048 = vmax.f32 %v2920, 0.0
        %v3049 = vmax.f32 %v2921, 0.0
        %v3050 = vmax.f32 %v2922, 0.0
        %v3051 = vmax.f32 %v2923, 0.0
        %v3052 = vmax.f32 %v2924, 0.0
        %v3053 = vmax.f32 %v2925, 0.0
        %v3054 = vmax.f32 %v2926, 0.0
        %v3055 = vmax.f32 %v2927, 0.0
        %v3056 = vmax.f32 %v2928, 0.0
        %v3057 = vmax.f32 %v2929, 0.0
        %v3058 = vmax.f32 %v2930, 0.0
        %v3059 = vmax.f32 %v2931, 0.0
        %v3060 = vmax.f32 %v2932, 0.0
        %v3061 = vmax.f32 %v2933, 0.0
        %v3062 = vmax.f32 %v2934, 0.0
        %v3063 = vmax.f32 %v2935, 0.0
        %v3064 = vmax.f32 %v2936, 0.0
        %v3065 = vmax.f32 %v2937, 0.0
        %v3066 = vmax.f32 %v2938, 0.0
        %v3067 = vmax.f32 %v2939, 0.0
        %v3068 = vmax.f32 %v2940, 0.0
        %v3069 = vmax.f32 %v2941, 0.0
        %v3070 = vmax.f32 %v2942, 0.0
        %v3071 = vmax.f32 %v2943, 0.0
        %v3072 = vmax.f32 %v2944, 0.0
        %v3073 = vmax.f32 %v2945, 0.0
        %v3074 = vmax.f32 %v2946, 0.0
        %v3075 = vmax.f32 %v2947, 0.0
        %v3076 = vmax.f32 %v2948, 0.0
        %v3077 = vmax.f32 %v2949, 0.0
        %v3078 = vmax.f32 %v2950, 0.0
        %v3079 = vmax.f32 %v2951, 0.0
        %v3080 = vmax.f32 %v2952, 0.0
        %v3081 = vmax.f32 %v2953, 0.0
        %v3082 = vmax.f32 %v2954, 0.0
        %v3083 = vmax.f32 %v2955, 0.0
        %v3084 = vmax.f32 %v2956, 0.0
        %v3085 = vmax.f32 %v2957, 0.0
        %v3086 = vmax.f32 %v2958, 0.0
        %v3087 = vmax.f32 %v2959, 0.0
        %v3088 = vmax.f32 %v2960, 0.0
        %v3089 = vmax.f32 %v2961, 0.0
        %v3090 = vmax.f32 %v2962, 0.0
        %v3091 = vmax.f32 %v2963, 0.0
        %v3092 = vmax.f32 %v2964, 0.0
        %v3093 = vmax.f32 %v2965, 0.0
        %v3094 = vmax.f32 %v2966, 0.0
        %v3095 = vmax.f32 %v2967, 0.0
        %v3096 = vmax.f32 %v2968, 0.0
        %v3097 = vmax.f32 %v2969, 0.0
        %v3098 = vmax.f32 %v2970, 0.0
        %v3099 = vmax.f32 %v2971, 0.0
        %v3100 = vmax.f32 %v2972, 0.0
        %v3101 = vmax.f32 %v2973, 0.0
        %v3102 = vmax.f32 %v2974, 0.0
        %v3103 = vmax.f32 %v2975, 0.0
        %v3104 = vmax.f32 %v2976, 0.0
        %v3105 = vmax.f32 %v2977, 0.0
        %v3106 = vmax.f32 %v2978, 0.0
        %v3107 = vmax.f32 %v2979, 0.0
        %v3108 = vmax.f32 %v2980, 0.0
        %v3109 = vmax.f32 %v2981, 0.0
        %v3110 = vmax.f32 %v2982, 0.0
        %v3111 = vmax.f32 %v2983, 0.0
        %v3112 = vmax.f32 %v2984, 0.0
        %v3113 = vmax.f32 %v2985, 0.0
        %v3114 = vmax.f32 %v2986, 0.0
        %v3115 = vmax.f32 %v2987, 0.0
        %v3116 = vmax.f32 %v2988, 0.0
        %v3117 = vmax.f32 %v2989, 0.0
        %v3118 = vmax.f32 %v2990, 0.0
        %v3119 = vmax.f32 %v2991, 0.0
        %v3120 = vmax.f32 %v2992, 0.0
        %v3121 = vmax.f32 %v2993, 0.0
        %v3122 = vmax.f32 %v2994, 0.0
        %v3123 = vmax.f32 %v2995, 0.0
        %v3124 = vmax.f32 %v2996, 0.0
        %v3125 = vmax.f32 %v2997, 0.0
        %v3126 = vmax.f32 %v2998, 0.0
        %v3127 = vmax.f32 %v2999, 0.0
        %v3128 = vmax.f32 %v3000, 0.0
        %v3129 = vmax.f32 %v3001, 0.0
        %v3130 = vmax.f32 %v3002, 0.0
        %v3131 = vmax.f32 %v3003, 0.0
        %v3132 = vmax.f32 %v3004, 0.0
        %v3133 = vmax.f32 %v3005, 0.0
        %v3134 = vmax.f32 %v3006, 0.0
        %v3135 = vmax.f32 %v3007, 0.0
        %v3136 = vmax.f32 %v3008, 0.0
        %v3137 = vmax.f32 %v3009, 0.0
        %v3138 = vmax.f32 %v3010, 0.0
        %v3139 = vmax.f32 %v3011, 0.0
        %v3140 = vmax.f32 %v3012, 0.0
        %v3141 = vmax.f32 %v3013, 0.0
        %v3142 = vmax.f32 %v3014, 0.0
        %v3143 = vmax.f32 %v3015, 0.0
        %v3144 = vmax.f32 %v3016, 0.0
        %v3145 = vmax.f32 %v3017, 0.0
        %v3146 = vmax.f32 %v3018, 0.0
        %v3147 = vmax.f32 %v3019, 0.0
        %v3148 = vmax.f32 %v3020, 0.0
        %v3149 = vmax.f32 %v3021, 0.0
        %v3150 = vmax.f32 %v3022, 0.0
        %v3151 = vmax.f32 %v3023, 0.0
        %v3152 = vmax.f32 %v3024, 0.0
        %v3153 = vpack.c.bf16 %v3029, %v3025
        %v3154 = vpack.c.bf16 %v3030, %v3026
        %v3155 = vpack.c.bf16 %v3031, %v3027
        %v3156 = vpack.c.bf16 %v3032, %v3028
        %v3157 = vpack.c.bf16 %v3037, %v3033
        %v3158 = vpack.c.bf16 %v3038, %v3034
        %v3159 = vpack.c.bf16 %v3039, %v3035
        %v3160 = vpack.c.bf16 %v3040, %v3036
        %v3161 = vpack.c.bf16 %v3045, %v3041
        %v3162 = vpack.c.bf16 %v3046, %v3042
        %v3163 = vpack.c.bf16 %v3047, %v3043
        %v3164 = vpack.c.bf16 %v3048, %v3044
        %v3165 = vpack.c.bf16 %v3053, %v3049
        %v3166 = vpack.c.bf16 %v3054, %v3050
        %v3167 = vpack.c.bf16 %v3055, %v3051
        %v3168 = vpack.c.bf16 %v3056, %v3052
        %v3169 = vpack.c.bf16 %v3061, %v3057
        %v3170 = vpack.c.bf16 %v3062, %v3058
        %v3171 = vpack.c.bf16 %v3063, %v3059
        %v3172 = vpack.c.bf16 %v3064, %v3060
        %v3173 = vpack.c.bf16 %v3069, %v3065
        %v3174 = vpack.c.bf16 %v3070, %v3066
        %v3175 = vpack.c.bf16 %v3071, %v3067
        %v3176 = vpack.c.bf16 %v3072, %v3068
        %v3177 = vpack.c.bf16 %v3077, %v3073
        %v3178 = vpack.c.bf16 %v3078, %v3074
        %v3179 = vpack.c.bf16 %v3079, %v3075
        %v3180 = vpack.c.bf16 %v3080, %v3076
        %v3181 = vpack.c.bf16 %v3085, %v3081
        %v3182 = vpack.c.bf16 %v3086, %v3082
        %v3183 = vpack.c.bf16 %v3087, %v3083
        %v3184 = vpack.c.bf16 %v3088, %v3084
        %v3185 = vpack.c.bf16 %v3093, %v3089
        %v3186 = vpack.c.bf16 %v3094, %v3090
        %v3187 = vpack.c.bf16 %v3095, %v3091
        %v3188 = vpack.c.bf16 %v3096, %v3092
        %v3189 = vpack.c.bf16 %v3101, %v3097
        %v3190 = vpack.c.bf16 %v3102, %v3098
        %v3191 = vpack.c.bf16 %v3103, %v3099
        %v3192 = vpack.c.bf16 %v3104, %v3100
        %v3193 = vpack.c.bf16 %v3109, %v3105
        %v3194 = vpack.c.bf16 %v3110, %v3106
        %v3195 = vpack.c.bf16 %v3111, %v3107
        %v3196 = vpack.c.bf16 %v3112, %v3108
        %v3197 = vpack.c.bf16 %v3117, %v3113
        %v3198 = vpack.c.bf16 %v3118, %v3114
        %v3199 = vpack.c.bf16 %v3119, %v3115
        %v3200 = vpack.c.bf16 %v3120, %v3116
        %v3201 = vpack.c.bf16 %v3125, %v3121
        %v3202 = vpack.c.bf16 %v3126, %v3122
        %v3203 = vpack.c.bf16 %v3127, %v3123
        %v3204 = vpack.c.bf16 %v3128, %v3124
        %v3205 = vpack.c.bf16 %v3133, %v3129
        %v3206 = vpack.c.bf16 %v3134, %v3130
        %v3207 = vpack.c.bf16 %v3135, %v3131
        %v3208 = vpack.c.bf16 %v3136, %v3132
        %v3209 = vpack.c.bf16 %v3141, %v3137
        %v3210 = vpack.c.bf16 %v3142, %v3138
        %v3211 = vpack.c.bf16 %v3143, %v3139
        %v3212 = vpack.c.bf16 %v3144, %v3140
        %v3213 = vpack.c.bf16 %v3149, %v3145
        %v3214 = vpack.c.bf16 %v3150, %v3146
        %v3215 = vpack.c.bf16 %v3151, %v3147
        %v3216 = vpack.c.bf16 %v3152, %v3148
        %v3217 = vld [vmem:[#allocation7] sm:$0xff]
        %v3218 = vld [vmem:[#allocation7 + $0x8] sm:$0xff]
        %v3219 = vld [vmem:[#allocation7 + $0x10] sm:$0xff]
        %v3220 = vld [vmem:[#allocation7 + $0x18] sm:$0xff]
        %v3221 = vld [vmem:[#allocation7 + $0x20] sm:$0xff]
        %v3222 = vld [vmem:[#allocation7 + $0x28] sm:$0xff]
        %v3223 = vld [vmem:[#allocation7 + $0x30] sm:$0xff]
        %v3224 = vld [vmem:[#allocation7 + $0x38] sm:$0xff]
        %v3225 = vld [vmem:[#allocation7 + $0x40] sm:$0xff]
        %v3226 = vld [vmem:[#allocation7 + $0x48] sm:$0xff]
        %v3227 = vld [vmem:[#allocation7 + $0x50] sm:$0xff]
        %v3228 = vld [vmem:[#allocation7 + $0x58] sm:$0xff]
        %v3229 = vld [vmem:[#allocation7 + $0x60] sm:$0xff]
        %v3230 = vld [vmem:[#allocation7 + $0x68] sm:$0xff]
        %v3231 = vld [vmem:[#allocation7 + $0x70] sm:$0xff]
        %v3232 = vld [vmem:[#allocation7 + $0x78] sm:$0xff]
        %v3233 = vld [vmem:[#allocation7 + $0x80] sm:$0xff]
        %v3234 = vld [vmem:[#allocation7 + $0x88] sm:$0xff]
        %v3235 = vld [vmem:[#allocation7 + $0x90] sm:$0xff]
        %v3236 = vld [vmem:[#allocation7 + $0x98] sm:$0xff]
        %v3237 = vld [vmem:[#allocation7 + $0xa0] sm:$0xff]
        %v3238 = vld [vmem:[#allocation7 + $0xa8] sm:$0xff]
        %v3239 = vld [vmem:[#allocation7 + $0xb0] sm:$0xff]
        %v3240 = vld [vmem:[#allocation7 + $0xb8] sm:$0xff]
        %v3241 = vld [vmem:[#allocation7 + $0xc0] sm:$0xff]
        %v3242 = vld [vmem:[#allocation7 + $0xc8] sm:$0xff]
        %v3243 = vld [vmem:[#allocation7 + $0xd0] sm:$0xff]
        %v3244 = vld [vmem:[#allocation7 + $0xd8] sm:$0xff]
        %v3245 = vld [vmem:[#allocation7 + $0xe0] sm:$0xff]
        %v3246 = vld [vmem:[#allocation7 + $0xe8] sm:$0xff]
        %v3247 = vld [vmem:[#allocation7 + $0xf0] sm:$0xff]
        %v3248 = vld [vmem:[#allocation7 + $0xf8] sm:$0xff]
        %v3249 = vld [vmem:[#allocation7 + $0x100] sm:$0xff]
        %v3250 = vld [vmem:[#allocation7 + $0x108] sm:$0xff]
        %v3251 = vld [vmem:[#allocation7 + $0x110] sm:$0xff]
        %v3252 = vld [vmem:[#allocation7 + $0x118] sm:$0xff]
        %v3253 = vld [vmem:[#allocation7 + $0x120] sm:$0xff]
        %v3254 = vld [vmem:[#allocation7 + $0x128] sm:$0xff]
        %v3255 = vld [vmem:[#allocation7 + $0x130] sm:$0xff]
        %v3256 = vld [vmem:[#allocation7 + $0x138] sm:$0xff]
        %v3257 = vld [vmem:[#allocation7 + $0x140] sm:$0xff]
        %v3258 = vld [vmem:[#allocation7 + $0x148] sm:$0xff]
        %v3259 = vld [vmem:[#allocation7 + $0x150] sm:$0xff]
        %v3260 = vld [vmem:[#allocation7 + $0x158] sm:$0xff]
        %v3261 = vld [vmem:[#allocation7 + $0x160] sm:$0xff]
        %v3262 = vld [vmem:[#allocation7 + $0x168] sm:$0xff]
        %v3263 = vld [vmem:[#allocation7 + $0x170] sm:$0xff]
        %v3264 = vld [vmem:[#allocation7 + $0x178] sm:$0xff]
        %v3265 = vld [vmem:[#allocation7 + $0x180] sm:$0xff]
        %v3266 = vld [vmem:[#allocation7 + $0x188] sm:$0xff]
        %v3267 = vld [vmem:[#allocation7 + $0x190] sm:$0xff]
        %v3268 = vld [vmem:[#allocation7 + $0x198] sm:$0xff]
        %v3269 = vld [vmem:[#allocation7 + $0x1a0] sm:$0xff]
        %v3270 = vld [vmem:[#allocation7 + $0x1a8] sm:$0xff]
        %v3271 = vld [vmem:[#allocation7 + $0x1b0] sm:$0xff]
        %v3272 = vld [vmem:[#allocation7 + $0x1b8] sm:$0xff]
        %v3273 = vld [vmem:[#allocation7 + $0x1c0] sm:$0xff]
        %v3274 = vld [vmem:[#allocation7 + $0x1c8] sm:$0xff]
        %v3275 = vld [vmem:[#allocation7 + $0x1d0] sm:$0xff]
        %v3276 = vld [vmem:[#allocation7 + $0x1d8] sm:$0xff]
        %v3277 = vld [vmem:[#allocation7 + $0x1e0] sm:$0xff]
        %v3278 = vld [vmem:[#allocation7 + $0x1e8] sm:$0xff]
        %v3279 = vld [vmem:[#allocation7 + $0x1f0] sm:$0xff]
        %v3280 = vld [vmem:[#allocation7 + $0x1f8] sm:$0xff]
        %v3281 = vld [vmem:[%s9] sm:$0x3]
        %v3283 = vlaneseq
        %v3284 = vshrl.u32 %v3283, 7
        %v3285 = vsub.s32 0, %v3284
        %v3286 = vrot.slane %v3281, %v3285
        %v3287 = vlaneseq
        %v3288 = vshrl.u32 %v3287, 7
        %v3289 = vsub.s32 1, %v3288
        %v3290 = vrot.slane %v3281, %v3289
        %v3357 = vunpack.c.l.b16 %v3217
        %v3358 = vunpack.c.h.b16 %v3217
        %v3359 = vunpack.c.l.b16 %v3218
        %v3360 = vunpack.c.h.b16 %v3218
        %v3361 = vunpack.c.l.b16 %v3219
        %v3362 = vunpack.c.h.b16 %v3219
        %v3363 = vunpack.c.l.b16 %v3220
        %v3364 = vunpack.c.h.b16 %v3220
        %v3365 = vunpack.c.l.b16 %v3221
        %v3366 = vunpack.c.h.b16 %v3221
        %v3367 = vunpack.c.l.b16 %v3222
        %v3368 = vunpack.c.h.b16 %v3222
        %v3369 = vunpack.c.l.b16 %v3223
        %v3370 = vunpack.c.h.b16 %v3223
        %v3371 = vunpack.c.l.b16 %v3224
        %v3372 = vunpack.c.h.b16 %v3224
        %v3373 = vunpack.c.l.b16 %v3225
        %v3374 = vunpack.c.h.b16 %v3225
        %v3375 = vunpack.c.l.b16 %v3226
        %v3376 = vunpack.c.h.b16 %v3226
        %v3377 = vunpack.c.l.b16 %v3227
        %v3378 = vunpack.c.h.b16 %v3227
        %v3379 = vunpack.c.l.b16 %v3228
        %v3380 = vunpack.c.h.b16 %v3228
        %v3381 = vunpack.c.l.b16 %v3229
        %v3382 = vunpack.c.h.b16 %v3229
        %v3383 = vunpack.c.l.b16 %v3230
        %v3384 = vunpack.c.h.b16 %v3230
        %v3385 = vunpack.c.l.b16 %v3231
        %v3386 = vunpack.c.h.b16 %v3231
        %v3387 = vunpack.c.l.b16 %v3232
        %v3388 = vunpack.c.h.b16 %v3232
        %v3389 = vunpack.c.l.b16 %v3233
        %v3390 = vunpack.c.h.b16 %v3233
        %v3391 = vunpack.c.l.b16 %v3234
        %v3392 = vunpack.c.h.b16 %v3234
        %v3393 = vunpack.c.l.b16 %v3235
        %v3394 = vunpack.c.h.b16 %v3235
        %v3395 = vunpack.c.l.b16 %v3236
        %v3396 = vunpack.c.h.b16 %v3236
        %v3397 = vunpack.c.l.b16 %v3237
        %v3398 = vunpack.c.h.b16 %v3237
        %v3399 = vunpack.c.l.b16 %v3238
        %v3400 = vunpack.c.h.b16 %v3238
        %v3401 = vunpack.c.l.b16 %v3239
        %v3402 = vunpack.c.h.b16 %v3239
        %v3403 = vunpack.c.l.b16 %v3240
        %v3404 = vunpack.c.h.b16 %v3240
        %v3405 = vunpack.c.l.b16 %v3241
        %v3406 = vunpack.c.h.b16 %v3241
        %v3407 = vunpack.c.l.b16 %v3242
        %v3408 = vunpack.c.h.b16 %v3242
        %v3409 = vunpack.c.l.b16 %v3243
        %v3410 = vunpack.c.h.b16 %v3243
        %v3411 = vunpack.c.l.b16 %v3244
        %v3412 = vunpack.c.h.b16 %v3244
        %v3413 = vunpack.c.l.b16 %v3245
        %v3414 = vunpack.c.h.b16 %v3245
        %v3415 = vunpack.c.l.b16 %v3246
        %v3416 = vunpack.c.h.b16 %v3246
        %v3417 = vunpack.c.l.b16 %v3247
        %v3418 = vunpack.c.h.b16 %v3247
        %v3419 = vunpack.c.l.b16 %v3248
        %v3420 = vunpack.c.h.b16 %v3248
        %v3421 = vunpack.c.l.b16 %v3249
        %v3422 = vunpack.c.h.b16 %v3249
        %v3423 = vunpack.c.l.b16 %v3250
        %v3424 = vunpack.c.h.b16 %v3250
        %v3425 = vunpack.c.l.b16 %v3251
        %v3426 = vunpack.c.h.b16 %v3251
        %v3427 = vunpack.c.l.b16 %v3252
        %v3428 = vunpack.c.h.b16 %v3252
        %v3429 = vunpack.c.l.b16 %v3253
        %v3430 = vunpack.c.h.b16 %v3253
        %v3431 = vunpack.c.l.b16 %v3254
        %v3432 = vunpack.c.h.b16 %v3254
        %v3433 = vunpack.c.l.b16 %v3255
        %v3434 = vunpack.c.h.b16 %v3255
        %v3435 = vunpack.c.l.b16 %v3256
        %v3436 = vunpack.c.h.b16 %v3256
        %v3437 = vunpack.c.l.b16 %v3257
        %v3438 = vunpack.c.h.b16 %v3257
        %v3439 = vunpack.c.l.b16 %v3258
        %v3440 = vunpack.c.h.b16 %v3258
        %v3441 = vunpack.c.l.b16 %v3259
        %v3442 = vunpack.c.h.b16 %v3259
        %v3443 = vunpack.c.l.b16 %v3260
        %v3444 = vunpack.c.h.b16 %v3260
        %v3445 = vunpack.c.l.b16 %v3261
        %v3446 = vunpack.c.h.b16 %v3261
        %v3447 = vunpack.c.l.b16 %v3262
        %v3448 = vunpack.c.h.b16 %v3262
        %v3449 = vunpack.c.l.b16 %v3263
        %v3450 = vunpack.c.h.b16 %v3263
        %v3451 = vunpack.c.l.b16 %v3264
        %v3452 = vunpack.c.h.b16 %v3264
        %v3453 = vunpack.c.l.b16 %v3265
        %v3454 = vunpack.c.h.b16 %v3265
        %v3455 = vunpack.c.l.b16 %v3266
        %v3456 = vunpack.c.h.b16 %v3266
        %v3457 = vunpack.c.l.b16 %v3267
        %v3458 = vunpack.c.h.b16 %v3267
        %v3459 = vunpack.c.l.b16 %v3268
        %v3460 = vunpack.c.h.b16 %v3268
        %v3461 = vunpack.c.l.b16 %v3269
        %v3462 = vunpack.c.h.b16 %v3269
        %v3463 = vunpack.c.l.b16 %v3270
        %v3464 = vunpack.c.h.b16 %v3270
        %v3465 = vunpack.c.l.b16 %v3271
        %v3466 = vunpack.c.h.b16 %v3271
        %v3467 = vunpack.c.l.b16 %v3272
        %v3468 = vunpack.c.h.b16 %v3272
        %v3469 = vunpack.c.l.b16 %v3273
        %v3470 = vunpack.c.h.b16 %v3273
        %v3471 = vunpack.c.l.b16 %v3274
        %v3472 = vunpack.c.h.b16 %v3274
        %v3473 = vunpack.c.l.b16 %v3275
        %v3474 = vunpack.c.h.b16 %v3275
        %v3475 = vunpack.c.l.b16 %v3276
        %v3476 = vunpack.c.h.b16 %v3276
        %v3477 = vunpack.c.l.b16 %v3277
        %v3478 = vunpack.c.h.b16 %v3277
        %v3479 = vunpack.c.l.b16 %v3278
        %v3480 = vunpack.c.h.b16 %v3278
        %v3481 = vunpack.c.l.b16 %v3279
        %v3482 = vunpack.c.h.b16 %v3279
        %v3483 = vunpack.c.l.b16 %v3280
        %v3484 = vunpack.c.h.b16 %v3280
        %v3485 = vpack.c.b16 %v3359, %v3357
        %v3486 = vpack.c.b16 %v3360, %v3358
        %v3487 = vpack.c.b16 %v3363, %v3361
        %v3488 = vpack.c.b16 %v3364, %v3362
        %v3489 = vpack.c.b16 %v3367, %v3365
        %v3490 = vpack.c.b16 %v3368, %v3366
        %v3491 = vpack.c.b16 %v3371, %v3369
        %v3492 = vpack.c.b16 %v3372, %v3370
        %v3493 = vpack.c.b16 %v3375, %v3373
        %v3494 = vpack.c.b16 %v3376, %v3374
        %v3495 = vpack.c.b16 %v3379, %v3377
        %v3496 = vpack.c.b16 %v3380, %v3378
        %v3497 = vpack.c.b16 %v3383, %v3381
        %v3498 = vpack.c.b16 %v3384, %v3382
        %v3499 = vpack.c.b16 %v3387, %v3385
        %v3500 = vpack.c.b16 %v3388, %v3386
        %v3501 = vpack.c.b16 %v3391, %v3389
        %v3502 = vpack.c.b16 %v3392, %v3390
        %v3503 = vpack.c.b16 %v3395, %v3393
        %v3504 = vpack.c.b16 %v3396, %v3394
        %v3505 = vpack.c.b16 %v3399, %v3397
        %v3506 = vpack.c.b16 %v3400, %v3398
        %v3507 = vpack.c.b16 %v3403, %v3401
        %v3508 = vpack.c.b16 %v3404, %v3402
        %v3509 = vpack.c.b16 %v3407, %v3405
        %v3510 = vpack.c.b16 %v3408, %v3406
        %v3511 = vpack.c.b16 %v3411, %v3409
        %v3512 = vpack.c.b16 %v3412, %v3410
        %v3513 = vpack.c.b16 %v3415, %v3413
        %v3514 = vpack.c.b16 %v3416, %v3414
        %v3515 = vpack.c.b16 %v3419, %v3417
        %v3516 = vpack.c.b16 %v3420, %v3418
        %v3517 = vpack.c.b16 %v3423, %v3421
        %v3518 = vpack.c.b16 %v3424, %v3422
        %v3519 = vpack.c.b16 %v3427, %v3425
        %v3520 = vpack.c.b16 %v3428, %v3426
        %v3521 = vpack.c.b16 %v3431, %v3429
        %v3522 = vpack.c.b16 %v3432, %v3430
        %v3523 = vpack.c.b16 %v3435, %v3433
        %v3524 = vpack.c.b16 %v3436, %v3434
        %v3525 = vpack.c.b16 %v3439, %v3437
        %v3526 = vpack.c.b16 %v3440, %v3438
        %v3527 = vpack.c.b16 %v3443, %v3441
        %v3528 = vpack.c.b16 %v3444, %v3442
        %v3529 = vpack.c.b16 %v3447, %v3445
        %v3530 = vpack.c.b16 %v3448, %v3446
        %v3531 = vpack.c.b16 %v3451, %v3449
        %v3532 = vpack.c.b16 %v3452, %v3450
        %v3533 = vpack.c.b16 %v3455, %v3453
        %v3534 = vpack.c.b16 %v3456, %v3454
        %v3535 = vpack.c.b16 %v3459, %v3457
        %v3536 = vpack.c.b16 %v3460, %v3458
        %v3537 = vpack.c.b16 %v3463, %v3461
        %v3538 = vpack.c.b16 %v3464, %v3462
        %v3539 = vpack.c.b16 %v3467, %v3465
        %v3540 = vpack.c.b16 %v3468, %v3466
        %v3541 = vpack.c.b16 %v3471, %v3469
        %v3542 = vpack.c.b16 %v3472, %v3470
        %v3543 = vpack.c.b16 %v3475, %v3473
        %v3544 = vpack.c.b16 %v3476, %v3474
        %v3545 = vpack.c.b16 %v3479, %v3477
        %v3546 = vpack.c.b16 %v3480, %v3478
        %v3547 = vpack.c.b16 %v3483, %v3481
        %v3548 = vpack.c.b16 %v3484, %v3482
        %3613 = vmatprep.subr.bf16.mxu0 %v3486
        %3614 = vmatpush1.bf16.msra.mxu0 %v3485
        %3615 = vmatprep.subr.bf16.mxu0 %v3488
        %3616 = vmatpush1.bf16.msra.mxu0 %v3487
        %3617 = vmatprep.subr.bf16.mxu0 %v3490
        %3618 = vmatpush1.bf16.msra.mxu0 %v3489
        %3619 = vmatprep.subr.bf16.mxu0 %v3492
        %3620 = vmatpush1.bf16.msra.mxu0 %v3491
        %3621 = vmatprep.subr.bf16.mxu0 %v3494
        %3622 = vmatpush1.bf16.msra.mxu0 %v3493
        %3623 = vmatprep.subr.bf16.mxu0 %v3496
        %3624 = vmatpush1.bf16.msra.mxu0 %v3495
        %3625 = vmatprep.subr.bf16.mxu0 %v3498
        %3626 = vmatpush1.bf16.msra.mxu0 %v3497
        %3627 = vmatprep.subr.bf16.mxu0 %v3500
        %3628 = vmatpush1.bf16.msra.mxu0 %v3499
        %3629 = vmatprep.subr.bf16.mxu0 %v3502
        %3630 = vmatpush1.bf16.msra.mxu0 %v3501
        %3631 = vmatprep.subr.bf16.mxu0 %v3504
        %3632 = vmatpush1.bf16.msra.mxu0 %v3503
        %3633 = vmatprep.subr.bf16.mxu0 %v3506
        %3634 = vmatpush1.bf16.msra.mxu0 %v3505
        %3635 = vmatprep.subr.bf16.mxu0 %v3508
        %3636 = vmatpush1.bf16.msra.mxu0 %v3507
        %3637 = vmatprep.subr.bf16.mxu0 %v3510
        %3638 = vmatpush1.bf16.msra.mxu0 %v3509
        %3639 = vmatprep.subr.bf16.mxu0 %v3512
        %3640 = vmatpush1.bf16.msra.mxu0 %v3511
        %3641 = vmatprep.subr.bf16.mxu0 %v3514
        %3642 = vmatpush1.bf16.msra.mxu0 %v3513
        %3643 = vmatprep.subr.bf16.mxu0 %v3516
        %3644 = vmatpush1.bf16.msra.mxu0 %v3515
        %3645 = vmatprep.mubr.bf16.mxu0 %v3154
        %3646 = vmatmul.mubr.bf16.gmra.mrb[0].mxu0 %v3153
        %v3647 = vpop.f32.mrb[0].mxu0
        %v3648 = vadd.f32 %v3286, %v3647
        %v3649 = vpop.f32.mrb[0].mxu0
        %v3650 = vadd.f32 %v3290, %v3649
        %v3651 = vpop.f32.mrb[0].mxu0
        %v3652 = vadd.f32 %v3286, %v3651
        %v3653 = vpop.f32.mrb[0].mxu0
        %v3654 = vadd.f32 %v3290, %v3653
        %3655 = vmatprep.mubr.bf16.mxu0 %v3158
        %3656 = vmatmul.mubr.bf16.gmra.mrb[0].mxu0 %v3157
        %v3657 = vpop.f32.mrb[0].mxu0
        %v3658 = vadd.f32 %v3286, %v3657
        %v3659 = vpop.f32.mrb[0].mxu0
        %v3660 = vadd.f32 %v3290, %v3659
        %v3661 = vpop.f32.mrb[0].mxu0
        %v3662 = vadd.f32 %v3286, %v3661
        %v3663 = vpop.f32.mrb[0].mxu0
        %v3664 = vadd.f32 %v3290, %v3663
        %3665 = vmatprep.mubr.bf16.mxu0 %v3162
        %3666 = vmatmul.mubr.bf16.gmra.mrb[0].mxu0 %v3161
        %v3667 = vpop.f32.mrb[0].mxu0
        %v3668 = vadd.f32 %v3286, %v3667
        %v3669 = vpop.f32.mrb[0].mxu0
        %v3670 = vadd.f32 %v3290, %v3669
        %v3671 = vpop.f32.mrb[0].mxu0
        %v3672 = vadd.f32 %v3286, %v3671
        %v3673 = vpop.f32.mrb[0].mxu0
        %v3674 = vadd.f32 %v3290, %v3673
        %3675 = vmatprep.mubr.bf16.mxu0 %v3166
        %3676 = vmatmul.mubr.bf16.gmra.mrb[0].mxu0 %v3165
        %v3677 = vpop.f32.mrb[0].mxu0
        %v3678 = vadd.f32 %v3286, %v3677
        %v3679 = vpop.f32.mrb[0].mxu0
        %v3680 = vadd.f32 %v3290, %v3679
        %v3681 = vpop.f32.mrb[0].mxu0
        %v3682 = vadd.f32 %v3286, %v3681
        %v3683 = vpop.f32.mrb[0].mxu0
        %v3684 = vadd.f32 %v3290, %v3683
        %3685 = vmatprep.mubr.bf16.mxu0 %v3170
        %3686 = vmatmul.mubr.bf16.gmra.mrb[0].mxu0 %v3169
        %v3687 = vpop.f32.mrb[0].mxu0
        %v3688 = vadd.f32 %v3286, %v3687
        %v3689 = vpop.f32.mrb[0].mxu0
        %v3690 = vadd.f32 %v3290, %v3689
        %v3691 = vpop.f32.mrb[0].mxu0
        %v3692 = vadd.f32 %v3286, %v3691
        %v3693 = vpop.f32.mrb[0].mxu0
        %v3694 = vadd.f32 %v3290, %v3693
        %3695 = vmatprep.mubr.bf16.mxu0 %v3174
        %3696 = vmatmul.mubr.bf16.gmra.mrb[0].mxu0 %v3173
        %v3697 = vpop.f32.mrb[0].mxu0
        %v3698 = vadd.f32 %v3286, %v3697
        %v3699 = vpop.f32.mrb[0].mxu0
        %v3700 = vadd.f32 %v3290, %v3699
        %v3701 = vpop.f32.mrb[0].mxu0
        %v3702 = vadd.f32 %v3286, %v3701
        %v3703 = vpop.f32.mrb[0].mxu0
        %v3704 = vadd.f32 %v3290, %v3703
        %3705 = vmatprep.mubr.bf16.mxu0 %v3178
        %3706 = vmatmul.mubr.bf16.gmra.mrb[0].mxu0 %v3177
        %v3707 = vpop.f32.mrb[0].mxu0
        %v3708 = vadd.f32 %v3286, %v3707
        %v3709 = vpop.f32.mrb[0].mxu0
        %v3710 = vadd.f32 %v3290, %v3709
        %v3711 = vpop.f32.mrb[0].mxu0
        %v3712 = vadd.f32 %v3286, %v3711
        %v3713 = vpop.f32.mrb[0].mxu0
        %v3714 = vadd.f32 %v3290, %v3713
        %3715 = vmatprep.mubr.bf16.mxu0 %v3182
        %3716 = vmatmul.mubr.bf16.gmra.mrb[0].mxu0 %v3181
        %v3717 = vpop.f32.mrb[0].mxu0
        %v3718 = vadd.f32 %v3286, %v3717
        %v3719 = vpop.f32.mrb[0].mxu0
        %v3720 = vadd.f32 %v3290, %v3719
        %v3721 = vpop.f32.mrb[0].mxu0
        %v3722 = vadd.f32 %v3286, %v3721
        %v3723 = vpop.f32.mrb[0].mxu0
        %v3724 = vadd.f32 %v3290, %v3723
        %3725 = vmatprep.mubr.bf16.mxu0 %v3186
        %3726 = vmatmul.mubr.bf16.gmra.mrb[0].mxu0 %v3185
        %v3727 = vpop.f32.mrb[0].mxu0
        %v3728 = vadd.f32 %v3286, %v3727
        %v3729 = vpop.f32.mrb[0].mxu0
        %v3730 = vadd.f32 %v3290, %v3729
        %v3731 = vpop.f32.mrb[0].mxu0
        %v3732 = vadd.f32 %v3286, %v3731
        %v3733 = vpop.f32.mrb[0].mxu0
        %v3734 = vadd.f32 %v3290, %v3733
        %3735 = vmatprep.mubr.bf16.mxu0 %v3190
        %3736 = vmatmul.mubr.bf16.gmra.mrb[0].mxu0 %v3189
        %v3737 = vpop.f32.mrb[0].mxu0
        %v3738 = vadd.f32 %v3286, %v3737
        %v3739 = vpop.f32.mrb[0].mxu0
        %v3740 = vadd.f32 %v3290, %v3739
        %v3741 = vpop.f32.mrb[0].mxu0
        %v3742 = vadd.f32 %v3286, %v3741
        %v3743 = vpop.f32.mrb[0].mxu0
        %v3744 = vadd.f32 %v3290, %v3743
        %3745 = vmatprep.mubr.bf16.mxu0 %v3194
        %3746 = vmatmul.mubr.bf16.gmra.mrb[0].mxu0 %v3193
        %v3747 = vpop.f32.mrb[0].mxu0
        %v3748 = vadd.f32 %v3286, %v3747
        %v3749 = vpop.f32.mrb[0].mxu0
        %v3750 = vadd.f32 %v3290, %v3749
        %v3751 = vpop.f32.mrb[0].mxu0
        %v3752 = vadd.f32 %v3286, %v3751
        %v3753 = vpop.f32.mrb[0].mxu0
        %v3754 = vadd.f32 %v3290, %v3753
        %3755 = vmatprep.mubr.bf16.mxu0 %v3198
        %3756 = vmatmul.mubr.bf16.gmra.mrb[0].mxu0 %v3197
        %v3757 = vpop.f32.mrb[0].mxu0
        %v3758 = vadd.f32 %v3286, %v3757
        %v3759 = vpop.f32.mrb[0].mxu0
        %v3760 = vadd.f32 %v3290, %v3759
        %v3761 = vpop.f32.mrb[0].mxu0
        %v3762 = vadd.f32 %v3286, %v3761
        %v3763 = vpop.f32.mrb[0].mxu0
        %v3764 = vadd.f32 %v3290, %v3763
        %3765 = vmatprep.mubr.bf16.mxu0 %v3202
        %3766 = vmatmul.mubr.bf16.gmra.mrb[0].mxu0 %v3201
        %v3767 = vpop.f32.mrb[0].mxu0
        %v3768 = vadd.f32 %v3286, %v3767
        %v3769 = vpop.f32.mrb[0].mxu0
        %v3770 = vadd.f32 %v3290, %v3769
        %v3771 = vpop.f32.mrb[0].mxu0
        %v3772 = vadd.f32 %v3286, %v3771
        %v3773 = vpop.f32.mrb[0].mxu0
        %v3774 = vadd.f32 %v3290, %v3773
        %3775 = vmatprep.mubr.bf16.mxu0 %v3206
        %3776 = vmatmul.mubr.bf16.gmra.mrb[0].mxu0 %v3205
        %v3777 = vpop.f32.mrb[0].mxu0
        %v3778 = vadd.f32 %v3286, %v3777
        %v3779 = vpop.f32.mrb[0].mxu0
        %v3780 = vadd.f32 %v3290, %v3779
        %v3781 = vpop.f32.mrb[0].mxu0
        %v3782 = vadd.f32 %v3286, %v3781
        %v3783 = vpop.f32.mrb[0].mxu0
        %v3784 = vadd.f32 %v3290, %v3783
        %3785 = vmatprep.mubr.bf16.mxu0 %v3210
        %3786 = vmatmul.mubr.bf16.gmra.mrb[0].mxu0 %v3209
        %v3787 = vpop.f32.mrb[0].mxu0
        %v3788 = vadd.f32 %v3286, %v3787
        %v3789 = vpop.f32.mrb[0].mxu0
        %v3790 = vadd.f32 %v3290, %v3789
        %v3791 = vpop.f32.mrb[0].mxu0
        %v3792 = vadd.f32 %v3286, %v3791
        %v3793 = vpop.f32.mrb[0].mxu0
        %v3794 = vadd.f32 %v3290, %v3793
        %3795 = vmatprep.mubr.bf16.mxu0 %v3214
        %3796 = vmatmul.mubr.bf16.gmra.mrb[0].mxu0 %v3213
        %v3797 = vpop.f32.mrb[0].mxu0
        %v3798 = vadd.f32 %v3286, %v3797
        %v3799 = vpop.f32.mrb[0].mxu0
        %v3800 = vadd.f32 %v3290, %v3799
        %v3801 = vpop.f32.mrb[0].mxu0
        %v3802 = vadd.f32 %v3286, %v3801
        %v3803 = vpop.f32.mrb[0].mxu0
        %v3804 = vadd.f32 %v3290, %v3803
        %3805 = vdwg.mxu0
        %3806 = vmatprep.subr.bf16.mxu0 %v3518
        %3807 = vmatpush1.bf16.msra.mxu0 %v3517
        %3808 = vmatprep.subr.bf16.mxu0 %v3520
        %3809 = vmatpush1.bf16.msra.mxu0 %v3519
        %3810 = vmatprep.subr.bf16.mxu0 %v3522
        %3811 = vmatpush1.bf16.msra.mxu0 %v3521
        %3812 = vmatprep.subr.bf16.mxu0 %v3524
        %3813 = vmatpush1.bf16.msra.mxu0 %v3523
        %3814 = vmatprep.subr.bf16.mxu0 %v3526
        %3815 = vmatpush1.bf16.msra.mxu0 %v3525
        %3816 = vmatprep.subr.bf16.mxu0 %v3528
        %3817 = vmatpush1.bf16.msra.mxu0 %v3527
        %3818 = vmatprep.subr.bf16.mxu0 %v3530
        %3819 = vmatpush1.bf16.msra.mxu0 %v3529
        %3820 = vmatprep.subr.bf16.mxu0 %v3532
        %3821 = vmatpush1.bf16.msra.mxu0 %v3531
        %3822 = vmatprep.subr.bf16.mxu0 %v3534
        %3823 = vmatpush1.bf16.msra.mxu0 %v3533
        %3824 = vmatprep.subr.bf16.mxu0 %v3536
        %3825 = vmatpush1.bf16.msra.mxu0 %v3535
        %3826 = vmatprep.subr.bf16.mxu0 %v3538
        %3827 = vmatpush1.bf16.msra.mxu0 %v3537
        %3828 = vmatprep.subr.bf16.mxu0 %v3540
        %3829 = vmatpush1.bf16.msra.mxu0 %v3539
        %3830 = vmatprep.subr.bf16.mxu0 %v3542
        %3831 = vmatpush1.bf16.msra.mxu0 %v3541
        %3832 = vmatprep.subr.bf16.mxu0 %v3544
        %3833 = vmatpush1.bf16.msra.mxu0 %v3543
        %3834 = vmatprep.subr.bf16.mxu0 %v3546
        %3835 = vmatpush1.bf16.msra.mxu0 %v3545
        %3836 = vmatprep.subr.bf16.mxu0 %v3548
        %3837 = vmatpush1.bf16.msra.mxu0 %v3547
        %3838 = vmatprep.mubr.bf16.mxu0 %v3156
        %3839 = vmatmul.mubr.bf16.gmra.mrb[0].mxu0 %v3155
        %v3840 = vpop.f32.mrb[0].mxu0
        %v3841 = vadd.f32 %v3648, %v3840
        %v3842 = vpop.f32.mrb[0].mxu0
        %v3843 = vadd.f32 %v3650, %v3842
        %v3844 = vpop.f32.mrb[0].mxu0
        %v3845 = vadd.f32 %v3652, %v3844
        %v3846 = vpop.f32.mrb[0].mxu0
        %v3847 = vadd.f32 %v3654, %v3846
        %3848 = vmatprep.mubr.bf16.mxu0 %v3160
        %3849 = vmatmul.mubr.bf16.gmra.mrb[0].mxu0 %v3159
        %v3850 = vpop.f32.mrb[0].mxu0
        %v3851 = vadd.f32 %v3658, %v3850
        %v3852 = vpop.f32.mrb[0].mxu0
        %v3853 = vadd.f32 %v3660, %v3852
        %v3854 = vpop.f32.mrb[0].mxu0
        %v3855 = vadd.f32 %v3662, %v3854
        %v3856 = vpop.f32.mrb[0].mxu0
        %v3857 = vadd.f32 %v3664, %v3856
        %3858 = vmatprep.mubr.bf16.mxu0 %v3164
        %3859 = vmatmul.mubr.bf16.gmra.mrb[0].mxu0 %v3163
        %v3860 = vpop.f32.mrb[0].mxu0
        %v3861 = vadd.f32 %v3668, %v3860
        %v3862 = vpop.f32.mrb[0].mxu0
        %v3863 = vadd.f32 %v3670, %v3862
        %v3864 = vpop.f32.mrb[0].mxu0
        %v3865 = vadd.f32 %v3672, %v3864
        %v3866 = vpop.f32.mrb[0].mxu0
        %v3867 = vadd.f32 %v3674, %v3866
        %3868 = vmatprep.mubr.bf16.mxu0 %v3168
        %3869 = vmatmul.mubr.bf16.gmra.mrb[0].mxu0 %v3167
        %v3870 = vpop.f32.mrb[0].mxu0
        %v3871 = vadd.f32 %v3678, %v3870
        %v3872 = vpop.f32.mrb[0].mxu0
        %v3873 = vadd.f32 %v3680, %v3872
        %v3874 = vpop.f32.mrb[0].mxu0
        %v3875 = vadd.f32 %v3682, %v3874
        %v3876 = vpop.f32.mrb[0].mxu0
        %v3877 = vadd.f32 %v3684, %v3876
        %3878 = vmatprep.mubr.bf16.mxu0 %v3172
        %3879 = vmatmul.mubr.bf16.gmra.mrb[0].mxu0 %v3171
        %v3880 = vpop.f32.mrb[0].mxu0
        %v3881 = vadd.f32 %v3688, %v3880
        %v3882 = vpop.f32.mrb[0].mxu0
        %v3883 = vadd.f32 %v3690, %v3882
        %v3884 = vpop.f32.mrb[0].mxu0
        %v3885 = vadd.f32 %v3692, %v3884
        %v3886 = vpop.f32.mrb[0].mxu0
        %v3887 = vadd.f32 %v3694, %v3886
        %3888 = vmatprep.mubr.bf16.mxu0 %v3176
        %3889 = vmatmul.mubr.bf16.gmra.mrb[0].mxu0 %v3175
        %v3890 = vpop.f32.mrb[0].mxu0
        %v3891 = vadd.f32 %v3698, %v3890
        %v3892 = vpop.f32.mrb[0].mxu0
        %v3893 = vadd.f32 %v3700, %v3892
        %v3894 = vpop.f32.mrb[0].mxu0
        %v3895 = vadd.f32 %v3702, %v3894
        %v3896 = vpop.f32.mrb[0].mxu0
        %v3897 = vadd.f32 %v3704, %v3896
        %3898 = vmatprep.mubr.bf16.mxu0 %v3180
        %3899 = vmatmul.mubr.bf16.gmra.mrb[0].mxu0 %v3179
        %v3900 = vpop.f32.mrb[0].mxu0
        %v3901 = vadd.f32 %v3708, %v3900
        %v3902 = vpop.f32.mrb[0].mxu0
        %v3903 = vadd.f32 %v3710, %v3902
        %v3904 = vpop.f32.mrb[0].mxu0
        %v3905 = vadd.f32 %v3712, %v3904
        %v3906 = vpop.f32.mrb[0].mxu0
        %v3907 = vadd.f32 %v3714, %v3906
        %3908 = vmatprep.mubr.bf16.mxu0 %v3184
        %3909 = vmatmul.mubr.bf16.gmra.mrb[0].mxu0 %v3183
        %v3910 = vpop.f32.mrb[0].mxu0
        %v3911 = vadd.f32 %v3718, %v3910
        %v3912 = vpop.f32.mrb[0].mxu0
        %v3913 = vadd.f32 %v3720, %v3912
        %v3914 = vpop.f32.mrb[0].mxu0
        %v3915 = vadd.f32 %v3722, %v3914
        %v3916 = vpop.f32.mrb[0].mxu0
        %v3917 = vadd.f32 %v3724, %v3916
        %3918 = vmatprep.mubr.bf16.mxu0 %v3188
        %3919 = vmatmul.mubr.bf16.gmra.mrb[0].mxu0 %v3187
        %v3920 = vpop.f32.mrb[0].mxu0
        %v3921 = vadd.f32 %v3728, %v3920
        %v3922 = vpop.f32.mrb[0].mxu0
        %v3923 = vadd.f32 %v3730, %v3922
        %v3924 = vpop.f32.mrb[0].mxu0
        %v3925 = vadd.f32 %v3732, %v3924
        %v3926 = vpop.f32.mrb[0].mxu0
        %v3927 = vadd.f32 %v3734, %v3926
        %3928 = vmatprep.mubr.bf16.mxu0 %v3192
        %3929 = vmatmul.mubr.bf16.gmra.mrb[0].mxu0 %v3191
        %v3930 = vpop.f32.mrb[0].mxu0
        %v3931 = vadd.f32 %v3738, %v3930
        %v3932 = vpop.f32.mrb[0].mxu0
        %v3933 = vadd.f32 %v3740, %v3932
        %v3934 = vpop.f32.mrb[0].mxu0
        %v3935 = vadd.f32 %v3742, %v3934
        %v3936 = vpop.f32.mrb[0].mxu0
        %v3937 = vadd.f32 %v3744, %v3936
        %3938 = vmatprep.mubr.bf16.mxu0 %v3196
        %3939 = vmatmul.mubr.bf16.gmra.mrb[0].mxu0 %v3195
        %v3940 = vpop.f32.mrb[0].mxu0
        %v3941 = vadd.f32 %v3748, %v3940
        %v3942 = vpop.f32.mrb[0].mxu0
        %v3943 = vadd.f32 %v3750, %v3942
        %v3944 = vpop.f32.mrb[0].mxu0
        %v3945 = vadd.f32 %v3752, %v3944
        %v3946 = vpop.f32.mrb[0].mxu0
        %v3947 = vadd.f32 %v3754, %v3946
        %3948 = vmatprep.mubr.bf16.mxu0 %v3200
        %3949 = vmatmul.mubr.bf16.gmra.mrb[0].mxu0 %v3199
        %v3950 = vpop.f32.mrb[0].mxu0
        %v3951 = vadd.f32 %v3758, %v3950
        %v3952 = vpop.f32.mrb[0].mxu0
        %v3953 = vadd.f32 %v3760, %v3952
        %v3954 = vpop.f32.mrb[0].mxu0
        %v3955 = vadd.f32 %v3762, %v3954
        %v3956 = vpop.f32.mrb[0].mxu0
        %v3957 = vadd.f32 %v3764, %v3956
        %3958 = vmatprep.mubr.bf16.mxu0 %v3204
        %3959 = vmatmul.mubr.bf16.gmra.mrb[0].mxu0 %v3203
        %v3960 = vpop.f32.mrb[0].mxu0
        %v3961 = vadd.f32 %v3768, %v3960
        %v3962 = vpop.f32.mrb[0].mxu0
        %v3963 = vadd.f32 %v3770, %v3962
        %v3964 = vpop.f32.mrb[0].mxu0
        %v3965 = vadd.f32 %v3772, %v3964
        %v3966 = vpop.f32.mrb[0].mxu0
        %v3967 = vadd.f32 %v3774, %v3966
        %3968 = vmatprep.mubr.bf16.mxu0 %v3208
        %3969 = vmatmul.mubr.bf16.gmra.mrb[0].mxu0 %v3207
        %v3970 = vpop.f32.mrb[0].mxu0
        %v3971 = vadd.f32 %v3778, %v3970
        %v3972 = vpop.f32.mrb[0].mxu0
        %v3973 = vadd.f32 %v3780, %v3972
        %v3974 = vpop.f32.mrb[0].mxu0
        %v3975 = vadd.f32 %v3782, %v3974
        %v3976 = vpop.f32.mrb[0].mxu0
        %v3977 = vadd.f32 %v3784, %v3976
        %3978 = vmatprep.mubr.bf16.mxu0 %v3212
        %3979 = vmatmul.mubr.bf16.gmra.mrb[0].mxu0 %v3211
        %v3980 = vpop.f32.mrb[0].mxu0
        %v3981 = vadd.f32 %v3788, %v3980
        %v3982 = vpop.f32.mrb[0].mxu0
        %v3983 = vadd.f32 %v3790, %v3982
        %v3984 = vpop.f32.mrb[0].mxu0
        %v3985 = vadd.f32 %v3792, %v3984
        %v3986 = vpop.f32.mrb[0].mxu0
        %v3987 = vadd.f32 %v3794, %v3986
        %3988 = vmatprep.mubr.bf16.mxu0 %v3216
        %3989 = vmatmul.mubr.bf16.gmra.mrb[0].mxu0 %v3215
        %v3990 = vpop.f32.mrb[0].mxu0
        %v3991 = vadd.f32 %v3798, %v3990
        %v3992 = vpop.f32.mrb[0].mxu0
        %v3993 = vadd.f32 %v3800, %v3992
        %v3994 = vpop.f32.mrb[0].mxu0
        %v3995 = vadd.f32 %v3802, %v3994
        %v3996 = vpop.f32.mrb[0].mxu0
        %v3997 = vadd.f32 %v3804, %v3996
        %3998 = vdwg.mxu0
        %v3999 = vmax.f32 %v3841, %v3845
        %v4000 = vmax.f32 %v3999, %v3851
        %v4001 = vmax.f32 %v4000, %v3855
        %v4002 = vrot.slane %v4001, 4
        %v4003 = vmax.f32 %v4001, %v4002
        %v4004 = vrot.slane %v4003, 2
        %v4005 = vmax.f32 %v4003, %v4004
        %v4006 = vrot.slane %v4005, 1
        %v4007 = vmax.f32 %v4005, %v4006
        %v4008 = vmax.f32 %v3843, %v3847
        %v4009 = vmax.f32 %v4008, %v3853
        %v4010 = vmax.f32 %v4009, %v3857
        %v4011 = vrot.slane %v4010, 4
        %v4012 = vmax.f32 %v4010, %v4011
        %v4013 = vrot.slane %v4012, 2
        %v4014 = vmax.f32 %v4012, %v4013
        %v4015 = vrot.slane %v4014, 1
        %v4016 = vmax.f32 %v4014, %v4015
        %v4017 = vmax.f32 %v3861, %v3865
        %v4018 = vmax.f32 %v4017, %v3871
        %v4019 = vmax.f32 %v4018, %v3875
        %v4020 = vrot.slane %v4019, 4
        %v4021 = vmax.f32 %v4019, %v4020
        %v4022 = vrot.slane %v4021, 2
        %v4023 = vmax.f32 %v4021, %v4022
        %v4024 = vrot.slane %v4023, 1
        %v4025 = vmax.f32 %v4023, %v4024
        %v4026 = vmax.f32 %v3863, %v3867
        %v4027 = vmax.f32 %v4026, %v3873
        %v4028 = vmax.f32 %v4027, %v3877
        %v4029 = vrot.slane %v4028, 4
        %v4030 = vmax.f32 %v4028, %v4029
        %v4031 = vrot.slane %v4030, 2
        %v4032 = vmax.f32 %v4030, %v4031
        %v4033 = vrot.slane %v4032, 1
        %v4034 = vmax.f32 %v4032, %v4033
        %v4035 = vmax.f32 %v3881, %v3885
        %v4036 = vmax.f32 %v4035, %v3891
        %v4037 = vmax.f32 %v4036, %v3895
        %v4038 = vrot.slane %v4037, 4
        %v4039 = vmax.f32 %v4037, %v4038
        %v4040 = vrot.slane %v4039, 2
        %v4041 = vmax.f32 %v4039, %v4040
        %v4042 = vrot.slane %v4041, 1
        %v4043 = vmax.f32 %v4041, %v4042
        %v4044 = vmax.f32 %v3883, %v3887
        %v4045 = vmax.f32 %v4044, %v3893
        %v4046 = vmax.f32 %v4045, %v3897
        %v4047 = vrot.slane %v4046, 4
        %v4048 = vmax.f32 %v4046, %v4047
        %v4049 = vrot.slane %v4048, 2
        %v4050 = vmax.f32 %v4048, %v4049
        %v4051 = vrot.slane %v4050, 1
        %v4052 = vmax.f32 %v4050, %v4051
        %v4053 = vmax.f32 %v3901, %v3905
        %v4054 = vmax.f32 %v4053, %v3911
        %v4055 = vmax.f32 %v4054, %v3915
        %v4056 = vrot.slane %v4055, 4
        %v4057 = vmax.f32 %v4055, %v4056
        %v4058 = vrot.slane %v4057, 2
        %v4059 = vmax.f32 %v4057, %v4058
        %v4060 = vrot.slane %v4059, 1
        %v4061 = vmax.f32 %v4059, %v4060
        %v4062 = vmax.f32 %v3903, %v3907
        %v4063 = vmax.f32 %v4062, %v3913
        %v4064 = vmax.f32 %v4063, %v3917
        %v4065 = vrot.slane %v4064, 4
        %v4066 = vmax.f32 %v4064, %v4065
        %v4067 = vrot.slane %v4066, 2
        %v4068 = vmax.f32 %v4066, %v4067
        %v4069 = vrot.slane %v4068, 1
        %v4070 = vmax.f32 %v4068, %v4069
        %v4071 = vmax.f32 %v3921, %v3925
        %v4072 = vmax.f32 %v4071, %v3931
        %v4073 = vmax.f32 %v4072, %v3935
        %v4074 = vrot.slane %v4073, 4
        %v4075 = vmax.f32 %v4073, %v4074
        %v4076 = vrot.slane %v4075, 2
        %v4077 = vmax.f32 %v4075, %v4076
        %v4078 = vrot.slane %v4077, 1
        %v4079 = vmax.f32 %v4077, %v4078
        %v4080 = vmax.f32 %v3923, %v3927
        %v4081 = vmax.f32 %v4080, %v3933
        %v4082 = vmax.f32 %v4081, %v3937
        %v4083 = vrot.slane %v4082, 4
        %v4084 = vmax.f32 %v4082, %v4083
        %v4085 = vrot.slane %v4084, 2
        %v4086 = vmax.f32 %v4084, %v4085
        %v4087 = vrot.slane %v4086, 1
        %v4088 = vmax.f32 %v4086, %v4087
        %v4089 = vmax.f32 %v3941, %v3945
        %v4090 = vmax.f32 %v4089, %v3951
        %v4091 = vmax.f32 %v4090, %v3955
        %v4092 = vrot.slane %v4091, 4
        %v4093 = vmax.f32 %v4091, %v4092
        %v4094 = vrot.slane %v4093, 2
        %v4095 = vmax.f32 %v4093, %v4094
        %v4096 = vrot.slane %v4095, 1
        %v4097 = vmax.f32 %v4095, %v4096
        %v4098 = vmax.f32 %v3943, %v3947
        %v4099 = vmax.f32 %v4098, %v3953
        %v4100 = vmax.f32 %v4099, %v3957
        %v4101 = vrot.slane %v4100, 4
        %v4102 = vmax.f32 %v4100, %v4101
        %v4103 = vrot.slane %v4102, 2
        %v4104 = vmax.f32 %v4102, %v4103
        %v4105 = vrot.slane %v4104, 1
        %v4106 = vmax.f32 %v4104, %v4105
        %v4107 = vmax.f32 %v3961, %v3965
        %v4108 = vmax.f32 %v4107, %v3971
        %v4109 = vmax.f32 %v4108, %v3975
        %v4110 = vrot.slane %v4109, 4
        %v4111 = vmax.f32 %v4109, %v4110
        %v4112 = vrot.slane %v4111, 2
        %v4113 = vmax.f32 %v4111, %v4112
        %v4114 = vrot.slane %v4113, 1
        %v4115 = vmax.f32 %v4113, %v4114
        %v4116 = vmax.f32 %v3963, %v3967
        %v4117 = vmax.f32 %v4116, %v3973
        %v4118 = vmax.f32 %v4117, %v3977
        %v4119 = vrot.slane %v4118, 4
        %v4120 = vmax.f32 %v4118, %v4119
        %v4121 = vrot.slane %v4120, 2
        %v4122 = vmax.f32 %v4120, %v4121
        %v4123 = vrot.slane %v4122, 1
        %v4124 = vmax.f32 %v4122, %v4123
        %v4125 = vmax.f32 %v3981, %v3985
        %v4126 = vmax.f32 %v4125, %v3991
        %v4127 = vmax.f32 %v4126, %v3995
        %v4128 = vrot.slane %v4127, 4
        %v4129 = vmax.f32 %v4127, %v4128
        %v4130 = vrot.slane %v4129, 2
        %v4131 = vmax.f32 %v4129, %v4130
        %v4132 = vrot.slane %v4131, 1
        %v4133 = vmax.f32 %v4131, %v4132
        %v4134 = vmax.f32 %v3983, %v3987
        %v4135 = vmax.f32 %v4134, %v3993
        %v4136 = vmax.f32 %v4135, %v3997
        %v4137 = vrot.slane %v4136, 4
        %v4138 = vmax.f32 %v4136, %v4137
        %v4139 = vrot.slane %v4138, 2
        %v4140 = vmax.f32 %v4138, %v4139
        %v4141 = vrot.slane %v4140, 1
        %v4142 = vmax.f32 %v4140, %v4141
        %v4159 = vsel %vm1286, %v4025, %v4007
        %v4160 = vsel %vm1288, %v4043, %v4159
        %v4161 = vsel %vm1290, %v4061, %v4160
        %v4162 = vsel %vm1292, %v4079, %v4161
        %v4163 = vsel %vm1294, %v4097, %v4162
        %v4164 = vsel %vm1296, %v4115, %v4163
        %v4165 = vsel %vm1298, %v4133, %v4164
        %v4166 = vsel %vm1286, %v4034, %v4016
        %v4167 = vsel %vm1288, %v4052, %v4166
        %v4168 = vsel %vm1290, %v4070, %v4167
        %v4169 = vsel %vm1292, %v4088, %v4168
        %v4170 = vsel %vm1294, %v4106, %v4169
        %v4171 = vsel %vm1296, %v4124, %v4170
        %v4172 = vsel %vm1298, %v4142, %v4171
        %4175 = vst [vmem:[%s399] sm:$0xff] %v4165
        %4176 = vst [vmem:[%s399 + $0x8] sm:$0xff] %v4172
        %s4177 = sand.u32 %s249, 1
        %s4178 = scalar_lea.sflag [#allocation4], %s4177
        %s4179 = sand.u32 %s249, 1
        %s4180 = smul.addr %s4179, 16
        %s4181 = scalar_lea.vmem [#allocation8], %s4180
        // Predicated region
        $region73: #{tpu_custom_call.1} parent=59 // pred_check
          %p4182 = pneg %p259
        $region74: #{tpu_custom_call.1} parent=59 // pred_check_branch
          %4184 = sbr.rel (%p4182) target = $region76
        $region75: #{tpu_custom_call.1} parent=59 // pred_region
          %s4186 = ssub.s32 256, 256
          %4187 = vsyncadd %s4178, %s4186
          %s4188 = smul.addr %s26, 2
          %s4189 = smul.addr %s4188, 128
          %s4190 = scalar_lea.hbm %s10, %s4189
          %s4192 = sshll.u32 %s4181, 4
          %s4193 = int_to_ptr.vmem [resolvable:$true] %s4192
          %4195 = dma.vmem_to_hbm [thread:$0]  %s4193, 256, %s4190, %s4178
        $region76: #{tpu_custom_call.1} parent=59 // pred_fallthru
          _
      $region60: #{tpu_custom_call.1} parent=5 // pred_fallthru
        _
      %p4196 = scmp.le.s32.totalorder 2, %s21
      // Predicated region
      $region77: #{tpu_custom_call.1} parent=5 // pred_check
        %p4197 = pneg %p4196
      $region78: #{tpu_custom_call.1} parent=5 // pred_check_branch
        %4199 = sbr.rel (%p4197) target = $region80
      $region79: #{tpu_custom_call.1} parent=5 // pred_region
        %s4200 = ssub.s32 %s21, 2
        // Predicated region
        $region81: #{tpu_custom_call.1} parent=79 // pred_check
          %p4201 = pneg %p265
        $region82: #{tpu_custom_call.1} parent=79 // pred_check_branch
          %4203 = sbr.rel (%p4201) target = $region84
        $region83: #{tpu_custom_call.1} parent=79 // pred_region
          %s4204 = sand.u32 %s250, 1
          %s4205 = scalar_lea.sflag [#allocation4], %s4204
          %s4206 = sand.u32 %s250, 1
          %s4207 = smul.addr %s4206, 16
          %s4208 = scalar_lea.vmem [#allocation8], %s4207
          %4209 = dma.done %s4205, 256
        $region84: #{tpu_custom_call.1} parent=79 // pred_fallthru
          _
      $region80: #{tpu_custom_call.1} parent=5 // pred_fallthru
        _
    $region6: #{tpu_custom_call.1} parent=1 // loop_footer
      %s25 = sadd.s32 1, %s21
    $region7: #{tpu_custom_call.1} parent=1 // loop_footer_branch
      %20 = sbr.rel target = $region3
    $region8: #{tpu_custom_call.1} parent=1 // loop_exit
      _
    %4210 = vsyncpa [#allocation3], 1
    %s4211 = scalar_lea.sflag [#allocation3], 1
    %4212 = vsyncpa %s4211, 1
    %4213 = vsyncpa [#allocation6], 1
    %4214 = vsyncpa [#allocation4], 1
    %s4215 = scalar_lea.sflag [#allocation4], 1
    %4216 = vsyncpa %s4215, 1

</llo_original>
